<compile_context>
chip_gen: v7x
topology: tpu7x:2x2x1
jax: 0.10.0
libtpu: 0.0.40
codegen_flags: <defaults>
</compile_context>

<pallas_src>
import functools

import jax
import jax.numpy as jnp
from jax import lax
from jax.experimental import pallas as pl
from jax.experimental.pallas import tpu as pltpu


def _resblock_kernel(x_ref, w1_ref, b1_ref, w2_ref, b2_ref, out_ref,
                     xpad_ref, patch_ref, *, H, W, mm_dtype):
    # x_ref  : (1, C, H*W)   one image, NCHW-flat (lane dim = H*W, lane-dense)
    # w1/w2  : (9*C, C)      conv weights (HWIO flattened), BN scale folded in
    # b1/b2  : (1, C)        folded BatchNorm bias (f32)
    # out_ref: (1, C, H*W)   NCHW-flat output (lane-dense store)
    # xpad_ref : (H+2, W+2, C) f32 VMEM scratch (zero-padded activation)
    # patch_ref: (H*W, 9*C)    f32 VMEM scratch (im2col patch matrix)
    C = w1_ref.shape[1]
    HW = H * W

    # One lane-dense load; transpose to channel-minor (H*W, C) on the XLU.
    x_cm = x_ref[0]                                   # (C, H*W)
    x_hwc = x_cm.T                                    # (H*W, C)
    residual = x_hwc.astype(jnp.float32)

    # Zero the padded scratch once per step; only the interior is rewritten
    # below, so the 1-pixel border stays zero for both convs.
    xpad_ref[...] = jnp.zeros(xpad_ref.shape, xpad_ref.dtype)

    def conv3x3(w_ref):
        # Build the (H*W, 9*C) im2col patch matrix in VMEM, then ONE matmul
        # with K = 9*C (instead of nine K=C matmuls).
        for k in range(9):
            dy, dx = k // 3, k % 3
            patch_ref[:, k * C:(k + 1) * C] = (
                xpad_ref[dy:dy + H, dx:dx + W, :].reshape(HW, C))
        return jnp.dot(patch_ref[...].astype(mm_dtype), w_ref[...],
                       preferred_element_type=jnp.float32)

    # conv1 + folded BN1 + ReLU  (f32 epilogue)
    xpad_ref[1:H + 1, 1:W + 1, :] = (
        x_hwc.astype(xpad_ref.dtype).reshape(H, W, C))
    h = jnp.maximum(conv3x3(w1_ref) + b1_ref[0], 0.0)          # (H*W, C) f32

    # conv2 + folded BN2 + residual add + ReLU  (f32 epilogue)
    xpad_ref[1:H + 1, 1:W + 1, :] = (
        h.astype(xpad_ref.dtype).reshape(H, W, C))
    y = jnp.maximum(conv3x3(w2_ref) + b2_ref[0] + residual, 0.0)

    # Lane-dense store in NCHW-flat layout: last dim = H*W (multiple of 128).
    out_ref[...] = y.T.reshape(1, C, HW).astype(out_ref.dtype)


def _fold_bn(gamma, beta, mean, var, eps=1e-5):
    scale = gamma / jnp.sqrt(var + eps)
    bias = beta - mean * scale
    return scale, bias


def resblock_forward(x_nchw, params, *, matmul_dtype=jnp.float32):
    """ResBlock forward (stride=1, downsample=None). NCHW in / NCHW out."""
    N, C, H, W = x_nchw.shape

    # Fold BN (inference mode) into the conv weights + a per-channel bias:
    #   BN(conv(x, w)) = conv(x, w * scale) + bias
    s1, b1 = _fold_bn(*params["bn1"])
    s2, b2 = _fold_bn(*params["bn2"])
    w1f = (params["w1"] * s1).reshape(9 * C, C).astype(matmul_dtype)
    w2f = (params["w2"] * s2).reshape(9 * C, C).astype(matmul_dtype)
    b1r = b1.reshape(1, C).astype(jnp.float32)
    b2r = b2.reshape(1, C).astype(jnp.float32)

    # NCHW-flat layout: a free, contiguous reshape (no HBM transpose).
    x_flat = x_nchw.reshape(N, C, H * W)

    kernel = functools.partial(_resblock_kernel, H=H, W=W,
                               mm_dtype=matmul_dtype)
    out_flat = pl.pallas_call(
        kernel,
        out_shape=jax.ShapeDtypeStruct((N, C, H * W), x_nchw.dtype),
        grid_spec=pltpu.PrefetchScalarGridSpec(
            num_scalar_prefetch=0,
            grid=(N,),
            in_specs=[
                pl.BlockSpec((1, C, H * W), lambda n: (n, 0, 0)),
                pl.BlockSpec((9 * C, C), lambda n: (0, 0)),
                pl.BlockSpec((1, C), lambda n: (0, 0)),
                pl.BlockSpec((9 * C, C), lambda n: (0, 0)),
                pl.BlockSpec((1, C), lambda n: (0, 0)),
            ],
            out_specs=pl.BlockSpec((1, C, H * W), lambda n: (n, 0, 0)),
            scratch_shapes=[
                pltpu.VMEM((H + 2, W + 2, C), jnp.float32),   # padded act
                pltpu.VMEM((H * W, 9 * C), jnp.float32),      # im2col patches
            ],
        ),
        compiler_params=pltpu.CompilerParams(
            dimension_semantics=("parallel",)),
    )(x_flat, w1f, b1r, w2f, b2r)

    return out_flat.reshape(N, C, H, W)


def _reference_forward(x_nchw, params):
    """Pure-JAX reference (lax.conv) for correctness checking."""
    def conv(x, w_hwio):
        w_oihw = jnp.transpose(w_hwio, (3, 2, 0, 1))
        return lax.conv_general_dilated(
            x, w_oihw, window_strides=(1, 1), padding=((1, 1), (1, 1)),
            dimension_numbers=("NCHW", "OIHW", "NCHW"))

    def bn(x, gamma, beta, mean, var, eps=1e-5):
        sc = (gamma / jnp.sqrt(var + eps)).reshape(1, -1, 1, 1)
        bi = (beta - mean * gamma / jnp.sqrt(var + eps)).reshape(1, -1, 1, 1)
        return x * sc + bi

    out = jnp.maximum(bn(conv(x_nchw, params["w1"]), *params["bn1"]), 0.0)
    out = bn(conv(out, params["w2"]), *params["bn2"]) + x_nchw
    return jnp.maximum(out, 0.0)


if __name__ == "__main__":
    # Small shapes consistent with the module: inplanes = planes = 4.
    N, C, H, W = 2, 4, 16, 16
    key = jax.random.PRNGKey(0)
    k_x, k_w1, k_w2, k_g1, k_b1, k_m1, k_v1, k_g2, k_b2, k_m2, k_v2 = (
        jax.random.split(key, 11))

    x = jax.random.normal(k_x, (N, C, H, W), jnp.float32)

    # Deterministic synthetic parameters (conv weights stored HWIO).
    params = {
        "w1": 0.1 * jax.random.normal(k_w1, (3, 3, C, C), jnp.float32),
        "w2": 0.1 * jax.random.normal(k_w2, (3, 3, C, C), jnp.float32),
        "bn1": (1.0 + 0.1 * jax.random.normal(k_g1, (C,), jnp.float32),
                0.1 * jax.random.normal(k_b1, (C,), jnp.float32),
                0.1 * jax.random.normal(k_m1, (C,), jnp.float32),
                1.0 + 0.1 * jax.random.uniform(k_v1, (C,), jnp.float32)),
        "bn2": (1.0 + 0.1 * jax.random.normal(k_g2, (C,), jnp.float32),
                0.1 * jax.random.normal(k_b2, (C,), jnp.float32),
                0.1 * jax.random.normal(k_m2, (C,), jnp.float32),
                1.0 + 0.1 * jax.random.uniform(k_v2, (C,), jnp.float32)),
    }

    ref = jax.block_until_ready(_reference_forward(x, params))

    # f32 MXU path: must match the lax.conv reference tightly.
    out = jax.block_until_ready(resblock_forward(x, params))
    assert out.shape == (N, C, H, W)
    assert jnp.max(jnp.abs(out - ref)) < 1e-4, "f32 mismatch vs reference"

    # bf16 MXU path (perf path for v5e/v6e/v7x): bf16 operands, f32 accumulate
    # and f32 epilogue -> only bf16 rounding error expected.
    out_bf16 = jax.block_until_ready(
        resblock_forward(x, params, matmul_dtype=jnp.bfloat16))
    assert jnp.max(jnp.abs(out_bf16 - ref)) < 0.2, "bf16 mismatch vs reference"

    print("KERNEL_OK")
</pallas_src>

<mosaic_0001>
module attributes {stable_mosaic.version = 11 : i64} {
  func.func @_resblock_kernel(%arg0: i32, %arg1: memref<1x4x256xf32, #tpu.memory_space<vmem>>, %arg2: memref<36x4xf32, #tpu.memory_space<vmem>>, %arg3: memref<1x4xf32, #tpu.memory_space<vmem>>, %arg4: memref<36x4xf32, #tpu.memory_space<vmem>>, %arg5: memref<1x4xf32, #tpu.memory_space<vmem>>, %arg6: memref<1x4x256xf32, #tpu.memory_space<vmem>>, %arg7: memref<18x18x4xf32, #tpu.memory_space<vmem>>, %arg8: memref<256x36xf32, #tpu.memory_space<vmem>>) attributes {dimension_semantics = [#tpu.dimension_semantics<parallel>], iteration_bounds = array<i64: 2>, scalar_prefetch = 0 : i64, scratch_operands = 2 : i64, tpu.core_type = #tpu.core_type<tc>, window_params = [{transform_indices = @transform_0, window_bounds = array<i64: 1, 4, 256>}, {pipeline_mode = #tpu.pipeline_mode<synchronous>, transform_indices = @transform_1, window_bounds = array<i64: 36, 4>}, {pipeline_mode = #tpu.pipeline_mode<synchronous>, transform_indices = @transform_2, window_bounds = array<i64: 1, 4>}, {pipeline_mode = #tpu.pipeline_mode<synchronous>, transform_indices = @transform_3, window_bounds = array<i64: 36, 4>}, {pipeline_mode = #tpu.pipeline_mode<synchronous>, transform_indices = @transform_4, window_bounds = array<i64: 1, 4>}, {transform_indices = @transform_5, window_bounds = array<i64: 1, 4, 256>}]} {
    %c0 = arith.constant 0 : index
    %c0_0 = arith.constant 0 : index
    %c0_1 = arith.constant 0 : index
    %0 = vector.load %arg1[%c0, %c0_0, %c0_1] : memref<1x4x256xf32, #tpu.memory_space<vmem>>, vector<1x4x256xf32>
    %1 = vector.shape_cast %0 : vector<1x4x256xf32> to vector<4x256xf32>
    %2 = tpu.transpose %1, [1, 0] : vector<4x256xf32> -> vector<256x4xf32>
    %cst = arith.constant 0.000000e+00 : f32
    %3 = vector.broadcast %cst : f32 to vector<18x18x4xf32>
    %c0_2 = arith.constant 0 : index
    %c0_3 = arith.constant 0 : index
    %c0_4 = arith.constant 0 : index
    %4 = vector.load %arg7[%c0_2, %c0_3, %c0_4] : memref<18x18x4xf32, #tpu.memory_space<vmem>>, vector<18x18x4xf32>
    tpu.vector_store %arg7[%c0_2, %c0_3, %c0_4], %3 {strides = array<i32>} : memref<18x18x4xf32, #tpu.memory_space<vmem>>, vector<18x18x4xf32>,
    %5 = vector.shape_cast %2 : vector<256x4xf32> to vector<16x16x4xf32>
    %c1 = arith.constant 1 : index
    %c1_5 = arith.constant 1 : index
    %c0_6 = arith.constant 0 : index
    %6 = vector.load %arg7[%c1, %c1_5, %c0_6] : memref<18x18x4xf32, #tpu.memory_space<vmem>>, vector<16x16x4xf32>
    tpu.vector_store %arg7[%c1, %c1_5, %c0_6], %5 {strides = array<i32>} : memref<18x18x4xf32, #tpu.memory_space<vmem>>, vector<16x16x4xf32>,
    %c0_7 = arith.constant 0 : index
    %c0_8 = arith.constant 0 : index
    %c0_9 = arith.constant 0 : index
    %7 = vector.load %arg7[%c0_7, %c0_8, %c0_9] : memref<18x18x4xf32, #tpu.memory_space<vmem>>, vector<16x16x4xf32>
    %8 = vector.shape_cast %7 : vector<16x16x4xf32> to vector<256x4xf32>
    %c0_10 = arith.constant 0 : index
    %c0_11 = arith.constant 0 : index
    %9 = vector.load %arg8[%c0_10, %c0_11] : memref<256x36xf32, #tpu.memory_space<vmem>>, vector<256x4xf32>
    tpu.vector_store %arg8[%c0_10, %c0_11], %8 {strides = array<i32>} : memref<256x36xf32, #tpu.memory_space<vmem>>, vector<256x4xf32>,
    %c0_12 = arith.constant 0 : index
    %c1_13 = arith.constant 1 : index
    %c0_14 = arith.constant 0 : index
    %10 = vector.load %arg7[%c0_12, %c1_13, %c0_14] : memref<18x18x4xf32, #tpu.memory_space<vmem>>, vector<16x16x4xf32>
    %11 = vector.shape_cast %10 : vector<16x16x4xf32> to vector<256x4xf32>
    %c0_15 = arith.constant 0 : index
    %c4 = arith.constant 4 : index
    %12 = vector.load %arg8[%c0_15, %c4] : memref<256x36xf32, #tpu.memory_space<vmem>>, vector<256x4xf32>
    tpu.vector_store %arg8[%c0_15, %c4], %11 {strides = array<i32>} : memref<256x36xf32, #tpu.memory_space<vmem>>, vector<256x4xf32>,
    %c0_16 = arith.constant 0 : index
    %c2 = arith.constant 2 : index
    %c0_17 = arith.constant 0 : index
    %13 = vector.load %arg7[%c0_16, %c2, %c0_17] : memref<18x18x4xf32, #tpu.memory_space<vmem>>, vector<16x16x4xf32>
    %14 = vector.shape_cast %13 : vector<16x16x4xf32> to vector<256x4xf32>
    %c0_18 = arith.constant 0 : index
    %c8 = arith.constant 8 : index
    %15 = vector.load %arg8[%c0_18, %c8] : memref<256x36xf32, #tpu.memory_space<vmem>>, vector<256x4xf32>
    tpu.vector_store %arg8[%c0_18, %c8], %14 {strides = array<i32>} : memref<256x36xf32, #tpu.memory_space<vmem>>, vector<256x4xf32>,
    %c1_19 = arith.constant 1 : index
    %c0_20 = arith.constant 0 : index
    %c0_21 = arith.constant 0 : index
    %16 = vector.load %arg7[%c1_19, %c0_20, %c0_21] : memref<18x18x4xf32, #tpu.memory_space<vmem>>, vector<16x16x4xf32>
    %17 = vector.shape_cast %16 : vector<16x16x4xf32> to vector<256x4xf32>
    %c0_22 = arith.constant 0 : index
    %c12 = arith.constant 12 : index
    %18 = vector.load %arg8[%c0_22, %c12] : memref<256x36xf32, #tpu.memory_space<vmem>>, vector<256x4xf32>
    tpu.vector_store %arg8[%c0_22, %c12], %17 {strides = array<i32>} : memref<256x36xf32, #tpu.memory_space<vmem>>, vector<256x4xf32>,
    %c1_23 = arith.constant 1 : index
    %c1_24 = arith.constant 1 : index
    %c0_25 = arith.constant 0 : index
    %19 = vector.load %arg7[%c1_23, %c1_24, %c0_25] : memref<18x18x4xf32, #tpu.memory_space<vmem>>, vector<16x16x4xf32>
    %20 = vector.shape_cast %19 : vector<16x16x4xf32> to vector<256x4xf32>
    %c0_26 = arith.constant 0 : index
    %c16 = arith.constant 16 : index
    %21 = vector.load %arg8[%c0_26, %c16] : memref<256x36xf32, #tpu.memory_space<vmem>>, vector<256x4xf32>
    tpu.vector_store %arg8[%c0_26, %c16], %20 {strides = array<i32>} : memref<256x36xf32, #tpu.memory_space<vmem>>, vector<256x4xf32>,
    %c1_27 = arith.constant 1 : index
    %c2_28 = arith.constant 2 : index
    %c0_29 = arith.constant 0 : index
    %22 = vector.load %arg7[%c1_27, %c2_28, %c0_29] : memref<18x18x4xf32, #tpu.memory_space<vmem>>, vector<16x16x4xf32>
    %23 = vector.shape_cast %22 : vector<16x16x4xf32> to vector<256x4xf32>
    %c0_30 = arith.constant 0 : index
    %c20 = arith.constant 20 : index
    %24 = vector.load %arg8[%c0_30, %c20] : memref<256x36xf32, #tpu.memory_space<vmem>>, vector<256x4xf32>
    tpu.vector_store %arg8[%c0_30, %c20], %23 {strides = array<i32>} : memref<256x36xf32, #tpu.memory_space<vmem>>, vector<256x4xf32>,
    %c2_31 = arith.constant 2 : index
    %c0_32 = arith.constant 0 : index
    %c0_33 = arith.constant 0 : index
    %25 = vector.load %arg7[%c2_31, %c0_32, %c0_33] : memref<18x18x4xf32, #tpu.memory_space<vmem>>, vector<16x16x4xf32>
    %26 = vector.shape_cast %25 : vector<16x16x4xf32> to vector<256x4xf32>
    %c0_34 = arith.constant 0 : index
    %c24 = arith.constant 24 : index
    %27 = vector.load %arg8[%c0_34, %c24] : memref<256x36xf32, #tpu.memory_space<vmem>>, vector<256x4xf32>
    tpu.vector_store %arg8[%c0_34, %c24], %26 {strides = array<i32>} : memref<256x36xf32, #tpu.memory_space<vmem>>, vector<256x4xf32>,
    %c2_35 = arith.constant 2 : index
    %c1_36 = arith.constant 1 : index
    %c0_37 = arith.constant 0 : index
    %28 = vector.load %arg7[%c2_35, %c1_36, %c0_37] : memref<18x18x4xf32, #tpu.memory_space<vmem>>, vector<16x16x4xf32>
    %29 = vector.shape_cast %28 : vector<16x16x4xf32> to vector<256x4xf32>
    %c0_38 = arith.constant 0 : index
    %c28 = arith.constant 28 : index
    %30 = vector.load %arg8[%c0_38, %c28] : memref<256x36xf32, #tpu.memory_space<vmem>>, vector<256x4xf32>
    tpu.vector_store %arg8[%c0_38, %c28], %29 {strides = array<i32>} : memref<256x36xf32, #tpu.memory_space<vmem>>, vector<256x4xf32>,
    %c2_39 = arith.constant 2 : index
    %c2_40 = arith.constant 2 : index
    %c0_41 = arith.constant 0 : index
    %31 = vector.load %arg7[%c2_39, %c2_40, %c0_41] : memref<18x18x4xf32, #tpu.memory_space<vmem>>, vector<16x16x4xf32>
    %32 = vector.shape_cast %31 : vector<16x16x4xf32> to vector<256x4xf32>
    %c0_42 = arith.constant 0 : index
    %c32 = arith.constant 32 : index
    %33 = vector.load %arg8[%c0_42, %c32] : memref<256x36xf32, #tpu.memory_space<vmem>>, vector<256x4xf32>
    tpu.vector_store %arg8[%c0_42, %c32], %32 {strides = array<i32>} : memref<256x36xf32, #tpu.memory_space<vmem>>, vector<256x4xf32>,
    %c0_43 = arith.constant 0 : index
    %c0_44 = arith.constant 0 : index
    %34 = vector.load %arg8[%c0_43, %c0_44] : memref<256x36xf32, #tpu.memory_space<vmem>>, vector<256x36xf32>
    %c0_45 = arith.constant 0 : index
    %c0_46 = arith.constant 0 : index
    %35 = vector.load %arg2[%c0_45, %c0_46] : memref<36x4xf32, #tpu.memory_space<vmem>>, vector<36x4xf32>
    %cst_47 = arith.constant dense<0.000000e+00> : vector<256x4xf32>
    %36 = tpu.matmul %34, %35, %cst_47 {dimension_numbers = #tpu.dot_dimension_numbers<[1], [0], [0], [1], [0, 0, 1, 1], [], []>} : vector<256x36xf32>, vector<36x4xf32>, vector<256x4xf32> -> vector<256x4xf32>
    %c0_48 = arith.constant 0 : index
    %c0_49 = arith.constant 0 : index
    %37 = vector.load %arg3[%c0_48, %c0_49] : memref<1x4xf32, #tpu.memory_space<vmem>>, vector<1x4xf32>
    %38 = vector.shape_cast %37 : vector<1x4xf32> to vector<4xf32>
    %39 = vector.shape_cast %38 : vector<4xf32> to vector<1x4xf32>
    %40 = vector.broadcast %39 : vector<1x4xf32> to vector<256x4xf32>
    %41 = arith.addf %36, %40 : vector<256x4xf32>
    %cst_50 = arith.constant 0.000000e+00 : f32
    %42 = vector.broadcast %cst_50 : f32 to vector<256x4xf32>
    %43 = arith.maximumf %41, %42 : vector<256x4xf32>
    %44 = vector.shape_cast %43 : vector<256x4xf32> to vector<16x16x4xf32>
    %c1_51 = arith.constant 1 : index
    %c1_52 = arith.constant 1 : index
    %c0_53 = arith.constant 0 : index
    %45 = vector.load %arg7[%c1_51, %c1_52, %c0_53] : memref<18x18x4xf32, #tpu.memory_space<vmem>>, vector<16x16x4xf32>
    tpu.vector_store %arg7[%c1_51, %c1_52, %c0_53], %44 {strides = array<i32>} : memref<18x18x4xf32, #tpu.memory_space<vmem>>, vector<16x16x4xf32>,
    %c0_54 = arith.constant 0 : index
    %c0_55 = arith.constant 0 : index
    %c0_56 = arith.constant 0 : index
    %46 = vector.load %arg7[%c0_54, %c0_55, %c0_56] : memref<18x18x4xf32, #tpu.memory_space<vmem>>, vector<16x16x4xf32>
    %47 = vector.shape_cast %46 : vector<16x16x4xf32> to vector<256x4xf32>
    %c0_57 = arith.constant 0 : index
    %c0_58 = arith.constant 0 : index
    %48 = vector.load %arg8[%c0_57, %c0_58] : memref<256x36xf32, #tpu.memory_space<vmem>>, vector<256x4xf32>
    tpu.vector_store %arg8[%c0_57, %c0_58], %47 {strides = array<i32>} : memref<256x36xf32, #tpu.memory_space<vmem>>, vector<256x4xf32>,
    %c0_59 = arith.constant 0 : index
    %c1_60 = arith.constant 1 : index
    %c0_61 = arith.constant 0 : index
    %49 = vector.load %arg7[%c0_59, %c1_60, %c0_61] : memref<18x18x4xf32, #tpu.memory_space<vmem>>, vector<16x16x4xf32>
    %50 = vector.shape_cast %49 : vector<16x16x4xf32> to vector<256x4xf32>
    %c0_62 = arith.constant 0 : index
    %c4_63 = arith.constant 4 : index
    %51 = vector.load %arg8[%c0_62, %c4_63] : memref<256x36xf32, #tpu.memory_space<vmem>>, vector<256x4xf32>
    tpu.vector_store %arg8[%c0_62, %c4_63], %50 {strides = array<i32>} : memref<256x36xf32, #tpu.memory_space<vmem>>, vector<256x4xf32>,
    %c0_64 = arith.constant 0 : index
    %c2_65 = arith.constant 2 : index
    %c0_66 = arith.constant 0 : index
    %52 = vector.load %arg7[%c0_64, %c2_65, %c0_66] : memref<18x18x4xf32, #tpu.memory_space<vmem>>, vector<16x16x4xf32>
    %53 = vector.shape_cast %52 : vector<16x16x4xf32> to vector<256x4xf32>
    %c0_67 = arith.constant 0 : index
    %c8_68 = arith.constant 8 : index
    %54 = vector.load %arg8[%c0_67, %c8_68] : memref<256x36xf32, #tpu.memory_space<vmem>>, vector<256x4xf32>
    tpu.vector_store %arg8[%c0_67, %c8_68], %53 {strides = array<i32>} : memref<256x36xf32, #tpu.memory_space<vmem>>, vector<256x4xf32>,
    %c1_69 = arith.constant 1 : index
    %c0_70 = arith.constant 0 : index
    %c0_71 = arith.constant 0 : index
    %55 = vector.load %arg7[%c1_69, %c0_70, %c0_71] : memref<18x18x4xf32, #tpu.memory_space<vmem>>, vector<16x16x4xf32>
    %56 = vector.shape_cast %55 : vector<16x16x4xf32> to vector<256x4xf32>
    %c0_72 = arith.constant 0 : index
    %c12_73 = arith.constant 12 : index
    %57 = vector.load %arg8[%c0_72, %c12_73] : memref<256x36xf32, #tpu.memory_space<vmem>>, vector<256x4xf32>
    tpu.vector_store %arg8[%c0_72, %c12_73], %56 {strides = array<i32>} : memref<256x36xf32, #tpu.memory_space<vmem>>, vector<256x4xf32>,
    %c1_74 = arith.constant 1 : index
    %c1_75 = arith.constant 1 : index
    %c0_76 = arith.constant 0 : index
    %58 = vector.load %arg7[%c1_74, %c1_75, %c0_76] : memref<18x18x4xf32, #tpu.memory_space<vmem>>, vector<16x16x4xf32>
    %59 = vector.shape_cast %58 : vector<16x16x4xf32> to vector<256x4xf32>
    %c0_77 = arith.constant 0 : index
    %c16_78 = arith.constant 16 : index
    %60 = vector.load %arg8[%c0_77, %c16_78] : memref<256x36xf32, #tpu.memory_space<vmem>>, vector<256x4xf32>
    tpu.vector_store %arg8[%c0_77, %c16_78], %59 {strides = array<i32>} : memref<256x36xf32, #tpu.memory_space<vmem>>, vector<256x4xf32>,
    %c1_79 = arith.constant 1 : index
    %c2_80 = arith.constant 2 : index
    %c0_81 = arith.constant 0 : index
    %61 = vector.load %arg7[%c1_79, %c2_80, %c0_81] : memref<18x18x4xf32, #tpu.memory_space<vmem>>, vector<16x16x4xf32>
    %62 = vector.shape_cast %61 : vector<16x16x4xf32> to vector<256x4xf32>
    %c0_82 = arith.constant 0 : index
    %c20_83 = arith.constant 20 : index
    %63 = vector.load %arg8[%c0_82, %c20_83] : memref<256x36xf32, #tpu.memory_space<vmem>>, vector<256x4xf32>
    tpu.vector_store %arg8[%c0_82, %c20_83], %62 {strides = array<i32>} : memref<256x36xf32, #tpu.memory_space<vmem>>, vector<256x4xf32>,
    %c2_84 = arith.constant 2 : index
    %c0_85 = arith.constant 0 : index
    %c0_86 = arith.constant 0 : index
    %64 = vector.load %arg7[%c2_84, %c0_85, %c0_86] : memref<18x18x4xf32, #tpu.memory_space<vmem>>, vector<16x16x4xf32>
    %65 = vector.shape_cast %64 : vector<16x16x4xf32> to vector<256x4xf32>
    %c0_87 = arith.constant 0 : index
    %c24_88 = arith.constant 24 : index
    %66 = vector.load %arg8[%c0_87, %c24_88] : memref<256x36xf32, #tpu.memory_space<vmem>>, vector<256x4xf32>
    tpu.vector_store %arg8[%c0_87, %c24_88], %65 {strides = array<i32>} : memref<256x36xf32, #tpu.memory_space<vmem>>, vector<256x4xf32>,
    %c2_89 = arith.constant 2 : index
    %c1_90 = arith.constant 1 : index
    %c0_91 = arith.constant 0 : index
    %67 = vector.load %arg7[%c2_89, %c1_90, %c0_91] : memref<18x18x4xf32, #tpu.memory_space<vmem>>, vector<16x16x4xf32>
    %68 = vector.shape_cast %67 : vector<16x16x4xf32> to vector<256x4xf32>
    %c0_92 = arith.constant 0 : index
    %c28_93 = arith.constant 28 : index
    %69 = vector.load %arg8[%c0_92, %c28_93] : memref<256x36xf32, #tpu.memory_space<vmem>>, vector<256x4xf32>
    tpu.vector_store %arg8[%c0_92, %c28_93], %68 {strides = array<i32>} : memref<256x36xf32, #tpu.memory_space<vmem>>, vector<256x4xf32>,
    %c2_94 = arith.constant 2 : index
    %c2_95 = arith.constant 2 : index
    %c0_96 = arith.constant 0 : index
    %70 = vector.load %arg7[%c2_94, %c2_95, %c0_96] : memref<18x18x4xf32, #tpu.memory_space<vmem>>, vector<16x16x4xf32>
    %71 = vector.shape_cast %70 : vector<16x16x4xf32> to vector<256x4xf32>
    %c0_97 = arith.constant 0 : index
    %c32_98 = arith.constant 32 : index
    %72 = vector.load %arg8[%c0_97, %c32_98] : memref<256x36xf32, #tpu.memory_space<vmem>>, vector<256x4xf32>
    tpu.vector_store %arg8[%c0_97, %c32_98], %71 {strides = array<i32>} : memref<256x36xf32, #tpu.memory_space<vmem>>, vector<256x4xf32>,
    %c0_99 = arith.constant 0 : index
    %c0_100 = arith.constant 0 : index
    %73 = vector.load %arg8[%c0_99, %c0_100] : memref<256x36xf32, #tpu.memory_space<vmem>>, vector<256x36xf32>
    %c0_101 = arith.constant 0 : index
    %c0_102 = arith.constant 0 : index
    %74 = vector.load %arg4[%c0_101, %c0_102] : memref<36x4xf32, #tpu.memory_space<vmem>>, vector<36x4xf32>
    %cst_103 = arith.constant dense<0.000000e+00> : vector<256x4xf32>
    %75 = tpu.matmul %73, %74, %cst_103 {dimension_numbers = #tpu.dot_dimension_numbers<[1], [0], [0], [1], [0, 0, 1, 1], [], []>} : vector<256x36xf32>, vector<36x4xf32>, vector<256x4xf32> -> vector<256x4xf32>
    %c0_104 = arith.constant 0 : index
    %c0_105 = arith.constant 0 : index
    %76 = vector.load %arg5[%c0_104, %c0_105] : memref<1x4xf32, #tpu.memory_space<vmem>>, vector<1x4xf32>
    %77 = vector.shape_cast %76 : vector<1x4xf32> to vector<4xf32>
    %78 = vector.shape_cast %77 : vector<4xf32> to vector<1x4xf32>
    %79 = vector.broadcast %78 : vector<1x4xf32> to vector<256x4xf32>
    %80 = arith.addf %75, %79 : vector<256x4xf32>
    %81 = arith.addf %80, %2 : vector<256x4xf32>
    %cst_106 = arith.constant 0.000000e+00 : f32
    %82 = vector.broadcast %cst_106 : f32 to vector<256x4xf32>
    %83 = arith.maximumf %81, %82 : vector<256x4xf32>
    %84 = tpu.transpose %83, [1, 0] : vector<256x4xf32> -> vector<4x256xf32>
    %85 = vector.shape_cast %84 : vector<4x256xf32> to vector<1x4x256xf32>
    %c0_107 = arith.constant 0 : index
    %c0_108 = arith.constant 0 : index
    %c0_109 = arith.constant 0 : index
    %86 = vector.load %arg6[%c0_107, %c0_108, %c0_109] : memref<1x4x256xf32, #tpu.memory_space<vmem>>, vector<1x4x256xf32>
    tpu.vector_store %arg6[%c0_107, %c0_108, %c0_109], %85 {strides = array<i32>} : memref<1x4x256xf32, #tpu.memory_space<vmem>>, vector<1x4x256xf32>,
    return
  }
  func.func @transform_0(%arg0: i32) -> (i32, i32, i32) {
    %c0_i32 = arith.constant 0 : i32
    %c0_i32_0 = arith.constant 0 : i32
    %c0_i32_1 = arith.constant 0 : i32
    return %arg0, %c0_i32, %c0_i32_0 : i32, i32, i32
  }
  func.func @transform_1(%arg0: i32) -> (i32, i32) {
    %c0_i32 = arith.constant 0 : i32
    %c0_i32_0 = arith.constant 0 : i32
    %c0_i32_1 = arith.constant 0 : i32
    return %c0_i32, %c0_i32_0 : i32, i32
  }
  func.func @transform_2(%arg0: i32) -> (i32, i32) {
    %c0_i32 = arith.constant 0 : i32
    %c0_i32_0 = arith.constant 0 : i32
    %c0_i32_1 = arith.constant 0 : i32
    return %c0_i32, %c0_i32_0 : i32, i32
  }
  func.func @transform_3(%arg0: i32) -> (i32, i32) {
    %c0_i32 = arith.constant 0 : i32
    %c0_i32_0 = arith.constant 0 : i32
    %c0_i32_1 = arith.constant 0 : i32
    return %c0_i32, %c0_i32_0 : i32, i32
  }
  func.func @transform_4(%arg0: i32) -> (i32, i32) {
    %c0_i32 = arith.constant 0 : i32
    %c0_i32_0 = arith.constant 0 : i32
    %c0_i32_1 = arith.constant 0 : i32
    return %c0_i32, %c0_i32_0 : i32, i32
  }
  func.func @transform_5(%arg0: i32) -> (i32, i32, i32) {
    %c0_i32 = arith.constant 0 : i32
    %c0_i32_0 = arith.constant 0 : i32
    %c0_i32_1 = arith.constant 0 : i32
    return %arg0, %c0_i32, %c0_i32_0 : i32, i32, i32
  }
}

</mosaic_0001>

<llo_original>
// kernel: tpu_custom_call.1
$region0: #{tpu_custom_call.1}
  #allocation0 [shape = 'u32[]', space=smem, size = 0x4, offset = 0x4, fixed_abs, tag = 'smem constant byte address 0x4 - core index']
  #allocation1 [shape = 'u32[144,128]{1,0:T(1,128)}', space=vmem, size = 0x12000, scoped, tag = 'internal scratch']
  #allocation2 [shape = 'f32[18,18,4]{2,1,0:T(8,128)}', space=vmem, size = 0x36000, scoped, tag = 'scratch operand']
  #allocation3 [shape = 'f32[256,36]{1,0:T(8,128)}', space=vmem, size = 0x20000, scoped, tag = 'scratch operand']
  %s0 = inlined_call_operand.vmem [shape: f32[2,4,256], index: 0, kind: input, shape index: {}]
  %s1 = inlined_call_operand.vmem [shape: f32[36,4], index: 1, kind: input, shape index: {}]
  %s2 = inlined_call_operand.vmem [shape: f32[1,4], index: 2, kind: input, shape index: {}]
  %s3 = inlined_call_operand.vmem [shape: f32[36,4], index: 3, kind: input, shape index: {}]
  %s4 = inlined_call_operand.vmem [shape: f32[1,4], index: 4, kind: input, shape index: {}]
  %s5 = inlined_call_operand.hbm [shape: f32[2,4,256], index: 5, kind: output, shape index: {}]
  %s6 = sld [smem:[#allocation0]]
  $region53: #{tpu_custom_call.1} parent=0
    _
  %s8 = ssub.s32 1, %s6
  %s9 = scalar_select 0, %s8, %s6
  $region1: #{tpu_custom_call.1} parent=0
    #allocation4 [shape = 'u8[8192]{0}', space=vmem, size = 0x2000, scoped, tag = 'output window, operand 0']
    #allocation5 [shape = 's32[2]{0}', space=sflag, size = 0x8, scoped, tag = 'scoped memory for tpu_custom_call.1']
    %10 = vsyncpa [#allocation5], 0
    %s11 = scalar_lea.sflag [#allocation5], 1
    %12 = vsyncpa %s11, 0
    loop: start=0, step=1, limit=4
    $region2: #{tpu_custom_call.1} parent=1 // loop_pre_header
      _
    $region3: #{tpu_custom_call.1} parent=1 // loop_header
      %s14 = sphi 0, %s18
      %p15 = scmp.ge.s32.totalorder %s14, 4
      %s24 = sphi 0, %s26
      %s27 = sphi 0, %s24
      %s28 = sphi 0, %s27
      %s44 = sphi 0, %s28
      %s48 = sphi 0, %s48
      %s50 = sphi 0, %s48
      %s51 = sphi 0, %s50
      %s65 = sphi 0, %s51
      %s69 = sphi 0, %s69
      %s71 = sphi 0, %s69
      %s72 = sphi 0, %s71
      %s86 = sphi 0, %s72
      %s90 = sphi 0, %s90
      %s92 = sphi 0, %s90
      %s93 = sphi 0, %s92
      %s107 = sphi 0, %s93
      %s111 = sphi 0, %s111
      %s113 = sphi 0, %s111
      %s114 = sphi 0, %s113
      %s128 = sphi 0, %s114
      %s134 = sphi 0, %s136
      %s137 = sphi 0, %s134
      %s138 = sphi 0, %s137
      %s154 = sphi 0, %s138
    $region4: #{tpu_custom_call.1} parent=1 // loop_header_branch
      %17 = sbr.rel (%p15) target = $region8
    $region5: #{tpu_custom_call.1} parent=1 // loop_body
      %s19 = ssub.s32 %s14, 1
      %s20 = ssub.s32 %s14, 2
      %s21 = sadd.s32 %s14, 1
      %s22 = ssub.s32 %s14, %s21
      %p23 = scmp.eq.s32.totalorder %s22, 0
      %s25 = sadd.s32 %s24, 1
      %s26 = scalar_select %p23, %s24, %s25
      %p29 = pneg %p23
      %p30 = scmp.eq.s32.totalorder %s14, 1
      %p31 = por %p29, %p30
      %p32 = scmp.ne.s32.totalorder %s24, %s27
      %p33 = scmp.eq.s32.totalorder %s14, 0
      %p34 = por %p32, %p33
      %p35 = scmp.ne.s32.totalorder %s24, %s27
      %p36 = scmp.eq.s32.totalorder %s19, 1
      %p37 = por %p35, %p36
      %p38 = scmp.ne.s32.totalorder %s27, %s28
      %p39 = scmp.eq.s32.totalorder %s19, 0
      %p40 = por %p38, %p39
      %p41 = scmp.ne.s32.totalorder %s27, %s28
      %p42 = scmp.eq.s32.totalorder %s20, 1
      %p43 = por %p41, %p42
      %p45 = scmp.ne.s32.totalorder %s28, %s44
      %p46 = scmp.eq.s32.totalorder %s20, 0
      %p47 = por %p45, %p46
      %s49 = sadd.s32 %s48, 1
      %p52 = scmp.eq.s32.totalorder %s14, 1
      %p53 = scmp.ne.s32.totalorder %s48, %s50
      %p54 = scmp.eq.s32.totalorder %s14, 0
      %p55 = por %p53, %p54
      %p56 = scmp.ne.s32.totalorder %s48, %s50
      %p57 = scmp.eq.s32.totalorder %s19, 1
      %p58 = por %p56, %p57
      %p59 = scmp.ne.s32.totalorder %s50, %s51
      %p60 = scmp.eq.s32.totalorder %s19, 0
      %p61 = por %p59, %p60
      %p62 = scmp.ne.s32.totalorder %s50, %s51
      %p63 = scmp.eq.s32.totalorder %s20, 1
      %p64 = por %p62, %p63
      %p66 = scmp.ne.s32.totalorder %s51, %s65
      %p67 = scmp.eq.s32.totalorder %s20, 0
      %p68 = por %p66, %p67
      %s70 = sadd.s32 %s69, 1
      %p73 = scmp.eq.s32.totalorder %s14, 1
      %p74 = scmp.ne.s32.totalorder %s69, %s71
      %p75 = scmp.eq.s32.totalorder %s14, 0
      %p76 = por %p74, %p75
      %p77 = scmp.ne.s32.totalorder %s69, %s71
      %p78 = scmp.eq.s32.totalorder %s19, 1
      %p79 = por %p77, %p78
      %p80 = scmp.ne.s32.totalorder %s71, %s72
      %p81 = scmp.eq.s32.totalorder %s19, 0
      %p82 = por %p80, %p81
      %p83 = scmp.ne.s32.totalorder %s71, %s72
      %p84 = scmp.eq.s32.totalorder %s20, 1
      %p85 = por %p83, %p84
      %p87 = scmp.ne.s32.totalorder %s72, %s86
      %p88 = scmp.eq.s32.totalorder %s20, 0
      %p89 = por %p87, %p88
      %s91 = sadd.s32 %s90, 1
      %p94 = scmp.eq.s32.totalorder %s14, 1
      %p95 = scmp.ne.s32.totalorder %s90, %s92
      %p96 = scmp.eq.s32.totalorder %s14, 0
      %p97 = por %p95, %p96
      %p98 = scmp.ne.s32.totalorder %s90, %s92
      %p99 = scmp.eq.s32.totalorder %s19, 1
      %p100 = por %p98, %p99
      %p101 = scmp.ne.s32.totalorder %s92, %s93
      %p102 = scmp.eq.s32.totalorder %s19, 0
      %p103 = por %p101, %p102
      %p104 = scmp.ne.s32.totalorder %s92, %s93
      %p105 = scmp.eq.s32.totalorder %s20, 1
      %p106 = por %p104, %p105
      %p108 = scmp.ne.s32.totalorder %s93, %s107
      %p109 = scmp.eq.s32.totalorder %s20, 0
      %p110 = por %p108, %p109
      %s112 = sadd.s32 %s111, 1
      %p115 = scmp.eq.s32.totalorder %s14, 1
      %p116 = scmp.ne.s32.totalorder %s111, %s113
      %p117 = scmp.eq.s32.totalorder %s14, 0
      %p118 = por %p116, %p117
      %p119 = scmp.ne.s32.totalorder %s111, %s113
      %p120 = scmp.eq.s32.totalorder %s19, 1
      %p121 = por %p119, %p120
      %p122 = scmp.ne.s32.totalorder %s113, %s114
      %p123 = scmp.eq.s32.totalorder %s19, 0
      %p124 = por %p122, %p123
      %p125 = scmp.ne.s32.totalorder %s113, %s114
      %p126 = scmp.eq.s32.totalorder %s20, 1
      %p127 = por %p125, %p126
      %p129 = scmp.ne.s32.totalorder %s114, %s128
      %p130 = scmp.eq.s32.totalorder %s20, 0
      %p131 = por %p129, %p130
      %s132 = ssub.s32 %s14, %s21
      %p133 = scmp.eq.s32.totalorder %s132, 0
      %s135 = sadd.s32 %s134, 1
      %s136 = scalar_select %p133, %s134, %s135
      %p139 = pneg %p133
      %p140 = scmp.eq.s32.totalorder %s14, 1
      %p141 = por %p139, %p140
      %p142 = scmp.ne.s32.totalorder %s134, %s137
      %p143 = scmp.eq.s32.totalorder %s14, 0
      %p144 = por %p142, %p143
      %p145 = scmp.ne.s32.totalorder %s134, %s137
      %p146 = scmp.eq.s32.totalorder %s19, 1
      %p147 = por %p145, %p146
      %p148 = scmp.ne.s32.totalorder %s137, %s138
      %p149 = scmp.eq.s32.totalorder %s19, 0
      %p150 = por %p148, %p149
      %p151 = scmp.ne.s32.totalorder %s137, %s138
      %p152 = scmp.eq.s32.totalorder %s20, 1
      %p153 = por %p151, %p152
      %p155 = scmp.ne.s32.totalorder %s138, %s154
      %p156 = scmp.eq.s32.totalorder %s20, 0
      %p157 = por %p155, %p156
      %p158 = scmp.le.s32.totalorder 1, %s14
      %p159 = scmp.lt.s32.totalorder %s14, 3
      %p160 = pnand %p158, %p159
      %p161 = pneg %p160
      // Predicated region
      $region9: #{tpu_custom_call.1} parent=5 // pred_check
        _
      $region10: #{tpu_custom_call.1} parent=5 // pred_check_branch
        %163 = sbr.rel (%p160) target = $region12
      $region11: #{tpu_custom_call.1} parent=5 // pred_region
        %s164 = ssub.s32 %s14, 1
        // Predicated region
        $region13: #{tpu_custom_call.1} parent=11 // pred_check
          %p165 = pneg %p61
        $region14: #{tpu_custom_call.1} parent=11 // pred_check_branch
          %167 = sbr.rel (%p165) target = $region16
        $region15: #{tpu_custom_call.1} parent=11 // pred_region
          _
        $region16: #{tpu_custom_call.1} parent=11 // pred_fallthru
          _
        // Predicated region
        $region17: #{tpu_custom_call.1} parent=11 // pred_check
          %p168 = pneg %p82
        $region18: #{tpu_custom_call.1} parent=11 // pred_check_branch
          %170 = sbr.rel (%p168) target = $region20
        $region19: #{tpu_custom_call.1} parent=11 // pred_region
          _
        $region20: #{tpu_custom_call.1} parent=11 // pred_fallthru
          _
        // Predicated region
        $region21: #{tpu_custom_call.1} parent=11 // pred_check
          %p171 = pneg %p103
        $region22: #{tpu_custom_call.1} parent=11 // pred_check_branch
          %173 = sbr.rel (%p171) target = $region24
        $region23: #{tpu_custom_call.1} parent=11 // pred_region
          _
        $region24: #{tpu_custom_call.1} parent=11 // pred_fallthru
          _
        // Predicated region
        $region25: #{tpu_custom_call.1} parent=11 // pred_check
          %p174 = pneg %p124
        $region26: #{tpu_custom_call.1} parent=11 // pred_check_branch
          %176 = sbr.rel (%p174) target = $region28
        $region27: #{tpu_custom_call.1} parent=11 // pred_region
          _
        $region28: #{tpu_custom_call.1} parent=11 // pred_fallthru
          _
      $region12: #{tpu_custom_call.1} parent=5 // pred_fallthru
        _
      %p177 = scmp.lt.s32.totalorder %s14, 2
      // Predicated region
      $region29: #{tpu_custom_call.1} parent=5 // pred_check
        %p178 = pneg %p177
      $region30: #{tpu_custom_call.1} parent=5 // pred_check_branch
        %180 = sbr.rel (%p178) target = $region32
      $region31: #{tpu_custom_call.1} parent=5 // pred_region
        // Predicated region
        $region33: #{tpu_custom_call.1} parent=31 // pred_check
          %p181 = pneg %p34
        $region34: #{tpu_custom_call.1} parent=31 // pred_check_branch
          %183 = sbr.rel (%p181) target = $region36
        $region35: #{tpu_custom_call.1} parent=31 // pred_region
          %p184 = scmp.lt.s32.totalorder %s14, 1
          %s185 = scalar_select %p184, %s14, 1
          %s186 = smul.addr %s185, 2
          %s187 = smul.addr %s186, 4
          %s188 = scalar_lea.vmem %s0, %s187
        $region36: #{tpu_custom_call.1} parent=31 // pred_fallthru
          _
      $region32: #{tpu_custom_call.1} parent=5 // pred_fallthru
        _
      %p189 = scmp.le.s32.totalorder 1, %s14
      %p190 = scmp.lt.s32.totalorder %s14, 3
      %p191 = pnand %p189, %p190
      %p192 = pneg %p191
      // Predicated region
      $region37: #{tpu_custom_call.1} parent=5 // pred_check
        _
      $region38: #{tpu_custom_call.1} parent=5 // pred_check_branch
        %194 = sbr.rel (%p191) target = $region40
      $region39: #{tpu_custom_call.1} parent=5 // pred_region
        %s195 = ssub.s32 %s14, 1
        %p196 = scmp.lt.s32.totalorder %s19, 1
        %s197 = scalar_select %p196, %s19, 1
        %s198 = smul.addr %s197, 2
        %s199 = smul.addr %s198, 4
        %s200 = scalar_lea.vmem %s0, %s199
        %p201 = pneg %p40
        %p202 = pneg %p37
        %p203 = pneg %p61
        %p204 = pneg %p58
        %p205 = pneg %p82
        %p206 = pneg %p79
        %p207 = pneg %p103
        %p208 = pneg %p100
        %p209 = pneg %p124
        %p210 = pneg %p121
        %p211 = pneg %p150
        %p212 = pneg %p147
        %s213 = sand.u32 %s137, 1
        %s214 = scalar_lea.sflag [#allocation5], %s213
        %s215 = sand.u32 %s137, 1
        %s216 = smul.addr %s215, 8
        %s217 = scalar_lea.vmem [#allocation4], %s216
        %p218 = scmp.lt.s32.totalorder %s19, 1
        %s219 = scalar_select %p218, %s19, 1
        %s220 = smul.addr %s219, 2
        %s221 = smul.addr %s220, 4
        %s222 = scalar_lea.vmem %s0, %s221
        %v223 = vld [vmem:[%s222] sm:$0xff]
        %v225 = vcombine.high %v223, %v223
        %227 = vxpose.xlu0.b32.start [1/16] %v223, 128
        %228 = vxpose.xlu0.b32.cont [2/16] 0.0, 128
        %229 = vxpose.xlu0.b32.cont [3/16] 0.0, 128
        %230 = vxpose.xlu0.b32.cont [4/16] 0.0, 128
        %231 = vxpose.xlu0.b32.cont [5/16] 0.0, 128
        %232 = vxpose.xlu0.b32.cont [6/16] 0.0, 128
        %233 = vxpose.xlu0.b32.cont [7/16] 0.0, 128
        %234 = vxpose.xlu0.b32.cont [8/16] 0.0, 128
        %235 = vxpose.xlu0.b32.cont [9/16] 0.0, 128
        %236 = vxpose.xlu0.b32.cont [10/16] 0.0, 128
        %237 = vxpose.xlu0.b32.cont [11/16] 0.0, 128
        %238 = vxpose.xlu0.b32.cont [12/16] 0.0, 128
        %239 = vxpose.xlu0.b32.cont [13/16] 0.0, 128
        %240 = vxpose.xlu0.b32.cont [14/16] 0.0, 128
        %241 = vxpose.xlu0.b32.cont [15/16] 0.0, 128
        %242 = vxpose.xlu0.b32.end [16/16] 0.0, 128
        %v243 = vpop.trf.xlu0
        %v244 = vpop.trf.xlu0
        %v245 = vpop.trf.xlu0
        %v246 = vpop.trf.xlu0
        %v247 = vpop.trf.xlu0
        %v248 = vpop.trf.xlu0
        %v249 = vpop.trf.xlu0
        %v250 = vpop.trf.xlu0
        %v251 = vpop.trf.xlu0
        %v252 = vpop.trf.xlu0
        %v253 = vpop.trf.xlu0
        %v254 = vpop.trf.xlu0
        %v255 = vpop.trf.xlu0
        %v256 = vpop.trf.xlu0
        %v257 = vpop.trf.xlu0
        %v258 = vpop.trf.xlu0
        %259 = vxpose.xlu0.b32.start [1/16] %v225, 128
        %260 = vxpose.xlu0.b32.cont [2/16] 0.0, 128
        %261 = vxpose.xlu0.b32.cont [3/16] 0.0, 128
        %262 = vxpose.xlu0.b32.cont [4/16] 0.0, 128
        %263 = vxpose.xlu0.b32.cont [5/16] 0.0, 128
        %264 = vxpose.xlu0.b32.cont [6/16] 0.0, 128
        %265 = vxpose.xlu0.b32.cont [7/16] 0.0, 128
        %266 = vxpose.xlu0.b32.cont [8/16] 0.0, 128
        %267 = vxpose.xlu0.b32.cont [9/16] 0.0, 128
        %268 = vxpose.xlu0.b32.cont [10/16] 0.0, 128
        %269 = vxpose.xlu0.b32.cont [11/16] 0.0, 128
        %270 = vxpose.xlu0.b32.cont [12/16] 0.0, 128
        %271 = vxpose.xlu0.b32.cont [13/16] 0.0, 128
        %272 = vxpose.xlu0.b32.cont [14/16] 0.0, 128
        %273 = vxpose.xlu0.b32.cont [15/16] 0.0, 128
        %274 = vxpose.xlu0.b32.end [16/16] 0.0, 128
        %v275 = vpop.trf.xlu0
        %v276 = vpop.trf.xlu0
        %v277 = vpop.trf.xlu0
        %v278 = vpop.trf.xlu0
        %v279 = vpop.trf.xlu0
        %v280 = vpop.trf.xlu0
        %v281 = vpop.trf.xlu0
        %v282 = vpop.trf.xlu0
        %v283 = vpop.trf.xlu0
        %v284 = vpop.trf.xlu0
        %v285 = vpop.trf.xlu0
        %v286 = vpop.trf.xlu0
        %v287 = vpop.trf.xlu0
        %v288 = vpop.trf.xlu0
        %v289 = vpop.trf.xlu0
        %v290 = vpop.trf.xlu0
        %vm291 = vcmask 31744
        %292 = vst.msk [vmem:[#allocation2] sm:$0xff] %vm291, 0.0
        %293 = vst.msk [vmem:[#allocation2 + $0x8] sm:$0xff] %vm291, 0.0
        %vm294 = vcmask 25600
        %295 = vst.msk [vmem:[#allocation2 + $0x10] sm:$0x3] %vm294, 0.0
        %296 = vst.msk [vmem:[#allocation2 + $0x18] sm:$0xff] %vm291, 0.0
        %297 = vst.msk [vmem:[#allocation2 + $0x20] sm:$0xff] %vm291, 0.0
        %298 = vst.msk [vmem:[#allocation2 + $0x28] sm:$0x3] %vm294, 0.0
        %299 = vst.msk [vmem:[#allocation2 + $0x30] sm:$0xff] %vm291, 0.0
        %300 = vst.msk [vmem:[#allocation2 + $0x38] sm:$0xff] %vm291, 0.0
        %301 = vst.msk [vmem:[#allocation2 + $0x40] sm:$0x3] %vm294, 0.0
        %302 = vst.msk [vmem:[#allocation2 + $0x48] sm:$0xff] %vm291, 0.0
        %303 = vst.msk [vmem:[#allocation2 + $0x50] sm:$0xff] %vm291, 0.0
        %304 = vst.msk [vmem:[#allocation2 + $0x58] sm:$0x3] %vm294, 0.0
        %305 = vst.msk [vmem:[#allocation2 + $0x60] sm:$0xff] %vm291, 0.0
        %306 = vst.msk [vmem:[#allocation2 + $0x68] sm:$0xff] %vm291, 0.0
        %307 = vst.msk [vmem:[#allocation2 + $0x70] sm:$0x3] %vm294, 0.0
        %308 = vst.msk [vmem:[#allocation2 + $0x78] sm:$0xff] %vm291, 0.0
        %309 = vst.msk [vmem:[#allocation2 + $0x80] sm:$0xff] %vm291, 0.0
        %310 = vst.msk [vmem:[#allocation2 + $0x88] sm:$0x3] %vm294, 0.0
        %311 = vst.msk [vmem:[#allocation2 + $0x90] sm:$0xff] %vm291, 0.0
        %312 = vst.msk [vmem:[#allocation2 + $0x98] sm:$0xff] %vm291, 0.0
        %313 = vst.msk [vmem:[#allocation2 + $0xa0] sm:$0x3] %vm294, 0.0
        %314 = vst.msk [vmem:[#allocation2 + $0xa8] sm:$0xff] %vm291, 0.0
        %315 = vst.msk [vmem:[#allocation2 + $0xb0] sm:$0xff] %vm291, 0.0
        %316 = vst.msk [vmem:[#allocation2 + $0xb8] sm:$0x3] %vm294, 0.0
        %317 = vst.msk [vmem:[#allocation2 + $0xc0] sm:$0xff] %vm291, 0.0
        %318 = vst.msk [vmem:[#allocation2 + $0xc8] sm:$0xff] %vm291, 0.0
        %319 = vst.msk [vmem:[#allocation2 + $0xd0] sm:$0x3] %vm294, 0.0
        %320 = vst.msk [vmem:[#allocation2 + $0xd8] sm:$0xff] %vm291, 0.0
        %321 = vst.msk [vmem:[#allocation2 + $0xe0] sm:$0xff] %vm291, 0.0
        %322 = vst.msk [vmem:[#allocation2 + $0xe8] sm:$0x3] %vm294, 0.0
        %323 = vst.msk [vmem:[#allocation2 + $0xf0] sm:$0xff] %vm291, 0.0
        %324 = vst.msk [vmem:[#allocation2 + $0xf8] sm:$0xff] %vm291, 0.0
        %325 = vst.msk [vmem:[#allocation2 + $0x100] sm:$0x3] %vm294, 0.0
        %326 = vst.msk [vmem:[#allocation2 + $0x108] sm:$0xff] %vm291, 0.0
        %327 = vst.msk [vmem:[#allocation2 + $0x110] sm:$0xff] %vm291, 0.0
        %328 = vst.msk [vmem:[#allocation2 + $0x118] sm:$0x3] %vm294, 0.0
        %329 = vst.msk [vmem:[#allocation2 + $0x120] sm:$0xff] %vm291, 0.0
        %330 = vst.msk [vmem:[#allocation2 + $0x128] sm:$0xff] %vm291, 0.0
        %331 = vst.msk [vmem:[#allocation2 + $0x130] sm:$0x3] %vm294, 0.0
        %332 = vst.msk [vmem:[#allocation2 + $0x138] sm:$0xff] %vm291, 0.0
        %333 = vst.msk [vmem:[#allocation2 + $0x140] sm:$0xff] %vm291, 0.0
        %334 = vst.msk [vmem:[#allocation2 + $0x148] sm:$0x3] %vm294, 0.0
        %335 = vst.msk [vmem:[#allocation2 + $0x150] sm:$0xff] %vm291, 0.0
        %336 = vst.msk [vmem:[#allocation2 + $0x158] sm:$0xff] %vm291, 0.0
        %337 = vst.msk [vmem:[#allocation2 + $0x160] sm:$0x3] %vm294, 0.0
        %338 = vst.msk [vmem:[#allocation2 + $0x168] sm:$0xff] %vm291, 0.0
        %339 = vst.msk [vmem:[#allocation2 + $0x170] sm:$0xff] %vm291, 0.0
        %340 = vst.msk [vmem:[#allocation2 + $0x178] sm:$0x3] %vm294, 0.0
        %341 = vst.msk [vmem:[#allocation2 + $0x180] sm:$0xff] %vm291, 0.0
        %342 = vst.msk [vmem:[#allocation2 + $0x188] sm:$0xff] %vm291, 0.0
        %343 = vst.msk [vmem:[#allocation2 + $0x190] sm:$0x3] %vm294, 0.0
        %344 = vst.msk [vmem:[#allocation2 + $0x198] sm:$0xff] %vm291, 0.0
        %345 = vst.msk [vmem:[#allocation2 + $0x1a0] sm:$0xff] %vm291, 0.0
        %346 = vst.msk [vmem:[#allocation2 + $0x1a8] sm:$0x3] %vm294, 0.0
        %s347 = scalar_lea.vmem [#allocation2], 24
        %348 = vst.msk [vmem:[%s347 + $0x1] sm:$0xff] %vm291, %v243
        %349 = vst.msk [vmem:[%s347 + $0x9] sm:$0xff] %vm291, %v244
        %350 = vst.msk [vmem:[%s347 + $0x19] sm:$0xff] %vm291, %v245
        %351 = vst.msk [vmem:[%s347 + $0x21] sm:$0xff] %vm291, %v246
        %352 = vst.msk [vmem:[%s347 + $0x31] sm:$0xff] %vm291, %v247
        %353 = vst.msk [vmem:[%s347 + $0x39] sm:$0xff] %vm291, %v248
        %354 = vst.msk [vmem:[%s347 + $0x49] sm:$0xff] %vm291, %v249
        %355 = vst.msk [vmem:[%s347 + $0x51] sm:$0xff] %vm291, %v250
        %356 = vst.msk [vmem:[%s347 + $0x61] sm:$0xff] %vm291, %v251
        %357 = vst.msk [vmem:[%s347 + $0x69] sm:$0xff] %vm291, %v252
        %358 = vst.msk [vmem:[%s347 + $0x79] sm:$0xff] %vm291, %v253
        %359 = vst.msk [vmem:[%s347 + $0x81] sm:$0xff] %vm291, %v254
        %360 = vst.msk [vmem:[%s347 + $0x91] sm:$0xff] %vm291, %v255
        %361 = vst.msk [vmem:[%s347 + $0x99] sm:$0xff] %vm291, %v256
        %362 = vst.msk [vmem:[%s347 + $0xa9] sm:$0xff] %vm291, %v257
        %363 = vst.msk [vmem:[%s347 + $0xb1] sm:$0xff] %vm291, %v258
        %364 = vst.msk [vmem:[%s347 + $0xc1] sm:$0xff] %vm291, %v275
        %365 = vst.msk [vmem:[%s347 + $0xc9] sm:$0xff] %vm291, %v276
        %366 = vst.msk [vmem:[%s347 + $0xd9] sm:$0xff] %vm291, %v277
        %367 = vst.msk [vmem:[%s347 + $0xe1] sm:$0xff] %vm291, %v278
        %368 = vst.msk [vmem:[%s347 + $0xf1] sm:$0xff] %vm291, %v279
        %369 = vst.msk [vmem:[%s347 + $0xf9] sm:$0xff] %vm291, %v280
        %370 = vst.msk [vmem:[%s347 + $0x109] sm:$0xff] %vm291, %v281
        %371 = vst.msk [vmem:[%s347 + $0x111] sm:$0xff] %vm291, %v282
        %372 = vst.msk [vmem:[%s347 + $0x121] sm:$0xff] %vm291, %v283
        %373 = vst.msk [vmem:[%s347 + $0x129] sm:$0xff] %vm291, %v284
        %374 = vst.msk [vmem:[%s347 + $0x139] sm:$0xff] %vm291, %v285
        %375 = vst.msk [vmem:[%s347 + $0x141] sm:$0xff] %vm291, %v286
        %376 = vst.msk [vmem:[%s347 + $0x151] sm:$0xff] %vm291, %v287
        %377 = vst.msk [vmem:[%s347 + $0x159] sm:$0xff] %vm291, %v288
        %378 = vst.msk [vmem:[%s347 + $0x169] sm:$0xff] %vm291, %v289
        %379 = vst.msk [vmem:[%s347 + $0x171] sm:$0xff] %vm291, %v290
        %v380 = vld [vmem:[#allocation2] sm:$0xff]
        %v381 = vld [vmem:[#allocation2 + $0x8] sm:$0xff]
        %v382 = vld [vmem:[#allocation2 + $0x18] sm:$0xff]
        %v383 = vld [vmem:[#allocation2 + $0x20] sm:$0xff]
        %v384 = vld [vmem:[#allocation2 + $0x30] sm:$0xff]
        %v385 = vld [vmem:[#allocation2 + $0x38] sm:$0xff]
        %v386 = vld [vmem:[#allocation2 + $0x48] sm:$0xff]
        %v387 = vld [vmem:[#allocation2 + $0x50] sm:$0xff]
        %v388 = vld [vmem:[#allocation2 + $0x60] sm:$0xff]
        %v389 = vld [vmem:[#allocation2 + $0x68] sm:$0xff]
        %v390 = vld [vmem:[#allocation2 + $0x78] sm:$0xff]
        %v391 = vld [vmem:[#allocation2 + $0x80] sm:$0xff]
        %v392 = vld [vmem:[#allocation2 + $0x90] sm:$0xff]
        %v393 = vld [vmem:[#allocation2 + $0x98] sm:$0xff]
        %v394 = vld [vmem:[#allocation2 + $0xa8] sm:$0xff]
        %v395 = vld [vmem:[#allocation2 + $0xb0] sm:$0xff]
        %v396 = vld [vmem:[#allocation2 + $0xc0] sm:$0xff]
        %v397 = vld [vmem:[#allocation2 + $0xc8] sm:$0xff]
        %v398 = vld [vmem:[#allocation2 + $0xd8] sm:$0xff]
        %v399 = vld [vmem:[#allocation2 + $0xe0] sm:$0xff]
        %v400 = vld [vmem:[#allocation2 + $0xf0] sm:$0xff]
        %v401 = vld [vmem:[#allocation2 + $0xf8] sm:$0xff]
        %v402 = vld [vmem:[#allocation2 + $0x108] sm:$0xff]
        %v403 = vld [vmem:[#allocation2 + $0x110] sm:$0xff]
        %v404 = vld [vmem:[#allocation2 + $0x120] sm:$0xff]
        %v405 = vld [vmem:[#allocation2 + $0x128] sm:$0xff]
        %v406 = vld [vmem:[#allocation2 + $0x138] sm:$0xff]
        %v407 = vld [vmem:[#allocation2 + $0x140] sm:$0xff]
        %v408 = vld [vmem:[#allocation2 + $0x150] sm:$0xff]
        %v409 = vld [vmem:[#allocation2 + $0x158] sm:$0xff]
        %v410 = vld [vmem:[#allocation2 + $0x168] sm:$0xff]
        %v411 = vld [vmem:[#allocation2 + $0x170] sm:$0xff]
        %412 = vst.msk [vmem:[#allocation3] sm:$0xff] %vm291, %v380
        %413 = vst.msk [vmem:[#allocation3 + $0x8] sm:$0xff] %vm291, %v381
        %414 = vst.msk [vmem:[#allocation3 + $0x10] sm:$0xff] %vm291, %v382
        %415 = vst.msk [vmem:[#allocation3 + $0x18] sm:$0xff] %vm291, %v383
        %416 = vst.msk [vmem:[#allocation3 + $0x20] sm:$0xff] %vm291, %v384
        %417 = vst.msk [vmem:[#allocation3 + $0x28] sm:$0xff] %vm291, %v385
        %418 = vst.msk [vmem:[#allocation3 + $0x30] sm:$0xff] %vm291, %v386
        %419 = vst.msk [vmem:[#allocation3 + $0x38] sm:$0xff] %vm291, %v387
        %420 = vst.msk [vmem:[#allocation3 + $0x40] sm:$0xff] %vm291, %v388
        %421 = vst.msk [vmem:[#allocation3 + $0x48] sm:$0xff] %vm291, %v389
        %422 = vst.msk [vmem:[#allocation3 + $0x50] sm:$0xff] %vm291, %v390
        %423 = vst.msk [vmem:[#allocation3 + $0x58] sm:$0xff] %vm291, %v391
        %424 = vst.msk [vmem:[#allocation3 + $0x60] sm:$0xff] %vm291, %v392
        %425 = vst.msk [vmem:[#allocation3 + $0x68] sm:$0xff] %vm291, %v393
        %426 = vst.msk [vmem:[#allocation3 + $0x70] sm:$0xff] %vm291, %v394
        %427 = vst.msk [vmem:[#allocation3 + $0x78] sm:$0xff] %vm291, %v395
        %428 = vst.msk [vmem:[#allocation3 + $0x80] sm:$0xff] %vm291, %v396
        %429 = vst.msk [vmem:[#allocation3 + $0x88] sm:$0xff] %vm291, %v397
        %430 = vst.msk [vmem:[#allocation3 + $0x90] sm:$0xff] %vm291, %v398
        %431 = vst.msk [vmem:[#allocation3 + $0x98] sm:$0xff] %vm291, %v399
        %432 = vst.msk [vmem:[#allocation3 + $0xa0] sm:$0xff] %vm291, %v400
        %433 = vst.msk [vmem:[#allocation3 + $0xa8] sm:$0xff] %vm291, %v401
        %434 = vst.msk [vmem:[#allocation3 + $0xb0] sm:$0xff] %vm291, %v402
        %435 = vst.msk [vmem:[#allocation3 + $0xb8] sm:$0xff] %vm291, %v403
        %436 = vst.msk [vmem:[#allocation3 + $0xc0] sm:$0xff] %vm291, %v404
        %437 = vst.msk [vmem:[#allocation3 + $0xc8] sm:$0xff] %vm291, %v405
        %438 = vst.msk [vmem:[#allocation3 + $0xd0] sm:$0xff] %vm291, %v406
        %439 = vst.msk [vmem:[#allocation3 + $0xd8] sm:$0xff] %vm291, %v407
        %440 = vst.msk [vmem:[#allocation3 + $0xe0] sm:$0xff] %vm291, %v408
        %441 = vst.msk [vmem:[#allocation3 + $0xe8] sm:$0xff] %vm291, %v409
        %442 = vst.msk [vmem:[#allocation3 + $0xf0] sm:$0xff] %vm291, %v410
        %443 = vst.msk [vmem:[#allocation3 + $0xf8] sm:$0xff] %vm291, %v411
        %v444 = vld [vmem:[#allocation2 + $0x1] sm:$0xff]
        %v445 = vld [vmem:[#allocation2 + $0x9] sm:$0xff]
        %v446 = vld [vmem:[#allocation2 + $0x19] sm:$0xff]
        %v447 = vld [vmem:[#allocation2 + $0x21] sm:$0xff]
        %v448 = vld [vmem:[#allocation2 + $0x31] sm:$0xff]
        %v449 = vld [vmem:[#allocation2 + $0x39] sm:$0xff]
        %v450 = vld [vmem:[#allocation2 + $0x49] sm:$0xff]
        %v451 = vld [vmem:[#allocation2 + $0x51] sm:$0xff]
        %v452 = vld [vmem:[#allocation2 + $0x61] sm:$0xff]
        %v453 = vld [vmem:[#allocation2 + $0x69] sm:$0xff]
        %v454 = vld [vmem:[#allocation2 + $0x79] sm:$0xff]
        %v455 = vld [vmem:[#allocation2 + $0x81] sm:$0xff]
        %v456 = vld [vmem:[#allocation2 + $0x91] sm:$0xff]
        %v457 = vld [vmem:[#allocation2 + $0x99] sm:$0xff]
        %v458 = vld [vmem:[#allocation2 + $0xa9] sm:$0xff]
        %v459 = vld [vmem:[#allocation2 + $0xb1] sm:$0xff]
        %v460 = vld [vmem:[#allocation2 + $0xc1] sm:$0xff]
        %v461 = vld [vmem:[#allocation2 + $0xc9] sm:$0xff]
        %v462 = vld [vmem:[#allocation2 + $0xd9] sm:$0xff]
        %v463 = vld [vmem:[#allocation2 + $0xe1] sm:$0xff]
        %v464 = vld [vmem:[#allocation2 + $0xf1] sm:$0xff]
        %v465 = vld [vmem:[#allocation2 + $0xf9] sm:$0xff]
        %v466 = vld [vmem:[#allocation2 + $0x109] sm:$0xff]
        %v467 = vld [vmem:[#allocation2 + $0x111] sm:$0xff]
        %v468 = vld [vmem:[#allocation2 + $0x121] sm:$0xff]
        %v469 = vld [vmem:[#allocation2 + $0x129] sm:$0xff]
        %v470 = vld [vmem:[#allocation2 + $0x139] sm:$0xff]
        %v471 = vld [vmem:[#allocation2 + $0x141] sm:$0xff]
        %v472 = vld [vmem:[#allocation2 + $0x151] sm:$0xff]
        %v473 = vld [vmem:[#allocation2 + $0x159] sm:$0xff]
        %v474 = vld [vmem:[#allocation2 + $0x169] sm:$0xff]
        %v475 = vld [vmem:[#allocation2 + $0x171] sm:$0xff]
        %508 = vrot.lane.b32.xlu0 %v444, 4
        %v509 = vpop.permute.xlu0 %508
        %510 = vrot.lane.b32.xlu0 %v445, 4
        %v511 = vpop.permute.xlu0 %510
        %512 = vrot.lane.b32.xlu0 %v446, 4
        %v513 = vpop.permute.xlu0 %512
        %514 = vrot.lane.b32.xlu0 %v447, 4
        %v515 = vpop.permute.xlu0 %514
        %516 = vrot.lane.b32.xlu0 %v448, 4
        %v517 = vpop.permute.xlu0 %516
        %518 = vrot.lane.b32.xlu0 %v449, 4
        %v519 = vpop.permute.xlu0 %518
        %520 = vrot.lane.b32.xlu0 %v450, 4
        %v521 = vpop.permute.xlu0 %520
        %522 = vrot.lane.b32.xlu0 %v451, 4
        %v523 = vpop.permute.xlu0 %522
        %524 = vrot.lane.b32.xlu0 %v452, 4
        %v525 = vpop.permute.xlu0 %524
        %526 = vrot.lane.b32.xlu0 %v453, 4
        %v527 = vpop.permute.xlu0 %526
        %528 = vrot.lane.b32.xlu0 %v454, 4
        %v529 = vpop.permute.xlu0 %528
        %530 = vrot.lane.b32.xlu0 %v455, 4
        %v531 = vpop.permute.xlu0 %530
        %532 = vrot.lane.b32.xlu0 %v456, 4
        %v533 = vpop.permute.xlu0 %532
        %534 = vrot.lane.b32.xlu0 %v457, 4
        %v535 = vpop.permute.xlu0 %534
        %536 = vrot.lane.b32.xlu0 %v458, 4
        %v537 = vpop.permute.xlu0 %536
        %538 = vrot.lane.b32.xlu0 %v459, 4
        %v539 = vpop.permute.xlu0 %538
        %540 = vrot.lane.b32.xlu0 %v460, 4
        %v541 = vpop.permute.xlu0 %540
        %542 = vrot.lane.b32.xlu0 %v461, 4
        %v543 = vpop.permute.xlu0 %542
        %544 = vrot.lane.b32.xlu0 %v462, 4
        %v545 = vpop.permute.xlu0 %544
        %546 = vrot.lane.b32.xlu0 %v463, 4
        %v547 = vpop.permute.xlu0 %546
        %548 = vrot.lane.b32.xlu0 %v464, 4
        %v549 = vpop.permute.xlu0 %548
        %550 = vrot.lane.b32.xlu0 %v465, 4
        %v551 = vpop.permute.xlu0 %550
        %552 = vrot.lane.b32.xlu0 %v466, 4
        %v553 = vpop.permute.xlu0 %552
        %554 = vrot.lane.b32.xlu0 %v467, 4
        %v555 = vpop.permute.xlu0 %554
        %556 = vrot.lane.b32.xlu0 %v468, 4
        %v557 = vpop.permute.xlu0 %556
        %558 = vrot.lane.b32.xlu0 %v469, 4
        %v559 = vpop.permute.xlu0 %558
        %560 = vrot.lane.b32.xlu0 %v470, 4
        %v561 = vpop.permute.xlu0 %560
        %562 = vrot.lane.b32.xlu0 %v471, 4
        %v563 = vpop.permute.xlu0 %562
        %564 = vrot.lane.b32.xlu0 %v472, 4
        %v565 = vpop.permute.xlu0 %564
        %566 = vrot.lane.b32.xlu0 %v473, 4
        %v567 = vpop.permute.xlu0 %566
        %568 = vrot.lane.b32.xlu0 %v474, 4
        %v569 = vpop.permute.xlu0 %568
        %570 = vrot.lane.b32.xlu0 %v475, 4
        %v571 = vpop.permute.xlu0 %570
        %vm604 = vcmask 64544
        %605 = vst.msk [vmem:[#allocation3] sm:$0xff] %vm604, %v509
        %606 = vst.msk [vmem:[#allocation3 + $0x8] sm:$0xff] %vm604, %v511
        %607 = vst.msk [vmem:[#allocation3 + $0x10] sm:$0xff] %vm604, %v513
        %608 = vst.msk [vmem:[#allocation3 + $0x18] sm:$0xff] %vm604, %v515
        %609 = vst.msk [vmem:[#allocation3 + $0x20] sm:$0xff] %vm604, %v517
        %610 = vst.msk [vmem:[#allocation3 + $0x28] sm:$0xff] %vm604, %v519
        %611 = vst.msk [vmem:[#allocation3 + $0x30] sm:$0xff] %vm604, %v521
        %612 = vst.msk [vmem:[#allocation3 + $0x38] sm:$0xff] %vm604, %v523
        %613 = vst.msk [vmem:[#allocation3 + $0x40] sm:$0xff] %vm604, %v525
        %614 = vst.msk [vmem:[#allocation3 + $0x48] sm:$0xff] %vm604, %v527
        %615 = vst.msk [vmem:[#allocation3 + $0x50] sm:$0xff] %vm604, %v529
        %616 = vst.msk [vmem:[#allocation3 + $0x58] sm:$0xff] %vm604, %v531
        %617 = vst.msk [vmem:[#allocation3 + $0x60] sm:$0xff] %vm604, %v533
        %618 = vst.msk [vmem:[#allocation3 + $0x68] sm:$0xff] %vm604, %v535
        %619 = vst.msk [vmem:[#allocation3 + $0x70] sm:$0xff] %vm604, %v537
        %620 = vst.msk [vmem:[#allocation3 + $0x78] sm:$0xff] %vm604, %v539
        %621 = vst.msk [vmem:[#allocation3 + $0x80] sm:$0xff] %vm604, %v541
        %622 = vst.msk [vmem:[#allocation3 + $0x88] sm:$0xff] %vm604, %v543
        %623 = vst.msk [vmem:[#allocation3 + $0x90] sm:$0xff] %vm604, %v545
        %624 = vst.msk [vmem:[#allocation3 + $0x98] sm:$0xff] %vm604, %v547
        %625 = vst.msk [vmem:[#allocation3 + $0xa0] sm:$0xff] %vm604, %v549
        %626 = vst.msk [vmem:[#allocation3 + $0xa8] sm:$0xff] %vm604, %v551
        %627 = vst.msk [vmem:[#allocation3 + $0xb0] sm:$0xff] %vm604, %v553
        %628 = vst.msk [vmem:[#allocation3 + $0xb8] sm:$0xff] %vm604, %v555
        %629 = vst.msk [vmem:[#allocation3 + $0xc0] sm:$0xff] %vm604, %v557
        %630 = vst.msk [vmem:[#allocation3 + $0xc8] sm:$0xff] %vm604, %v559
        %631 = vst.msk [vmem:[#allocation3 + $0xd0] sm:$0xff] %vm604, %v561
        %632 = vst.msk [vmem:[#allocation3 + $0xd8] sm:$0xff] %vm604, %v563
        %633 = vst.msk [vmem:[#allocation3 + $0xe0] sm:$0xff] %vm604, %v565
        %634 = vst.msk [vmem:[#allocation3 + $0xe8] sm:$0xff] %vm604, %v567
        %635 = vst.msk [vmem:[#allocation3 + $0xf0] sm:$0xff] %vm604, %v569
        %636 = vst.msk [vmem:[#allocation3 + $0xf8] sm:$0xff] %vm604, %v571
        %v637 = vld [vmem:[#allocation2 + $0x2] sm:$0xff]
        %v638 = vld [vmem:[#allocation2 + $0xa] sm:$0xff]
        %v639 = vld [vmem:[#allocation2 + $0x1a] sm:$0xff]
        %v640 = vld [vmem:[#allocation2 + $0x22] sm:$0xff]
        %v641 = vld [vmem:[#allocation2 + $0x32] sm:$0xff]
        %v642 = vld [vmem:[#allocation2 + $0x3a] sm:$0xff]
        %v643 = vld [vmem:[#allocation2 + $0x4a] sm:$0xff]
        %v644 = vld [vmem:[#allocation2 + $0x52] sm:$0xff]
        %v645 = vld [vmem:[#allocation2 + $0x62] sm:$0xff]
        %v646 = vld [vmem:[#allocation2 + $0x6a] sm:$0xff]
        %v647 = vld [vmem:[#allocation2 + $0x7a] sm:$0xff]
        %v648 = vld [vmem:[#allocation2 + $0x82] sm:$0xff]
        %v649 = vld [vmem:[#allocation2 + $0x92] sm:$0xff]
        %v650 = vld [vmem:[#allocation2 + $0x9a] sm:$0xff]
        %v651 = vld [vmem:[#allocation2 + $0xaa] sm:$0xff]
        %v652 = vld [vmem:[#allocation2 + $0xb2] sm:$0xff]
        %v653 = vld [vmem:[#allocation2 + $0xc2] sm:$0xff]
        %v654 = vld [vmem:[#allocation2 + $0xca] sm:$0xff]
        %v655 = vld [vmem:[#allocation2 + $0xda] sm:$0xff]
        %v656 = vld [vmem:[#allocation2 + $0xe2] sm:$0xff]
        %v657 = vld [vmem:[#allocation2 + $0xf2] sm:$0xff]
        %v658 = vld [vmem:[#allocation2 + $0xfa] sm:$0xff]
        %v659 = vld [vmem:[#allocation2 + $0x10a] sm:$0xff]
        %v660 = vld [vmem:[#allocation2 + $0x112] sm:$0xff]
        %v661 = vld [vmem:[#allocation2 + $0x122] sm:$0xff]
        %v662 = vld [vmem:[#allocation2 + $0x12a] sm:$0xff]
        %v663 = vld [vmem:[#allocation2 + $0x13a] sm:$0xff]
        %v664 = vld [vmem:[#allocation2 + $0x142] sm:$0xff]
        %v665 = vld [vmem:[#allocation2 + $0x152] sm:$0xff]
        %v666 = vld [vmem:[#allocation2 + $0x15a] sm:$0xff]
        %v667 = vld [vmem:[#allocation2 + $0x16a] sm:$0xff]
        %v668 = vld [vmem:[#allocation2 + $0x172] sm:$0xff]
        %701 = vrot.lane.b32.xlu0 %v637, 8
        %v702 = vpop.permute.xlu0 %701
        %703 = vrot.lane.b32.xlu0 %v638, 8
        %v704 = vpop.permute.xlu0 %703
        %705 = vrot.lane.b32.xlu0 %v639, 8
        %v706 = vpop.permute.xlu0 %705
        %707 = vrot.lane.b32.xlu0 %v640, 8
        %v708 = vpop.permute.xlu0 %707
        %709 = vrot.lane.b32.xlu0 %v641, 8
        %v710 = vpop.permute.xlu0 %709
        %711 = vrot.lane.b32.xlu0 %v642, 8
        %v712 = vpop.permute.xlu0 %711
        %713 = vrot.lane.b32.xlu0 %v643, 8
        %v714 = vpop.permute.xlu0 %713
        %715 = vrot.lane.b32.xlu0 %v644, 8
        %v716 = vpop.permute.xlu0 %715
        %717 = vrot.lane.b32.xlu0 %v645, 8
        %v718 = vpop.permute.xlu0 %717
        %719 = vrot.lane.b32.xlu0 %v646, 8
        %v720 = vpop.permute.xlu0 %719
        %721 = vrot.lane.b32.xlu0 %v647, 8
        %v722 = vpop.permute.xlu0 %721
        %723 = vrot.lane.b32.xlu0 %v648, 8
        %v724 = vpop.permute.xlu0 %723
        %725 = vrot.lane.b32.xlu0 %v649, 8
        %v726 = vpop.permute.xlu0 %725
        %727 = vrot.lane.b32.xlu0 %v650, 8
        %v728 = vpop.permute.xlu0 %727
        %729 = vrot.lane.b32.xlu0 %v651, 8
        %v730 = vpop.permute.xlu0 %729
        %731 = vrot.lane.b32.xlu0 %v652, 8
        %v732 = vpop.permute.xlu0 %731
        %733 = vrot.lane.b32.xlu0 %v653, 8
        %v734 = vpop.permute.xlu0 %733
        %735 = vrot.lane.b32.xlu0 %v654, 8
        %v736 = vpop.permute.xlu0 %735
        %737 = vrot.lane.b32.xlu0 %v655, 8
        %v738 = vpop.permute.xlu0 %737
        %739 = vrot.lane.b32.xlu0 %v656, 8
        %v740 = vpop.permute.xlu0 %739
        %741 = vrot.lane.b32.xlu0 %v657, 8
        %v742 = vpop.permute.xlu0 %741
        %743 = vrot.lane.b32.xlu0 %v658, 8
        %v744 = vpop.permute.xlu0 %743
        %745 = vrot.lane.b32.xlu0 %v659, 8
        %v746 = vpop.permute.xlu0 %745
        %747 = vrot.lane.b32.xlu0 %v660, 8
        %v748 = vpop.permute.xlu0 %747
        %749 = vrot.lane.b32.xlu0 %v661, 8
        %v750 = vpop.permute.xlu0 %749
        %751 = vrot.lane.b32.xlu0 %v662, 8
        %v752 = vpop.permute.xlu0 %751
        %753 = vrot.lane.b32.xlu0 %v663, 8
        %v754 = vpop.permute.xlu0 %753
        %755 = vrot.lane.b32.xlu0 %v664, 8
        %v756 = vpop.permute.xlu0 %755
        %757 = vrot.lane.b32.xlu0 %v665, 8
        %v758 = vpop.permute.xlu0 %757
        %759 = vrot.lane.b32.xlu0 %v666, 8
        %v760 = vpop.permute.xlu0 %759
        %761 = vrot.lane.b32.xlu0 %v667, 8
        %v762 = vpop.permute.xlu0 %761
        %763 = vrot.lane.b32.xlu0 %v668, 8
        %v764 = vpop.permute.xlu0 %763
        %vm797 = vcmask 97344
        %798 = vst.msk [vmem:[#allocation3] sm:$0xff] %vm797, %v702
        %799 = vst.msk [vmem:[#allocation3 + $0x8] sm:$0xff] %vm797, %v704
        %800 = vst.msk [vmem:[#allocation3 + $0x10] sm:$0xff] %vm797, %v706
        %801 = vst.msk [vmem:[#allocation3 + $0x18] sm:$0xff] %vm797, %v708
        %802 = vst.msk [vmem:[#allocation3 + $0x20] sm:$0xff] %vm797, %v710
        %803 = vst.msk [vmem:[#allocation3 + $0x28] sm:$0xff] %vm797, %v712
        %804 = vst.msk [vmem:[#allocation3 + $0x30] sm:$0xff] %vm797, %v714
        %805 = vst.msk [vmem:[#allocation3 + $0x38] sm:$0xff] %vm797, %v716
        %806 = vst.msk [vmem:[#allocation3 + $0x40] sm:$0xff] %vm797, %v718
        %807 = vst.msk [vmem:[#allocation3 + $0x48] sm:$0xff] %vm797, %v720
        %808 = vst.msk [vmem:[#allocation3 + $0x50] sm:$0xff] %vm797, %v722
        %809 = vst.msk [vmem:[#allocation3 + $0x58] sm:$0xff] %vm797, %v724
        %810 = vst.msk [vmem:[#allocation3 + $0x60] sm:$0xff] %vm797, %v726
        %811 = vst.msk [vmem:[#allocation3 + $0x68] sm:$0xff] %vm797, %v728
        %812 = vst.msk [vmem:[#allocation3 + $0x70] sm:$0xff] %vm797, %v730
        %813 = vst.msk [vmem:[#allocation3 + $0x78] sm:$0xff] %vm797, %v732
        %814 = vst.msk [vmem:[#allocation3 + $0x80] sm:$0xff] %vm797, %v734
        %815 = vst.msk [vmem:[#allocation3 + $0x88] sm:$0xff] %vm797, %v736
        %816 = vst.msk [vmem:[#allocation3 + $0x90] sm:$0xff] %vm797, %v738
        %817 = vst.msk [vmem:[#allocation3 + $0x98] sm:$0xff] %vm797, %v740
        %818 = vst.msk [vmem:[#allocation3 + $0xa0] sm:$0xff] %vm797, %v742
        %819 = vst.msk [vmem:[#allocation3 + $0xa8] sm:$0xff] %vm797, %v744
        %820 = vst.msk [vmem:[#allocation3 + $0xb0] sm:$0xff] %vm797, %v746
        %821 = vst.msk [vmem:[#allocation3 + $0xb8] sm:$0xff] %vm797, %v748
        %822 = vst.msk [vmem:[#allocation3 + $0xc0] sm:$0xff] %vm797, %v750
        %823 = vst.msk [vmem:[#allocation3 + $0xc8] sm:$0xff] %vm797, %v752
        %824 = vst.msk [vmem:[#allocation3 + $0xd0] sm:$0xff] %vm797, %v754
        %825 = vst.msk [vmem:[#allocation3 + $0xd8] sm:$0xff] %vm797, %v756
        %826 = vst.msk [vmem:[#allocation3 + $0xe0] sm:$0xff] %vm797, %v758
        %827 = vst.msk [vmem:[#allocation3 + $0xe8] sm:$0xff] %vm797, %v760
        %828 = vst.msk [vmem:[#allocation3 + $0xf0] sm:$0xff] %vm797, %v762
        %829 = vst.msk [vmem:[#allocation3 + $0xf8] sm:$0xff] %vm797, %v764
        %v830 = vld [vmem:[%s347] sm:$0xff]
        %v831 = vld [vmem:[%s347 + $0x8] sm:$0xff]
        %v832 = vld [vmem:[%s347 + $0x18] sm:$0xff]
        %v833 = vld [vmem:[%s347 + $0x20] sm:$0xff]
        %v834 = vld [vmem:[%s347 + $0x30] sm:$0xff]
        %v835 = vld [vmem:[%s347 + $0x38] sm:$0xff]
        %v836 = vld [vmem:[%s347 + $0x48] sm:$0xff]
        %v837 = vld [vmem:[%s347 + $0x50] sm:$0xff]
        %v838 = vld [vmem:[%s347 + $0x60] sm:$0xff]
        %v839 = vld [vmem:[%s347 + $0x68] sm:$0xff]
        %v840 = vld [vmem:[%s347 + $0x78] sm:$0xff]
        %v841 = vld [vmem:[%s347 + $0x80] sm:$0xff]
        %v842 = vld [vmem:[%s347 + $0x90] sm:$0xff]
        %v843 = vld [vmem:[%s347 + $0x98] sm:$0xff]
        %v844 = vld [vmem:[%s347 + $0xa8] sm:$0xff]
        %v845 = vld [vmem:[%s347 + $0xb0] sm:$0xff]
        %v846 = vld [vmem:[%s347 + $0xc0] sm:$0xff]
        %v847 = vld [vmem:[%s347 + $0xc8] sm:$0xff]
        %v848 = vld [vmem:[%s347 + $0xd8] sm:$0xff]
        %v849 = vld [vmem:[%s347 + $0xe0] sm:$0xff]
        %v850 = vld [vmem:[%s347 + $0xf0] sm:$0xff]
        %v851 = vld [vmem:[%s347 + $0xf8] sm:$0xff]
        %v852 = vld [vmem:[%s347 + $0x108] sm:$0xff]
        %v853 = vld [vmem:[%s347 + $0x110] sm:$0xff]
        %v854 = vld [vmem:[%s347 + $0x120] sm:$0xff]
        %v855 = vld [vmem:[%s347 + $0x128] sm:$0xff]
        %v856 = vld [vmem:[%s347 + $0x138] sm:$0xff]
        %v857 = vld [vmem:[%s347 + $0x140] sm:$0xff]
        %v858 = vld [vmem:[%s347 + $0x150] sm:$0xff]
        %v859 = vld [vmem:[%s347 + $0x158] sm:$0xff]
        %v860 = vld [vmem:[%s347 + $0x168] sm:$0xff]
        %v861 = vld [vmem:[%s347 + $0x170] sm:$0xff]
        %894 = vrot.lane.b32.xlu0 %v830, 12
        %v895 = vpop.permute.xlu0 %894
        %896 = vrot.lane.b32.xlu0 %v831, 12
        %v897 = vpop.permute.xlu0 %896
        %898 = vrot.lane.b32.xlu0 %v832, 12
        %v899 = vpop.permute.xlu0 %898
        %900 = vrot.lane.b32.xlu0 %v833, 12
        %v901 = vpop.permute.xlu0 %900
        %902 = vrot.lane.b32.xlu0 %v834, 12
        %v903 = vpop.permute.xlu0 %902
        %904 = vrot.lane.b32.xlu0 %v835, 12
        %v905 = vpop.permute.xlu0 %904
        %906 = vrot.lane.b32.xlu0 %v836, 12
        %v907 = vpop.permute.xlu0 %906
        %908 = vrot.lane.b32.xlu0 %v837, 12
        %v909 = vpop.permute.xlu0 %908
        %910 = vrot.lane.b32.xlu0 %v838, 12
        %v911 = vpop.permute.xlu0 %910
        %912 = vrot.lane.b32.xlu0 %v839, 12
        %v913 = vpop.permute.xlu0 %912
        %914 = vrot.lane.b32.xlu0 %v840, 12
        %v915 = vpop.permute.xlu0 %914
        %916 = vrot.lane.b32.xlu0 %v841, 12
        %v917 = vpop.permute.xlu0 %916
        %918 = vrot.lane.b32.xlu0 %v842, 12
        %v919 = vpop.permute.xlu0 %918
        %920 = vrot.lane.b32.xlu0 %v843, 12
        %v921 = vpop.permute.xlu0 %920
        %922 = vrot.lane.b32.xlu0 %v844, 12
        %v923 = vpop.permute.xlu0 %922
        %924 = vrot.lane.b32.xlu0 %v845, 12
        %v925 = vpop.permute.xlu0 %924
        %926 = vrot.lane.b32.xlu0 %v846, 12
        %v927 = vpop.permute.xlu0 %926
        %928 = vrot.lane.b32.xlu0 %v847, 12
        %v929 = vpop.permute.xlu0 %928
        %930 = vrot.lane.b32.xlu0 %v848, 12
        %v931 = vpop.permute.xlu0 %930
        %932 = vrot.lane.b32.xlu0 %v849, 12
        %v933 = vpop.permute.xlu0 %932
        %934 = vrot.lane.b32.xlu0 %v850, 12
        %v935 = vpop.permute.xlu0 %934
        %936 = vrot.lane.b32.xlu0 %v851, 12
        %v937 = vpop.permute.xlu0 %936
        %938 = vrot.lane.b32.xlu0 %v852, 12
        %v939 = vpop.permute.xlu0 %938
        %940 = vrot.lane.b32.xlu0 %v853, 12
        %v941 = vpop.permute.xlu0 %940
        %942 = vrot.lane.b32.xlu0 %v854, 12
        %v943 = vpop.permute.xlu0 %942
        %944 = vrot.lane.b32.xlu0 %v855, 12
        %v945 = vpop.permute.xlu0 %944
        %946 = vrot.lane.b32.xlu0 %v856, 12
        %v947 = vpop.permute.xlu0 %946
        %948 = vrot.lane.b32.xlu0 %v857, 12
        %v949 = vpop.permute.xlu0 %948
        %950 = vrot.lane.b32.xlu0 %v858, 12
        %v951 = vpop.permute.xlu0 %950
        %952 = vrot.lane.b32.xlu0 %v859, 12
        %v953 = vpop.permute.xlu0 %952
        %954 = vrot.lane.b32.xlu0 %v860, 12
        %v955 = vpop.permute.xlu0 %954
        %956 = vrot.lane.b32.xlu0 %v861, 12
        %v957 = vpop.permute.xlu0 %956
        %vm990 = vcmask 130144
        %991 = vst.msk [vmem:[#allocation3] sm:$0xff] %vm990, %v895
        %992 = vst.msk [vmem:[#allocation3 + $0x8] sm:$0xff] %vm990, %v897
        %993 = vst.msk [vmem:[#allocation3 + $0x10] sm:$0xff] %vm990, %v899
        %994 = vst.msk [vmem:[#allocation3 + $0x18] sm:$0xff] %vm990, %v901
        %995 = vst.msk [vmem:[#allocation3 + $0x20] sm:$0xff] %vm990, %v903
        %996 = vst.msk [vmem:[#allocation3 + $0x28] sm:$0xff] %vm990, %v905
        %997 = vst.msk [vmem:[#allocation3 + $0x30] sm:$0xff] %vm990, %v907
        %998 = vst.msk [vmem:[#allocation3 + $0x38] sm:$0xff] %vm990, %v909
        %999 = vst.msk [vmem:[#allocation3 + $0x40] sm:$0xff] %vm990, %v911
        %1000 = vst.msk [vmem:[#allocation3 + $0x48] sm:$0xff] %vm990, %v913
        %1001 = vst.msk [vmem:[#allocation3 + $0x50] sm:$0xff] %vm990, %v915
        %1002 = vst.msk [vmem:[#allocation3 + $0x58] sm:$0xff] %vm990, %v917
        %1003 = vst.msk [vmem:[#allocation3 + $0x60] sm:$0xff] %vm990, %v919
        %1004 = vst.msk [vmem:[#allocation3 + $0x68] sm:$0xff] %vm990, %v921
        %1005 = vst.msk [vmem:[#allocation3 + $0x70] sm:$0xff] %vm990, %v923
        %1006 = vst.msk [vmem:[#allocation3 + $0x78] sm:$0xff] %vm990, %v925
        %1007 = vst.msk [vmem:[#allocation3 + $0x80] sm:$0xff] %vm990, %v927
        %1008 = vst.msk [vmem:[#allocation3 + $0x88] sm:$0xff] %vm990, %v929
        %1009 = vst.msk [vmem:[#allocation3 + $0x90] sm:$0xff] %vm990, %v931
        %1010 = vst.msk [vmem:[#allocation3 + $0x98] sm:$0xff] %vm990, %v933
        %1011 = vst.msk [vmem:[#allocation3 + $0xa0] sm:$0xff] %vm990, %v935
        %1012 = vst.msk [vmem:[#allocation3 + $0xa8] sm:$0xff] %vm990, %v937
        %1013 = vst.msk [vmem:[#allocation3 + $0xb0] sm:$0xff] %vm990, %v939
        %1014 = vst.msk [vmem:[#allocation3 + $0xb8] sm:$0xff] %vm990, %v941
        %1015 = vst.msk [vmem:[#allocation3 + $0xc0] sm:$0xff] %vm990, %v943
        %1016 = vst.msk [vmem:[#allocation3 + $0xc8] sm:$0xff] %vm990, %v945
        %1017 = vst.msk [vmem:[#allocation3 + $0xd0] sm:$0xff] %vm990, %v947
        %1018 = vst.msk [vmem:[#allocation3 + $0xd8] sm:$0xff] %vm990, %v949
        %1019 = vst.msk [vmem:[#allocation3 + $0xe0] sm:$0xff] %vm990, %v951
        %1020 = vst.msk [vmem:[#allocation3 + $0xe8] sm:$0xff] %vm990, %v953
        %1021 = vst.msk [vmem:[#allocation3 + $0xf0] sm:$0xff] %vm990, %v955
        %1022 = vst.msk [vmem:[#allocation3 + $0xf8] sm:$0xff] %vm990, %v957
        %v1023 = vld [vmem:[%s347 + $0x1] sm:$0xff]
        %v1024 = vld [vmem:[%s347 + $0x9] sm:$0xff]
        %v1025 = vld [vmem:[%s347 + $0x19] sm:$0xff]
        %v1026 = vld [vmem:[%s347 + $0x21] sm:$0xff]
        %v1027 = vld [vmem:[%s347 + $0x31] sm:$0xff]
        %v1028 = vld [vmem:[%s347 + $0x39] sm:$0xff]
        %v1029 = vld [vmem:[%s347 + $0x49] sm:$0xff]
        %v1030 = vld [vmem:[%s347 + $0x51] sm:$0xff]
        %v1031 = vld [vmem:[%s347 + $0x61] sm:$0xff]
        %v1032 = vld [vmem:[%s347 + $0x69] sm:$0xff]
        %v1033 = vld [vmem:[%s347 + $0x79] sm:$0xff]
        %v1034 = vld [vmem:[%s347 + $0x81] sm:$0xff]
        %v1035 = vld [vmem:[%s347 + $0x91] sm:$0xff]
        %v1036 = vld [vmem:[%s347 + $0x99] sm:$0xff]
        %v1037 = vld [vmem:[%s347 + $0xa9] sm:$0xff]
        %v1038 = vld [vmem:[%s347 + $0xb1] sm:$0xff]
        %v1039 = vld [vmem:[%s347 + $0xc1] sm:$0xff]
        %v1040 = vld [vmem:[%s347 + $0xc9] sm:$0xff]
        %v1041 = vld [vmem:[%s347 + $0xd9] sm:$0xff]
        %v1042 = vld [vmem:[%s347 + $0xe1] sm:$0xff]
        %v1043 = vld [vmem:[%s347 + $0xf1] sm:$0xff]
        %v1044 = vld [vmem:[%s347 + $0xf9] sm:$0xff]
        %v1045 = vld [vmem:[%s347 + $0x109] sm:$0xff]
        %v1046 = vld [vmem:[%s347 + $0x111] sm:$0xff]
        %v1047 = vld [vmem:[%s347 + $0x121] sm:$0xff]
        %v1048 = vld [vmem:[%s347 + $0x129] sm:$0xff]
        %v1049 = vld [vmem:[%s347 + $0x139] sm:$0xff]
        %v1050 = vld [vmem:[%s347 + $0x141] sm:$0xff]
        %v1051 = vld [vmem:[%s347 + $0x151] sm:$0xff]
        %v1052 = vld [vmem:[%s347 + $0x159] sm:$0xff]
        %v1053 = vld [vmem:[%s347 + $0x169] sm:$0xff]
        %v1054 = vld [vmem:[%s347 + $0x171] sm:$0xff]
        %1087 = vrot.lane.b32.xlu0 %v1023, 16
        %v1088 = vpop.permute.xlu0 %1087
        %1089 = vrot.lane.b32.xlu0 %v1024, 16
        %v1090 = vpop.permute.xlu0 %1089
        %1091 = vrot.lane.b32.xlu0 %v1025, 16
        %v1092 = vpop.permute.xlu0 %1091
        %1093 = vrot.lane.b32.xlu0 %v1026, 16
        %v1094 = vpop.permute.xlu0 %1093
        %1095 = vrot.lane.b32.xlu0 %v1027, 16
        %v1096 = vpop.permute.xlu0 %1095
        %1097 = vrot.lane.b32.xlu0 %v1028, 16
        %v1098 = vpop.permute.xlu0 %1097
        %1099 = vrot.lane.b32.xlu0 %v1029, 16
        %v1100 = vpop.permute.xlu0 %1099
        %1101 = vrot.lane.b32.xlu0 %v1030, 16
        %v1102 = vpop.permute.xlu0 %1101
        %1103 = vrot.lane.b32.xlu0 %v1031, 16
        %v1104 = vpop.permute.xlu0 %1103
        %1105 = vrot.lane.b32.xlu0 %v1032, 16
        %v1106 = vpop.permute.xlu0 %1105
        %1107 = vrot.lane.b32.xlu0 %v1033, 16
        %v1108 = vpop.permute.xlu0 %1107
        %1109 = vrot.lane.b32.xlu0 %v1034, 16
        %v1110 = vpop.permute.xlu0 %1109
        %1111 = vrot.lane.b32.xlu0 %v1035, 16
        %v1112 = vpop.permute.xlu0 %1111
        %1113 = vrot.lane.b32.xlu0 %v1036, 16
        %v1114 = vpop.permute.xlu0 %1113
        %1115 = vrot.lane.b32.xlu0 %v1037, 16
        %v1116 = vpop.permute.xlu0 %1115
        %1117 = vrot.lane.b32.xlu0 %v1038, 16
        %v1118 = vpop.permute.xlu0 %1117
        %1119 = vrot.lane.b32.xlu0 %v1039, 16
        %v1120 = vpop.permute.xlu0 %1119
        %1121 = vrot.lane.b32.xlu0 %v1040, 16
        %v1122 = vpop.permute.xlu0 %1121
        %1123 = vrot.lane.b32.xlu0 %v1041, 16
        %v1124 = vpop.permute.xlu0 %1123
        %1125 = vrot.lane.b32.xlu0 %v1042, 16
        %v1126 = vpop.permute.xlu0 %1125
        %1127 = vrot.lane.b32.xlu0 %v1043, 16
        %v1128 = vpop.permute.xlu0 %1127
        %1129 = vrot.lane.b32.xlu0 %v1044, 16
        %v1130 = vpop.permute.xlu0 %1129
        %1131 = vrot.lane.b32.xlu0 %v1045, 16
        %v1132 = vpop.permute.xlu0 %1131
        %1133 = vrot.lane.b32.xlu0 %v1046, 16
        %v1134 = vpop.permute.xlu0 %1133
        %1135 = vrot.lane.b32.xlu0 %v1047, 16
        %v1136 = vpop.permute.xlu0 %1135
        %1137 = vrot.lane.b32.xlu0 %v1048, 16
        %v1138 = vpop.permute.xlu0 %1137
        %1139 = vrot.lane.b32.xlu0 %v1049, 16
        %v1140 = vpop.permute.xlu0 %1139
        %1141 = vrot.lane.b32.xlu0 %v1050, 16
        %v1142 = vpop.permute.xlu0 %1141
        %1143 = vrot.lane.b32.xlu0 %v1051, 16
        %v1144 = vpop.permute.xlu0 %1143
        %1145 = vrot.lane.b32.xlu0 %v1052, 16
        %v1146 = vpop.permute.xlu0 %1145
        %1147 = vrot.lane.b32.xlu0 %v1053, 16
        %v1148 = vpop.permute.xlu0 %1147
        %1149 = vrot.lane.b32.xlu0 %v1054, 16
        %v1150 = vpop.permute.xlu0 %1149
        %vm1183 = vcmask 162944
        %1184 = vst.msk [vmem:[#allocation3] sm:$0xff] %vm1183, %v1088
        %1185 = vst.msk [vmem:[#allocation3 + $0x8] sm:$0xff] %vm1183, %v1090
        %1186 = vst.msk [vmem:[#allocation3 + $0x10] sm:$0xff] %vm1183, %v1092
        %1187 = vst.msk [vmem:[#allocation3 + $0x18] sm:$0xff] %vm1183, %v1094
        %1188 = vst.msk [vmem:[#allocation3 + $0x20] sm:$0xff] %vm1183, %v1096
        %1189 = vst.msk [vmem:[#allocation3 + $0x28] sm:$0xff] %vm1183, %v1098
        %1190 = vst.msk [vmem:[#allocation3 + $0x30] sm:$0xff] %vm1183, %v1100
        %1191 = vst.msk [vmem:[#allocation3 + $0x38] sm:$0xff] %vm1183, %v1102
        %1192 = vst.msk [vmem:[#allocation3 + $0x40] sm:$0xff] %vm1183, %v1104
        %1193 = vst.msk [vmem:[#allocation3 + $0x48] sm:$0xff] %vm1183, %v1106
        %1194 = vst.msk [vmem:[#allocation3 + $0x50] sm:$0xff] %vm1183, %v1108
        %1195 = vst.msk [vmem:[#allocation3 + $0x58] sm:$0xff] %vm1183, %v1110
        %1196 = vst.msk [vmem:[#allocation3 + $0x60] sm:$0xff] %vm1183, %v1112
        %1197 = vst.msk [vmem:[#allocation3 + $0x68] sm:$0xff] %vm1183, %v1114
        %1198 = vst.msk [vmem:[#allocation3 + $0x70] sm:$0xff] %vm1183, %v1116
        %1199 = vst.msk [vmem:[#allocation3 + $0x78] sm:$0xff] %vm1183, %v1118
        %1200 = vst.msk [vmem:[#allocation3 + $0x80] sm:$0xff] %vm1183, %v1120
        %1201 = vst.msk [vmem:[#allocation3 + $0x88] sm:$0xff] %vm1183, %v1122
        %1202 = vst.msk [vmem:[#allocation3 + $0x90] sm:$0xff] %vm1183, %v1124
        %1203 = vst.msk [vmem:[#allocation3 + $0x98] sm:$0xff] %vm1183, %v1126
        %1204 = vst.msk [vmem:[#allocation3 + $0xa0] sm:$0xff] %vm1183, %v1128
        %1205 = vst.msk [vmem:[#allocation3 + $0xa8] sm:$0xff] %vm1183, %v1130
        %1206 = vst.msk [vmem:[#allocation3 + $0xb0] sm:$0xff] %vm1183, %v1132
        %1207 = vst.msk [vmem:[#allocation3 + $0xb8] sm:$0xff] %vm1183, %v1134
        %1208 = vst.msk [vmem:[#allocation3 + $0xc0] sm:$0xff] %vm1183, %v1136
        %1209 = vst.msk [vmem:[#allocation3 + $0xc8] sm:$0xff] %vm1183, %v1138
        %1210 = vst.msk [vmem:[#allocation3 + $0xd0] sm:$0xff] %vm1183, %v1140
        %1211 = vst.msk [vmem:[#allocation3 + $0xd8] sm:$0xff] %vm1183, %v1142
        %1212 = vst.msk [vmem:[#allocation3 + $0xe0] sm:$0xff] %vm1183, %v1144
        %1213 = vst.msk [vmem:[#allocation3 + $0xe8] sm:$0xff] %vm1183, %v1146
        %1214 = vst.msk [vmem:[#allocation3 + $0xf0] sm:$0xff] %vm1183, %v1148
        %1215 = vst.msk [vmem:[#allocation3 + $0xf8] sm:$0xff] %vm1183, %v1150
        %v1216 = vld [vmem:[%s347 + $0x2] sm:$0xff]
        %v1217 = vld [vmem:[%s347 + $0xa] sm:$0xff]
        %v1218 = vld [vmem:[%s347 + $0x1a] sm:$0xff]
        %v1219 = vld [vmem:[%s347 + $0x22] sm:$0xff]
        %v1220 = vld [vmem:[%s347 + $0x32] sm:$0xff]
        %v1221 = vld [vmem:[%s347 + $0x3a] sm:$0xff]
        %v1222 = vld [vmem:[%s347 + $0x4a] sm:$0xff]
        %v1223 = vld [vmem:[%s347 + $0x52] sm:$0xff]
        %v1224 = vld [vmem:[%s347 + $0x62] sm:$0xff]
        %v1225 = vld [vmem:[%s347 + $0x6a] sm:$0xff]
        %v1226 = vld [vmem:[%s347 + $0x7a] sm:$0xff]
        %v1227 = vld [vmem:[%s347 + $0x82] sm:$0xff]
        %v1228 = vld [vmem:[%s347 + $0x92] sm:$0xff]
        %v1229 = vld [vmem:[%s347 + $0x9a] sm:$0xff]
        %v1230 = vld [vmem:[%s347 + $0xaa] sm:$0xff]
        %v1231 = vld [vmem:[%s347 + $0xb2] sm:$0xff]
        %v1232 = vld [vmem:[%s347 + $0xc2] sm:$0xff]
        %v1233 = vld [vmem:[%s347 + $0xca] sm:$0xff]
        %v1234 = vld [vmem:[%s347 + $0xda] sm:$0xff]
        %v1235 = vld [vmem:[%s347 + $0xe2] sm:$0xff]
        %v1236 = vld [vmem:[%s347 + $0xf2] sm:$0xff]
        %v1237 = vld [vmem:[%s347 + $0xfa] sm:$0xff]
        %v1238 = vld [vmem:[%s347 + $0x10a] sm:$0xff]
        %v1239 = vld [vmem:[%s347 + $0x112] sm:$0xff]
        %v1240 = vld [vmem:[%s347 + $0x122] sm:$0xff]
        %v1241 = vld [vmem:[%s347 + $0x12a] sm:$0xff]
        %v1242 = vld [vmem:[%s347 + $0x13a] sm:$0xff]
        %v1243 = vld [vmem:[%s347 + $0x142] sm:$0xff]
        %v1244 = vld [vmem:[%s347 + $0x152] sm:$0xff]
        %v1245 = vld [vmem:[%s347 + $0x15a] sm:$0xff]
        %v1246 = vld [vmem:[%s347 + $0x16a] sm:$0xff]
        %v1247 = vld [vmem:[%s347 + $0x172] sm:$0xff]
        %1280 = vrot.lane.b32.xlu0 %v1216, 20
        %v1281 = vpop.permute.xlu0 %1280
        %1282 = vrot.lane.b32.xlu0 %v1217, 20
        %v1283 = vpop.permute.xlu0 %1282
        %1284 = vrot.lane.b32.xlu0 %v1218, 20
        %v1285 = vpop.permute.xlu0 %1284
        %1286 = vrot.lane.b32.xlu0 %v1219, 20
        %v1287 = vpop.permute.xlu0 %1286
        %1288 = vrot.lane.b32.xlu0 %v1220, 20
        %v1289 = vpop.permute.xlu0 %1288
        %1290 = vrot.lane.b32.xlu0 %v1221, 20
        %v1291 = vpop.permute.xlu0 %1290
        %1292 = vrot.lane.b32.xlu0 %v1222, 20
        %v1293 = vpop.permute.xlu0 %1292
        %1294 = vrot.lane.b32.xlu0 %v1223, 20
        %v1295 = vpop.permute.xlu0 %1294
        %1296 = vrot.lane.b32.xlu0 %v1224, 20
        %v1297 = vpop.permute.xlu0 %1296
        %1298 = vrot.lane.b32.xlu0 %v1225, 20
        %v1299 = vpop.permute.xlu0 %1298
        %1300 = vrot.lane.b32.xlu0 %v1226, 20
        %v1301 = vpop.permute.xlu0 %1300
        %1302 = vrot.lane.b32.xlu0 %v1227, 20
        %v1303 = vpop.permute.xlu0 %1302
        %1304 = vrot.lane.b32.xlu0 %v1228, 20
        %v1305 = vpop.permute.xlu0 %1304
        %1306 = vrot.lane.b32.xlu0 %v1229, 20
        %v1307 = vpop.permute.xlu0 %1306
        %1308 = vrot.lane.b32.xlu0 %v1230, 20
        %v1309 = vpop.permute.xlu0 %1308
        %1310 = vrot.lane.b32.xlu0 %v1231, 20
        %v1311 = vpop.permute.xlu0 %1310
        %1312 = vrot.lane.b32.xlu0 %v1232, 20
        %v1313 = vpop.permute.xlu0 %1312
        %1314 = vrot.lane.b32.xlu0 %v1233, 20
        %v1315 = vpop.permute.xlu0 %1314
        %1316 = vrot.lane.b32.xlu0 %v1234, 20
        %v1317 = vpop.permute.xlu0 %1316
        %1318 = vrot.lane.b32.xlu0 %v1235, 20
        %v1319 = vpop.permute.xlu0 %1318
        %1320 = vrot.lane.b32.xlu0 %v1236, 20
        %v1321 = vpop.permute.xlu0 %1320
        %1322 = vrot.lane.b32.xlu0 %v1237, 20
        %v1323 = vpop.permute.xlu0 %1322
        %1324 = vrot.lane.b32.xlu0 %v1238, 20
        %v1325 = vpop.permute.xlu0 %1324
        %1326 = vrot.lane.b32.xlu0 %v1239, 20
        %v1327 = vpop.permute.xlu0 %1326
        %1328 = vrot.lane.b32.xlu0 %v1240, 20
        %v1329 = vpop.permute.xlu0 %1328
        %1330 = vrot.lane.b32.xlu0 %v1241, 20
        %v1331 = vpop.permute.xlu0 %1330
        %1332 = vrot.lane.b32.xlu0 %v1242, 20
        %v1333 = vpop.permute.xlu0 %1332
        %1334 = vrot.lane.b32.xlu0 %v1243, 20
        %v1335 = vpop.permute.xlu0 %1334
        %1336 = vrot.lane.b32.xlu0 %v1244, 20
        %v1337 = vpop.permute.xlu0 %1336
        %1338 = vrot.lane.b32.xlu0 %v1245, 20
        %v1339 = vpop.permute.xlu0 %1338
        %1340 = vrot.lane.b32.xlu0 %v1246, 20
        %v1341 = vpop.permute.xlu0 %1340
        %1342 = vrot.lane.b32.xlu0 %v1247, 20
        %v1343 = vpop.permute.xlu0 %1342
        %vm1376 = vcmask 195744
        %1377 = vst.msk [vmem:[#allocation3] sm:$0xff] %vm1376, %v1281
        %1378 = vst.msk [vmem:[#allocation3 + $0x8] sm:$0xff] %vm1376, %v1283
        %1379 = vst.msk [vmem:[#allocation3 + $0x10] sm:$0xff] %vm1376, %v1285
        %1380 = vst.msk [vmem:[#allocation3 + $0x18] sm:$0xff] %vm1376, %v1287
        %1381 = vst.msk [vmem:[#allocation3 + $0x20] sm:$0xff] %vm1376, %v1289
        %1382 = vst.msk [vmem:[#allocation3 + $0x28] sm:$0xff] %vm1376, %v1291
        %1383 = vst.msk [vmem:[#allocation3 + $0x30] sm:$0xff] %vm1376, %v1293
        %1384 = vst.msk [vmem:[#allocation3 + $0x38] sm:$0xff] %vm1376, %v1295
        %1385 = vst.msk [vmem:[#allocation3 + $0x40] sm:$0xff] %vm1376, %v1297
        %1386 = vst.msk [vmem:[#allocation3 + $0x48] sm:$0xff] %vm1376, %v1299
        %1387 = vst.msk [vmem:[#allocation3 + $0x50] sm:$0xff] %vm1376, %v1301
        %1388 = vst.msk [vmem:[#allocation3 + $0x58] sm:$0xff] %vm1376, %v1303
        %1389 = vst.msk [vmem:[#allocation3 + $0x60] sm:$0xff] %vm1376, %v1305
        %1390 = vst.msk [vmem:[#allocation3 + $0x68] sm:$0xff] %vm1376, %v1307
        %1391 = vst.msk [vmem:[#allocation3 + $0x70] sm:$0xff] %vm1376, %v1309
        %1392 = vst.msk [vmem:[#allocation3 + $0x78] sm:$0xff] %vm1376, %v1311
        %1393 = vst.msk [vmem:[#allocation3 + $0x80] sm:$0xff] %vm1376, %v1313
        %1394 = vst.msk [vmem:[#allocation3 + $0x88] sm:$0xff] %vm1376, %v1315
        %1395 = vst.msk [vmem:[#allocation3 + $0x90] sm:$0xff] %vm1376, %v1317
        %1396 = vst.msk [vmem:[#allocation3 + $0x98] sm:$0xff] %vm1376, %v1319
        %1397 = vst.msk [vmem:[#allocation3 + $0xa0] sm:$0xff] %vm1376, %v1321
        %1398 = vst.msk [vmem:[#allocation3 + $0xa8] sm:$0xff] %vm1376, %v1323
        %1399 = vst.msk [vmem:[#allocation3 + $0xb0] sm:$0xff] %vm1376, %v1325
        %1400 = vst.msk [vmem:[#allocation3 + $0xb8] sm:$0xff] %vm1376, %v1327
        %1401 = vst.msk [vmem:[#allocation3 + $0xc0] sm:$0xff] %vm1376, %v1329
        %1402 = vst.msk [vmem:[#allocation3 + $0xc8] sm:$0xff] %vm1376, %v1331
        %1403 = vst.msk [vmem:[#allocation3 + $0xd0] sm:$0xff] %vm1376, %v1333
        %1404 = vst.msk [vmem:[#allocation3 + $0xd8] sm:$0xff] %vm1376, %v1335
        %1405 = vst.msk [vmem:[#allocation3 + $0xe0] sm:$0xff] %vm1376, %v1337
        %1406 = vst.msk [vmem:[#allocation3 + $0xe8] sm:$0xff] %vm1376, %v1339
        %1407 = vst.msk [vmem:[#allocation3 + $0xf0] sm:$0xff] %vm1376, %v1341
        %1408 = vst.msk [vmem:[#allocation3 + $0xf8] sm:$0xff] %vm1376, %v1343
        %s1409 = scalar_lea.vmem [#allocation2], 48
        %v1410 = vld [vmem:[%s1409] sm:$0xff]
        %v1411 = vld [vmem:[%s1409 + $0x8] sm:$0xff]
        %v1412 = vld [vmem:[%s1409 + $0x18] sm:$0xff]
        %v1413 = vld [vmem:[%s1409 + $0x20] sm:$0xff]
        %v1414 = vld [vmem:[%s1409 + $0x30] sm:$0xff]
        %v1415 = vld [vmem:[%s1409 + $0x38] sm:$0xff]
        %v1416 = vld [vmem:[%s1409 + $0x48] sm:$0xff]
        %v1417 = vld [vmem:[%s1409 + $0x50] sm:$0xff]
        %v1418 = vld [vmem:[%s1409 + $0x60] sm:$0xff]
        %v1419 = vld [vmem:[%s1409 + $0x68] sm:$0xff]
        %v1420 = vld [vmem:[%s1409 + $0x78] sm:$0xff]
        %v1421 = vld [vmem:[%s1409 + $0x80] sm:$0xff]
        %v1422 = vld [vmem:[%s1409 + $0x90] sm:$0xff]
        %v1423 = vld [vmem:[%s1409 + $0x98] sm:$0xff]
        %v1424 = vld [vmem:[%s1409 + $0xa8] sm:$0xff]
        %v1425 = vld [vmem:[%s1409 + $0xb0] sm:$0xff]
        %v1426 = vld [vmem:[%s1409 + $0xc0] sm:$0xff]
        %v1427 = vld [vmem:[%s1409 + $0xc8] sm:$0xff]
        %v1428 = vld [vmem:[%s1409 + $0xd8] sm:$0xff]
        %v1429 = vld [vmem:[%s1409 + $0xe0] sm:$0xff]
        %v1430 = vld [vmem:[%s1409 + $0xf0] sm:$0xff]
        %v1431 = vld [vmem:[%s1409 + $0xf8] sm:$0xff]
        %v1432 = vld [vmem:[%s1409 + $0x108] sm:$0xff]
        %v1433 = vld [vmem:[%s1409 + $0x110] sm:$0xff]
        %v1434 = vld [vmem:[%s1409 + $0x120] sm:$0xff]
        %v1435 = vld [vmem:[%s1409 + $0x128] sm:$0xff]
        %v1436 = vld [vmem:[%s1409 + $0x138] sm:$0xff]
        %v1437 = vld [vmem:[%s1409 + $0x140] sm:$0xff]
        %v1438 = vld [vmem:[%s1409 + $0x150] sm:$0xff]
        %v1439 = vld [vmem:[%s1409 + $0x158] sm:$0xff]
        %v1440 = vld [vmem:[%s1409 + $0x168] sm:$0xff]
        %v1441 = vld [vmem:[%s1409 + $0x170] sm:$0xff]
        %1474 = vrot.lane.b32.xlu0 %v1410, 24
        %v1475 = vpop.permute.xlu0 %1474
        %1476 = vrot.lane.b32.xlu0 %v1411, 24
        %v1477 = vpop.permute.xlu0 %1476
        %1478 = vrot.lane.b32.xlu0 %v1412, 24
        %v1479 = vpop.permute.xlu0 %1478
        %1480 = vrot.lane.b32.xlu0 %v1413, 24
        %v1481 = vpop.permute.xlu0 %1480
        %1482 = vrot.lane.b32.xlu0 %v1414, 24
        %v1483 = vpop.permute.xlu0 %1482
        %1484 = vrot.lane.b32.xlu0 %v1415, 24
        %v1485 = vpop.permute.xlu0 %1484
        %1486 = vrot.lane.b32.xlu0 %v1416, 24
        %v1487 = vpop.permute.xlu0 %1486
        %1488 = vrot.lane.b32.xlu0 %v1417, 24
        %v1489 = vpop.permute.xlu0 %1488
        %1490 = vrot.lane.b32.xlu0 %v1418, 24
        %v1491 = vpop.permute.xlu0 %1490
        %1492 = vrot.lane.b32.xlu0 %v1419, 24
        %v1493 = vpop.permute.xlu0 %1492
        %1494 = vrot.lane.b32.xlu0 %v1420, 24
        %v1495 = vpop.permute.xlu0 %1494
        %1496 = vrot.lane.b32.xlu0 %v1421, 24
        %v1497 = vpop.permute.xlu0 %1496
        %1498 = vrot.lane.b32.xlu0 %v1422, 24
        %v1499 = vpop.permute.xlu0 %1498
        %1500 = vrot.lane.b32.xlu0 %v1423, 24
        %v1501 = vpop.permute.xlu0 %1500
        %1502 = vrot.lane.b32.xlu0 %v1424, 24
        %v1503 = vpop.permute.xlu0 %1502
        %1504 = vrot.lane.b32.xlu0 %v1425, 24
        %v1505 = vpop.permute.xlu0 %1504
        %1506 = vrot.lane.b32.xlu0 %v1426, 24
        %v1507 = vpop.permute.xlu0 %1506
        %1508 = vrot.lane.b32.xlu0 %v1427, 24
        %v1509 = vpop.permute.xlu0 %1508
        %1510 = vrot.lane.b32.xlu0 %v1428, 24
        %v1511 = vpop.permute.xlu0 %1510
        %1512 = vrot.lane.b32.xlu0 %v1429, 24
        %v1513 = vpop.permute.xlu0 %1512
        %1514 = vrot.lane.b32.xlu0 %v1430, 24
        %v1515 = vpop.permute.xlu0 %1514
        %1516 = vrot.lane.b32.xlu0 %v1431, 24
        %v1517 = vpop.permute.xlu0 %1516
        %1518 = vrot.lane.b32.xlu0 %v1432, 24
        %v1519 = vpop.permute.xlu0 %1518
        %1520 = vrot.lane.b32.xlu0 %v1433, 24
        %v1521 = vpop.permute.xlu0 %1520
        %1522 = vrot.lane.b32.xlu0 %v1434, 24
        %v1523 = vpop.permute.xlu0 %1522
        %1524 = vrot.lane.b32.xlu0 %v1435, 24
        %v1525 = vpop.permute.xlu0 %1524
        %1526 = vrot.lane.b32.xlu0 %v1436, 24
        %v1527 = vpop.permute.xlu0 %1526
        %1528 = vrot.lane.b32.xlu0 %v1437, 24
        %v1529 = vpop.permute.xlu0 %1528
        %1530 = vrot.lane.b32.xlu0 %v1438, 24
        %v1531 = vpop.permute.xlu0 %1530
        %1532 = vrot.lane.b32.xlu0 %v1439, 24
        %v1533 = vpop.permute.xlu0 %1532
        %1534 = vrot.lane.b32.xlu0 %v1440, 24
        %v1535 = vpop.permute.xlu0 %1534
        %1536 = vrot.lane.b32.xlu0 %v1441, 24
        %v1537 = vpop.permute.xlu0 %1536
        %vm1570 = vcmask 228544
        %1571 = vst.msk [vmem:[#allocation3] sm:$0xff] %vm1570, %v1475
        %1572 = vst.msk [vmem:[#allocation3 + $0x8] sm:$0xff] %vm1570, %v1477
        %1573 = vst.msk [vmem:[#allocation3 + $0x10] sm:$0xff] %vm1570, %v1479
        %1574 = vst.msk [vmem:[#allocation3 + $0x18] sm:$0xff] %vm1570, %v1481
        %1575 = vst.msk [vmem:[#allocation3 + $0x20] sm:$0xff] %vm1570, %v1483
        %1576 = vst.msk [vmem:[#allocation3 + $0x28] sm:$0xff] %vm1570, %v1485
        %1577 = vst.msk [vmem:[#allocation3 + $0x30] sm:$0xff] %vm1570, %v1487
        %1578 = vst.msk [vmem:[#allocation3 + $0x38] sm:$0xff] %vm1570, %v1489
        %1579 = vst.msk [vmem:[#allocation3 + $0x40] sm:$0xff] %vm1570, %v1491
        %1580 = vst.msk [vmem:[#allocation3 + $0x48] sm:$0xff] %vm1570, %v1493
        %1581 = vst.msk [vmem:[#allocation3 + $0x50] sm:$0xff] %vm1570, %v1495
        %1582 = vst.msk [vmem:[#allocation3 + $0x58] sm:$0xff] %vm1570, %v1497
        %1583 = vst.msk [vmem:[#allocation3 + $0x60] sm:$0xff] %vm1570, %v1499
        %1584 = vst.msk [vmem:[#allocation3 + $0x68] sm:$0xff] %vm1570, %v1501
        %1585 = vst.msk [vmem:[#allocation3 + $0x70] sm:$0xff] %vm1570, %v1503
        %1586 = vst.msk [vmem:[#allocation3 + $0x78] sm:$0xff] %vm1570, %v1505
        %1587 = vst.msk [vmem:[#allocation3 + $0x80] sm:$0xff] %vm1570, %v1507
        %1588 = vst.msk [vmem:[#allocation3 + $0x88] sm:$0xff] %vm1570, %v1509
        %1589 = vst.msk [vmem:[#allocation3 + $0x90] sm:$0xff] %vm1570, %v1511
        %1590 = vst.msk [vmem:[#allocation3 + $0x98] sm:$0xff] %vm1570, %v1513
        %1591 = vst.msk [vmem:[#allocation3 + $0xa0] sm:$0xff] %vm1570, %v1515
        %1592 = vst.msk [vmem:[#allocation3 + $0xa8] sm:$0xff] %vm1570, %v1517
        %1593 = vst.msk [vmem:[#allocation3 + $0xb0] sm:$0xff] %vm1570, %v1519
        %1594 = vst.msk [vmem:[#allocation3 + $0xb8] sm:$0xff] %vm1570, %v1521
        %1595 = vst.msk [vmem:[#allocation3 + $0xc0] sm:$0xff] %vm1570, %v1523
        %1596 = vst.msk [vmem:[#allocation3 + $0xc8] sm:$0xff] %vm1570, %v1525
        %1597 = vst.msk [vmem:[#allocation3 + $0xd0] sm:$0xff] %vm1570, %v1527
        %1598 = vst.msk [vmem:[#allocation3 + $0xd8] sm:$0xff] %vm1570, %v1529
        %1599 = vst.msk [vmem:[#allocation3 + $0xe0] sm:$0xff] %vm1570, %v1531
        %1600 = vst.msk [vmem:[#allocation3 + $0xe8] sm:$0xff] %vm1570, %v1533
        %1601 = vst.msk [vmem:[#allocation3 + $0xf0] sm:$0xff] %vm1570, %v1535
        %1602 = vst.msk [vmem:[#allocation3 + $0xf8] sm:$0xff] %vm1570, %v1537
        %v1603 = vld [vmem:[%s1409 + $0x1] sm:$0xff]
        %v1604 = vld [vmem:[%s1409 + $0x9] sm:$0xff]
        %v1605 = vld [vmem:[%s1409 + $0x19] sm:$0xff]
        %v1606 = vld [vmem:[%s1409 + $0x21] sm:$0xff]
        %v1607 = vld [vmem:[%s1409 + $0x31] sm:$0xff]
        %v1608 = vld [vmem:[%s1409 + $0x39] sm:$0xff]
        %v1609 = vld [vmem:[%s1409 + $0x49] sm:$0xff]
        %v1610 = vld [vmem:[%s1409 + $0x51] sm:$0xff]
        %v1611 = vld [vmem:[%s1409 + $0x61] sm:$0xff]
        %v1612 = vld [vmem:[%s1409 + $0x69] sm:$0xff]
        %v1613 = vld [vmem:[%s1409 + $0x79] sm:$0xff]
        %v1614 = vld [vmem:[%s1409 + $0x81] sm:$0xff]
        %v1615 = vld [vmem:[%s1409 + $0x91] sm:$0xff]
        %v1616 = vld [vmem:[%s1409 + $0x99] sm:$0xff]
        %v1617 = vld [vmem:[%s1409 + $0xa9] sm:$0xff]
        %v1618 = vld [vmem:[%s1409 + $0xb1] sm:$0xff]
        %v1619 = vld [vmem:[%s1409 + $0xc1] sm:$0xff]
        %v1620 = vld [vmem:[%s1409 + $0xc9] sm:$0xff]
        %v1621 = vld [vmem:[%s1409 + $0xd9] sm:$0xff]
        %v1622 = vld [vmem:[%s1409 + $0xe1] sm:$0xff]
        %v1623 = vld [vmem:[%s1409 + $0xf1] sm:$0xff]
        %v1624 = vld [vmem:[%s1409 + $0xf9] sm:$0xff]
        %v1625 = vld [vmem:[%s1409 + $0x109] sm:$0xff]
        %v1626 = vld [vmem:[%s1409 + $0x111] sm:$0xff]
        %v1627 = vld [vmem:[%s1409 + $0x121] sm:$0xff]
        %v1628 = vld [vmem:[%s1409 + $0x129] sm:$0xff]
        %v1629 = vld [vmem:[%s1409 + $0x139] sm:$0xff]
        %v1630 = vld [vmem:[%s1409 + $0x141] sm:$0xff]
        %v1631 = vld [vmem:[%s1409 + $0x151] sm:$0xff]
        %v1632 = vld [vmem:[%s1409 + $0x159] sm:$0xff]
        %v1633 = vld [vmem:[%s1409 + $0x169] sm:$0xff]
        %v1634 = vld [vmem:[%s1409 + $0x171] sm:$0xff]
        %1667 = vrot.lane.b32.xlu0 %v1603, 28
        %v1668 = vpop.permute.xlu0 %1667
        %1669 = vrot.lane.b32.xlu0 %v1604, 28
        %v1670 = vpop.permute.xlu0 %1669
        %1671 = vrot.lane.b32.xlu0 %v1605, 28
        %v1672 = vpop.permute.xlu0 %1671
        %1673 = vrot.lane.b32.xlu0 %v1606, 28
        %v1674 = vpop.permute.xlu0 %1673
        %1675 = vrot.lane.b32.xlu0 %v1607, 28
        %v1676 = vpop.permute.xlu0 %1675
        %1677 = vrot.lane.b32.xlu0 %v1608, 28
        %v1678 = vpop.permute.xlu0 %1677
        %1679 = vrot.lane.b32.xlu0 %v1609, 28
        %v1680 = vpop.permute.xlu0 %1679
        %1681 = vrot.lane.b32.xlu0 %v1610, 28
        %v1682 = vpop.permute.xlu0 %1681
        %1683 = vrot.lane.b32.xlu0 %v1611, 28
        %v1684 = vpop.permute.xlu0 %1683
        %1685 = vrot.lane.b32.xlu0 %v1612, 28
        %v1686 = vpop.permute.xlu0 %1685
        %1687 = vrot.lane.b32.xlu0 %v1613, 28
        %v1688 = vpop.permute.xlu0 %1687
        %1689 = vrot.lane.b32.xlu0 %v1614, 28
        %v1690 = vpop.permute.xlu0 %1689
        %1691 = vrot.lane.b32.xlu0 %v1615, 28
        %v1692 = vpop.permute.xlu0 %1691
        %1693 = vrot.lane.b32.xlu0 %v1616, 28
        %v1694 = vpop.permute.xlu0 %1693
        %1695 = vrot.lane.b32.xlu0 %v1617, 28
        %v1696 = vpop.permute.xlu0 %1695
        %1697 = vrot.lane.b32.xlu0 %v1618, 28
        %v1698 = vpop.permute.xlu0 %1697
        %1699 = vrot.lane.b32.xlu0 %v1619, 28
        %v1700 = vpop.permute.xlu0 %1699
        %1701 = vrot.lane.b32.xlu0 %v1620, 28
        %v1702 = vpop.permute.xlu0 %1701
        %1703 = vrot.lane.b32.xlu0 %v1621, 28
        %v1704 = vpop.permute.xlu0 %1703
        %1705 = vrot.lane.b32.xlu0 %v1622, 28
        %v1706 = vpop.permute.xlu0 %1705
        %1707 = vrot.lane.b32.xlu0 %v1623, 28
        %v1708 = vpop.permute.xlu0 %1707
        %1709 = vrot.lane.b32.xlu0 %v1624, 28
        %v1710 = vpop.permute.xlu0 %1709
        %1711 = vrot.lane.b32.xlu0 %v1625, 28
        %v1712 = vpop.permute.xlu0 %1711
        %1713 = vrot.lane.b32.xlu0 %v1626, 28
        %v1714 = vpop.permute.xlu0 %1713
        %1715 = vrot.lane.b32.xlu0 %v1627, 28
        %v1716 = vpop.permute.xlu0 %1715
        %1717 = vrot.lane.b32.xlu0 %v1628, 28
        %v1718 = vpop.permute.xlu0 %1717
        %1719 = vrot.lane.b32.xlu0 %v1629, 28
        %v1720 = vpop.permute.xlu0 %1719
        %1721 = vrot.lane.b32.xlu0 %v1630, 28
        %v1722 = vpop.permute.xlu0 %1721
        %1723 = vrot.lane.b32.xlu0 %v1631, 28
        %v1724 = vpop.permute.xlu0 %1723
        %1725 = vrot.lane.b32.xlu0 %v1632, 28
        %v1726 = vpop.permute.xlu0 %1725
        %1727 = vrot.lane.b32.xlu0 %v1633, 28
        %v1728 = vpop.permute.xlu0 %1727
        %1729 = vrot.lane.b32.xlu0 %v1634, 28
        %v1730 = vpop.permute.xlu0 %1729
        %vm1763 = vcmask 261344
        %1764 = vst.msk [vmem:[#allocation3] sm:$0xff] %vm1763, %v1668
        %1765 = vst.msk [vmem:[#allocation3 + $0x8] sm:$0xff] %vm1763, %v1670
        %1766 = vst.msk [vmem:[#allocation3 + $0x10] sm:$0xff] %vm1763, %v1672
        %1767 = vst.msk [vmem:[#allocation3 + $0x18] sm:$0xff] %vm1763, %v1674
        %1768 = vst.msk [vmem:[#allocation3 + $0x20] sm:$0xff] %vm1763, %v1676
        %1769 = vst.msk [vmem:[#allocation3 + $0x28] sm:$0xff] %vm1763, %v1678
        %1770 = vst.msk [vmem:[#allocation3 + $0x30] sm:$0xff] %vm1763, %v1680
        %1771 = vst.msk [vmem:[#allocation3 + $0x38] sm:$0xff] %vm1763, %v1682
        %1772 = vst.msk [vmem:[#allocation3 + $0x40] sm:$0xff] %vm1763, %v1684
        %1773 = vst.msk [vmem:[#allocation3 + $0x48] sm:$0xff] %vm1763, %v1686
        %1774 = vst.msk [vmem:[#allocation3 + $0x50] sm:$0xff] %vm1763, %v1688
        %1775 = vst.msk [vmem:[#allocation3 + $0x58] sm:$0xff] %vm1763, %v1690
        %1776 = vst.msk [vmem:[#allocation3 + $0x60] sm:$0xff] %vm1763, %v1692
        %1777 = vst.msk [vmem:[#allocation3 + $0x68] sm:$0xff] %vm1763, %v1694
        %1778 = vst.msk [vmem:[#allocation3 + $0x70] sm:$0xff] %vm1763, %v1696
        %1779 = vst.msk [vmem:[#allocation3 + $0x78] sm:$0xff] %vm1763, %v1698
        %1780 = vst.msk [vmem:[#allocation3 + $0x80] sm:$0xff] %vm1763, %v1700
        %1781 = vst.msk [vmem:[#allocation3 + $0x88] sm:$0xff] %vm1763, %v1702
        %1782 = vst.msk [vmem:[#allocation3 + $0x90] sm:$0xff] %vm1763, %v1704
        %1783 = vst.msk [vmem:[#allocation3 + $0x98] sm:$0xff] %vm1763, %v1706
        %1784 = vst.msk [vmem:[#allocation3 + $0xa0] sm:$0xff] %vm1763, %v1708
        %1785 = vst.msk [vmem:[#allocation3 + $0xa8] sm:$0xff] %vm1763, %v1710
        %1786 = vst.msk [vmem:[#allocation3 + $0xb0] sm:$0xff] %vm1763, %v1712
        %1787 = vst.msk [vmem:[#allocation3 + $0xb8] sm:$0xff] %vm1763, %v1714
        %1788 = vst.msk [vmem:[#allocation3 + $0xc0] sm:$0xff] %vm1763, %v1716
        %1789 = vst.msk [vmem:[#allocation3 + $0xc8] sm:$0xff] %vm1763, %v1718
        %1790 = vst.msk [vmem:[#allocation3 + $0xd0] sm:$0xff] %vm1763, %v1720
        %1791 = vst.msk [vmem:[#allocation3 + $0xd8] sm:$0xff] %vm1763, %v1722
        %1792 = vst.msk [vmem:[#allocation3 + $0xe0] sm:$0xff] %vm1763, %v1724
        %1793 = vst.msk [vmem:[#allocation3 + $0xe8] sm:$0xff] %vm1763, %v1726
        %1794 = vst.msk [vmem:[#allocation3 + $0xf0] sm:$0xff] %vm1763, %v1728
        %1795 = vst.msk [vmem:[#allocation3 + $0xf8] sm:$0xff] %vm1763, %v1730
        %v1796 = vld [vmem:[%s1409 + $0x2] sm:$0xff]
        %v1797 = vld [vmem:[%s1409 + $0xa] sm:$0xff]
        %v1798 = vld [vmem:[%s1409 + $0x1a] sm:$0xff]
        %v1799 = vld [vmem:[%s1409 + $0x22] sm:$0xff]
        %v1800 = vld [vmem:[%s1409 + $0x32] sm:$0xff]
        %v1801 = vld [vmem:[%s1409 + $0x3a] sm:$0xff]
        %v1802 = vld [vmem:[%s1409 + $0x4a] sm:$0xff]
        %v1803 = vld [vmem:[%s1409 + $0x52] sm:$0xff]
        %v1804 = vld [vmem:[%s1409 + $0x62] sm:$0xff]
        %v1805 = vld [vmem:[%s1409 + $0x6a] sm:$0xff]
        %v1806 = vld [vmem:[%s1409 + $0x7a] sm:$0xff]
        %v1807 = vld [vmem:[%s1409 + $0x82] sm:$0xff]
        %v1808 = vld [vmem:[%s1409 + $0x92] sm:$0xff]
        %v1809 = vld [vmem:[%s1409 + $0x9a] sm:$0xff]
        %v1810 = vld [vmem:[%s1409 + $0xaa] sm:$0xff]
        %v1811 = vld [vmem:[%s1409 + $0xb2] sm:$0xff]
        %v1812 = vld [vmem:[%s1409 + $0xc2] sm:$0xff]
        %v1813 = vld [vmem:[%s1409 + $0xca] sm:$0xff]
        %v1814 = vld [vmem:[%s1409 + $0xda] sm:$0xff]
        %v1815 = vld [vmem:[%s1409 + $0xe2] sm:$0xff]
        %v1816 = vld [vmem:[%s1409 + $0xf2] sm:$0xff]
        %v1817 = vld [vmem:[%s1409 + $0xfa] sm:$0xff]
        %v1818 = vld [vmem:[%s1409 + $0x10a] sm:$0xff]
        %v1819 = vld [vmem:[%s1409 + $0x112] sm:$0xff]
        %v1820 = vld [vmem:[%s1409 + $0x122] sm:$0xff]
        %v1821 = vld [vmem:[%s1409 + $0x12a] sm:$0xff]
        %v1822 = vld [vmem:[%s1409 + $0x13a] sm:$0xff]
        %v1823 = vld [vmem:[%s1409 + $0x142] sm:$0xff]
        %v1824 = vld [vmem:[%s1409 + $0x152] sm:$0xff]
        %v1825 = vld [vmem:[%s1409 + $0x15a] sm:$0xff]
        %v1826 = vld [vmem:[%s1409 + $0x16a] sm:$0xff]
        %v1827 = vld [vmem:[%s1409 + $0x172] sm:$0xff]
        %1860 = vrot.lane.b32.xlu0 %v1796, 32
        %v1861 = vpop.permute.xlu0 %1860
        %1862 = vrot.lane.b32.xlu0 %v1797, 32
        %v1863 = vpop.permute.xlu0 %1862
        %1864 = vrot.lane.b32.xlu0 %v1798, 32
        %v1865 = vpop.permute.xlu0 %1864
        %1866 = vrot.lane.b32.xlu0 %v1799, 32
        %v1867 = vpop.permute.xlu0 %1866
        %1868 = vrot.lane.b32.xlu0 %v1800, 32
        %v1869 = vpop.permute.xlu0 %1868
        %1870 = vrot.lane.b32.xlu0 %v1801, 32
        %v1871 = vpop.permute.xlu0 %1870
        %1872 = vrot.lane.b32.xlu0 %v1802, 32
        %v1873 = vpop.permute.xlu0 %1872
        %1874 = vrot.lane.b32.xlu0 %v1803, 32
        %v1875 = vpop.permute.xlu0 %1874
        %1876 = vrot.lane.b32.xlu0 %v1804, 32
        %v1877 = vpop.permute.xlu0 %1876
        %1878 = vrot.lane.b32.xlu0 %v1805, 32
        %v1879 = vpop.permute.xlu0 %1878
        %1880 = vrot.lane.b32.xlu0 %v1806, 32
        %v1881 = vpop.permute.xlu0 %1880
        %1882 = vrot.lane.b32.xlu0 %v1807, 32
        %v1883 = vpop.permute.xlu0 %1882
        %1884 = vrot.lane.b32.xlu0 %v1808, 32
        %v1885 = vpop.permute.xlu0 %1884
        %1886 = vrot.lane.b32.xlu0 %v1809, 32
        %v1887 = vpop.permute.xlu0 %1886
        %1888 = vrot.lane.b32.xlu0 %v1810, 32
        %v1889 = vpop.permute.xlu0 %1888
        %1890 = vrot.lane.b32.xlu0 %v1811, 32
        %v1891 = vpop.permute.xlu0 %1890
        %1892 = vrot.lane.b32.xlu0 %v1812, 32
        %v1893 = vpop.permute.xlu0 %1892
        %1894 = vrot.lane.b32.xlu0 %v1813, 32
        %v1895 = vpop.permute.xlu0 %1894
        %1896 = vrot.lane.b32.xlu0 %v1814, 32
        %v1897 = vpop.permute.xlu0 %1896
        %1898 = vrot.lane.b32.xlu0 %v1815, 32
        %v1899 = vpop.permute.xlu0 %1898
        %1900 = vrot.lane.b32.xlu0 %v1816, 32
        %v1901 = vpop.permute.xlu0 %1900
        %1902 = vrot.lane.b32.xlu0 %v1817, 32
        %v1903 = vpop.permute.xlu0 %1902
        %1904 = vrot.lane.b32.xlu0 %v1818, 32
        %v1905 = vpop.permute.xlu0 %1904
        %1906 = vrot.lane.b32.xlu0 %v1819, 32
        %v1907 = vpop.permute.xlu0 %1906
        %1908 = vrot.lane.b32.xlu0 %v1820, 32
        %v1909 = vpop.permute.xlu0 %1908
        %1910 = vrot.lane.b32.xlu0 %v1821, 32
        %v1911 = vpop.permute.xlu0 %1910
        %1912 = vrot.lane.b32.xlu0 %v1822, 32
        %v1913 = vpop.permute.xlu0 %1912
        %1914 = vrot.lane.b32.xlu0 %v1823, 32
        %v1915 = vpop.permute.xlu0 %1914
        %1916 = vrot.lane.b32.xlu0 %v1824, 32
        %v1917 = vpop.permute.xlu0 %1916
        %1918 = vrot.lane.b32.xlu0 %v1825, 32
        %v1919 = vpop.permute.xlu0 %1918
        %1920 = vrot.lane.b32.xlu0 %v1826, 32
        %v1921 = vpop.permute.xlu0 %1920
        %1922 = vrot.lane.b32.xlu0 %v1827, 32
        %v1923 = vpop.permute.xlu0 %1922
        %vm1956 = vcmask 294144
        %1957 = vst.msk [vmem:[#allocation3] sm:$0xff] %vm1956, %v1861
        %1958 = vst.msk [vmem:[#allocation3 + $0x8] sm:$0xff] %vm1956, %v1863
        %1959 = vst.msk [vmem:[#allocation3 + $0x10] sm:$0xff] %vm1956, %v1865
        %1960 = vst.msk [vmem:[#allocation3 + $0x18] sm:$0xff] %vm1956, %v1867
        %1961 = vst.msk [vmem:[#allocation3 + $0x20] sm:$0xff] %vm1956, %v1869
        %1962 = vst.msk [vmem:[#allocation3 + $0x28] sm:$0xff] %vm1956, %v1871
        %1963 = vst.msk [vmem:[#allocation3 + $0x30] sm:$0xff] %vm1956, %v1873
        %1964 = vst.msk [vmem:[#allocation3 + $0x38] sm:$0xff] %vm1956, %v1875
        %1965 = vst.msk [vmem:[#allocation3 + $0x40] sm:$0xff] %vm1956, %v1877
        %1966 = vst.msk [vmem:[#allocation3 + $0x48] sm:$0xff] %vm1956, %v1879
        %1967 = vst.msk [vmem:[#allocation3 + $0x50] sm:$0xff] %vm1956, %v1881
        %1968 = vst.msk [vmem:[#allocation3 + $0x58] sm:$0xff] %vm1956, %v1883
        %1969 = vst.msk [vmem:[#allocation3 + $0x60] sm:$0xff] %vm1956, %v1885
        %1970 = vst.msk [vmem:[#allocation3 + $0x68] sm:$0xff] %vm1956, %v1887
        %1971 = vst.msk [vmem:[#allocation3 + $0x70] sm:$0xff] %vm1956, %v1889
        %1972 = vst.msk [vmem:[#allocation3 + $0x78] sm:$0xff] %vm1956, %v1891
        %1973 = vst.msk [vmem:[#allocation3 + $0x80] sm:$0xff] %vm1956, %v1893
        %1974 = vst.msk [vmem:[#allocation3 + $0x88] sm:$0xff] %vm1956, %v1895
        %1975 = vst.msk [vmem:[#allocation3 + $0x90] sm:$0xff] %vm1956, %v1897
        %1976 = vst.msk [vmem:[#allocation3 + $0x98] sm:$0xff] %vm1956, %v1899
        %1977 = vst.msk [vmem:[#allocation3 + $0xa0] sm:$0xff] %vm1956, %v1901
        %1978 = vst.msk [vmem:[#allocation3 + $0xa8] sm:$0xff] %vm1956, %v1903
        %1979 = vst.msk [vmem:[#allocation3 + $0xb0] sm:$0xff] %vm1956, %v1905
        %1980 = vst.msk [vmem:[#allocation3 + $0xb8] sm:$0xff] %vm1956, %v1907
        %1981 = vst.msk [vmem:[#allocation3 + $0xc0] sm:$0xff] %vm1956, %v1909
        %1982 = vst.msk [vmem:[#allocation3 + $0xc8] sm:$0xff] %vm1956, %v1911
        %1983 = vst.msk [vmem:[#allocation3 + $0xd0] sm:$0xff] %vm1956, %v1913
        %1984 = vst.msk [vmem:[#allocation3 + $0xd8] sm:$0xff] %vm1956, %v1915
        %1985 = vst.msk [vmem:[#allocation3 + $0xe0] sm:$0xff] %vm1956, %v1917
        %1986 = vst.msk [vmem:[#allocation3 + $0xe8] sm:$0xff] %vm1956, %v1919
        %1987 = vst.msk [vmem:[#allocation3 + $0xf0] sm:$0xff] %vm1956, %v1921
        %1988 = vst.msk [vmem:[#allocation3 + $0xf8] sm:$0xff] %vm1956, %v1923
        %v1989 = vld [vmem:[#allocation3] sm:$0xff]
        %v1990 = vld [vmem:[#allocation3 + $0x8] sm:$0xff]
        %v1991 = vld [vmem:[#allocation3 + $0x10] sm:$0xff]
        %v1992 = vld [vmem:[#allocation3 + $0x18] sm:$0xff]
        %v1993 = vld [vmem:[#allocation3 + $0x20] sm:$0xff]
        %v1994 = vld [vmem:[#allocation3 + $0x28] sm:$0xff]
        %v1995 = vld [vmem:[#allocation3 + $0x30] sm:$0xff]
        %v1996 = vld [vmem:[#allocation3 + $0x38] sm:$0xff]
        %v1997 = vld [vmem:[#allocation3 + $0x40] sm:$0xff]
        %v1998 = vld [vmem:[#allocation3 + $0x48] sm:$0xff]
        %v1999 = vld [vmem:[#allocation3 + $0x50] sm:$0xff]
        %v2000 = vld [vmem:[#allocation3 + $0x58] sm:$0xff]
        %v2001 = vld [vmem:[#allocation3 + $0x60] sm:$0xff]
        %v2002 = vld [vmem:[#allocation3 + $0x68] sm:$0xff]
        %v2003 = vld [vmem:[#allocation3 + $0x70] sm:$0xff]
        %v2004 = vld [vmem:[#allocation3 + $0x78] sm:$0xff]
        %v2005 = vld [vmem:[#allocation3 + $0x80] sm:$0xff]
        %v2006 = vld [vmem:[#allocation3 + $0x88] sm:$0xff]
        %v2007 = vld [vmem:[#allocation3 + $0x90] sm:$0xff]
        %v2008 = vld [vmem:[#allocation3 + $0x98] sm:$0xff]
        %v2009 = vld [vmem:[#allocation3 + $0xa0] sm:$0xff]
        %v2010 = vld [vmem:[#allocation3 + $0xa8] sm:$0xff]
        %v2011 = vld [vmem:[#allocation3 + $0xb0] sm:$0xff]
        %v2012 = vld [vmem:[#allocation3 + $0xb8] sm:$0xff]
        %v2013 = vld [vmem:[#allocation3 + $0xc0] sm:$0xff]
        %v2014 = vld [vmem:[#allocation3 + $0xc8] sm:$0xff]
        %v2015 = vld [vmem:[#allocation3 + $0xd0] sm:$0xff]
        %v2016 = vld [vmem:[#allocation3 + $0xd8] sm:$0xff]
        %v2017 = vld [vmem:[#allocation3 + $0xe0] sm:$0xff]
        %v2018 = vld [vmem:[#allocation3 + $0xe8] sm:$0xff]
        %v2019 = vld [vmem:[#allocation3 + $0xf0] sm:$0xff]
        %v2020 = vld [vmem:[#allocation3 + $0xf8] sm:$0xff]
        %v2021 = vld [vmem:[%s1] sm:$0xff]
        %v2022 = vld [vmem:[%s1 + $0x8] sm:$0xff]
        %v2023 = vld [vmem:[%s1 + $0x10] sm:$0xff]
        %v2024 = vld [vmem:[%s1 + $0x18] sm:$0xff]
        %v2025 = vld [vmem:[%s1 + $0x20] sm:$0xf]
        %v2026 = vld [vmem:[%s2] sm:$0x1]
        %v2028 = vlaneseq
        %v2029 = vshrl.u32 %v2028, 7
        %v2030 = vsub.s32 0, %v2029
        %v2031 = vrot.slane %v2026, %v2030
        %vm2033 = vcmask 293888
        %v2035 = vsel %vm2033, %v1989, 0
        %v2038 = vsel %vm2033, %v1990, 0
        %v2041 = vsel %vm2033, %v1991, 0
        %v2044 = vsel %vm2033, %v1992, 0
        %v2047 = vsel %vm2033, %v1993, 0
        %v2050 = vsel %vm2033, %v1994, 0
        %v2053 = vsel %vm2033, %v1995, 0
        %v2056 = vsel %vm2033, %v1996, 0
        %v2059 = vsel %vm2033, %v1997, 0
        %v2062 = vsel %vm2033, %v1998, 0
        %v2065 = vsel %vm2033, %v1999, 0
        %v2068 = vsel %vm2033, %v2000, 0
        %v2071 = vsel %vm2033, %v2001, 0
        %v2074 = vsel %vm2033, %v2002, 0
        %v2077 = vsel %vm2033, %v2003, 0
        %v2080 = vsel %vm2033, %v2004, 0
        %v2083 = vsel %vm2033, %v2005, 0
        %v2086 = vsel %vm2033, %v2006, 0
        %v2089 = vsel %vm2033, %v2007, 0
        %v2092 = vsel %vm2033, %v2008, 0
        %v2095 = vsel %vm2033, %v2009, 0
        %v2098 = vsel %vm2033, %v2010, 0
        %v2101 = vsel %vm2033, %v2011, 0
        %v2104 = vsel %vm2033, %v2012, 0
        %v2107 = vsel %vm2033, %v2013, 0
        %v2110 = vsel %vm2033, %v2014, 0
        %v2113 = vsel %vm2033, %v2015, 0
        %v2116 = vsel %vm2033, %v2016, 0
        %v2119 = vsel %vm2033, %v2017, 0
        %v2122 = vsel %vm2033, %v2018, 0
        %v2125 = vsel %vm2033, %v2019, 0
        %v2128 = vsel %vm2033, %v2020, 0
        %vm2130 = vcmask 1043456
        %v2132 = vsel %vm2130, %v2025, 0
        %2134 = vmatprep.subr.mxu0 0.0
        %2135 = vmatpush1.msra.mxu0 %v2021
        %2136 = vmatprep.subr.mxu0 0.0
        %2137 = vmatpush1.msra.mxu0 %v2022
        %2138 = vmatprep.subr.mxu0 0.0
        %2139 = vmatpush1.msra.mxu0 %v2023
        %2140 = vmatprep.subr.mxu0 0.0
        %2141 = vmatpush1.msra.mxu0 %v2024
        %2142 = vmatprep.subr.mxu0 0.0
        %2143 = vmatpush1.msra.mxu0 %v2132
        %2144 = vmatprep.subr.mxu0 0.0
        %2145 = vmatpush1.msra.mxu0 0.0
        %2146 = vmatprep.subr.mxu0 0.0
        %2147 = vmatpush1.msra.mxu0 0.0
        %2148 = vmatprep.subr.mxu0 0.0
        %2149 = vmatpush1.msra.mxu0 0.0
        %2150 = vmatprep.subr.mxu0 0.0
        %2151 = vmatpush1.msra.mxu0 0.0
        %2152 = vmatprep.subr.mxu0 0.0
        %2153 = vmatpush1.msra.mxu0 0.0
        %2154 = vmatprep.subr.mxu0 0.0
        %2155 = vmatpush1.msra.mxu0 0.0
        %2156 = vmatprep.subr.mxu0 0.0
        %2157 = vmatpush1.msra.mxu0 0.0
        %2158 = vmatprep.subr.mxu0 0.0
        %2159 = vmatpush1.msra.mxu0 0.0
        %2160 = vmatprep.subr.mxu0 0.0
        %2161 = vmatpush1.msra.mxu0 0.0
        %2162 = vmatprep.subr.mxu0 0.0
        %2163 = vmatpush1.msra.mxu0 0.0
        %2164 = vmatprep.subr.mxu0 0.0
        %2165 = vmatpush1.msra.mxu0 0.0
        %2166 = vmatprep.subr.mxu0 0.0
        %2167 = vmatpush1.msra.mxu0 0.0
        %2168 = vmatprep.subr.mxu0 0.0
        %2169 = vmatpush1.msra.mxu0 0.0
        %2170 = vmatprep.subr.mxu0 0.0
        %2171 = vmatpush1.msra.mxu0 0.0
        %2172 = vmatprep.subr.mxu0 0.0
        %2173 = vmatpush1.msra.mxu0 0.0
        %2174 = vmatprep.subr.mxu0 0.0
        %2175 = vmatpush1.msra.mxu0 0.0
        %2176 = vmatprep.subr.mxu0 0.0
        %2177 = vmatpush1.msra.mxu0 0.0
        %2178 = vmatprep.subr.mxu0 0.0
        %2179 = vmatpush1.msra.mxu0 0.0
        %2180 = vmatprep.subr.mxu0 0.0
        %2181 = vmatpush1.msra.mxu0 0.0
        %2182 = vmatprep.subr.mxu0 0.0
        %2183 = vmatpush1.msra.mxu0 0.0
        %2184 = vmatprep.subr.mxu0 0.0
        %2185 = vmatpush1.msra.mxu0 0.0
        %2186 = vmatprep.subr.mxu0 0.0
        %2187 = vmatpush1.msra.mxu0 0.0
        %2188 = vmatprep.subr.mxu0 0.0
        %2189 = vmatpush1.msra.mxu0 0.0
        %2190 = vmatprep.subr.mxu0 0.0
        %2191 = vmatpush1.msra.mxu0 0.0
        %2192 = vmatprep.subr.mxu0 0.0
        %2193 = vmatpush1.msra.mxu0 0.0
        %2194 = vmatprep.subr.mxu0 0.0
        %2195 = vmatpush1.msra.mxu0 0.0
        %2196 = vmatprep.subr.mxu0 0.0
        %2197 = vmatpush1.msra.mxu0 0.0
        %2198 = vmatprep.mubr.f32.mxu0 0.0
        %2199 = vmatmul.mubr.f32.gmra.mrb[0].mxu0 %v2035
        %v2200 = vpop.f32.mrb[0].mxu0
        %v2201 = vadd.f32 %v2031, %v2200
        %v2202 = vpop.f32.mrb[0].mxu0
        %2203 = vmatprep.mubr.f32.mxu0 0.0
        %2204 = vmatmul.mubr.f32.gmra.mrb[0].mxu0 %v2038
        %v2205 = vpop.f32.mrb[0].mxu0
        %v2206 = vadd.f32 %v2031, %v2205
        %v2207 = vpop.f32.mrb[0].mxu0
        %2208 = vmatprep.mubr.f32.mxu0 0.0
        %2209 = vmatmul.mubr.f32.gmra.mrb[0].mxu0 %v2041
        %v2210 = vpop.f32.mrb[0].mxu0
        %v2211 = vadd.f32 %v2031, %v2210
        %v2212 = vpop.f32.mrb[0].mxu0
        %2213 = vmatprep.mubr.f32.mxu0 0.0
        %2214 = vmatmul.mubr.f32.gmra.mrb[0].mxu0 %v2044
        %v2215 = vpop.f32.mrb[0].mxu0
        %v2216 = vadd.f32 %v2031, %v2215
        %v2217 = vpop.f32.mrb[0].mxu0
        %2218 = vmatprep.mubr.f32.mxu0 0.0
        %2219 = vmatmul.mubr.f32.gmra.mrb[0].mxu0 %v2047
        %v2220 = vpop.f32.mrb[0].mxu0
        %v2221 = vadd.f32 %v2031, %v2220
        %v2222 = vpop.f32.mrb[0].mxu0
        %2223 = vmatprep.mubr.f32.mxu0 0.0
        %2224 = vmatmul.mubr.f32.gmra.mrb[0].mxu0 %v2050
        %v2225 = vpop.f32.mrb[0].mxu0
        %v2226 = vadd.f32 %v2031, %v2225
        %v2227 = vpop.f32.mrb[0].mxu0
        %2228 = vmatprep.mubr.f32.mxu0 0.0
        %2229 = vmatmul.mubr.f32.gmra.mrb[0].mxu0 %v2053
        %v2230 = vpop.f32.mrb[0].mxu0
        %v2231 = vadd.f32 %v2031, %v2230
        %v2232 = vpop.f32.mrb[0].mxu0
        %2233 = vmatprep.mubr.f32.mxu0 0.0
        %2234 = vmatmul.mubr.f32.gmra.mrb[0].mxu0 %v2056
        %v2235 = vpop.f32.mrb[0].mxu0
        %v2236 = vadd.f32 %v2031, %v2235
        %v2237 = vpop.f32.mrb[0].mxu0
        %2238 = vmatprep.mubr.f32.mxu0 0.0
        %2239 = vmatmul.mubr.f32.gmra.mrb[0].mxu0 %v2059
        %v2240 = vpop.f32.mrb[0].mxu0
        %v2241 = vadd.f32 %v2031, %v2240
        %v2242 = vpop.f32.mrb[0].mxu0
        %2243 = vmatprep.mubr.f32.mxu0 0.0
        %2244 = vmatmul.mubr.f32.gmra.mrb[0].mxu0 %v2062
        %v2245 = vpop.f32.mrb[0].mxu0
        %v2246 = vadd.f32 %v2031, %v2245
        %v2247 = vpop.f32.mrb[0].mxu0
        %2248 = vmatprep.mubr.f32.mxu0 0.0
        %2249 = vmatmul.mubr.f32.gmra.mrb[0].mxu0 %v2065
        %v2250 = vpop.f32.mrb[0].mxu0
        %v2251 = vadd.f32 %v2031, %v2250
        %v2252 = vpop.f32.mrb[0].mxu0
        %2253 = vmatprep.mubr.f32.mxu0 0.0
        %2254 = vmatmul.mubr.f32.gmra.mrb[0].mxu0 %v2068
        %v2255 = vpop.f32.mrb[0].mxu0
        %v2256 = vadd.f32 %v2031, %v2255
        %v2257 = vpop.f32.mrb[0].mxu0
        %2258 = vmatprep.mubr.f32.mxu0 0.0
        %2259 = vmatmul.mubr.f32.gmra.mrb[0].mxu0 %v2071
        %v2260 = vpop.f32.mrb[0].mxu0
        %v2261 = vadd.f32 %v2031, %v2260
        %v2262 = vpop.f32.mrb[0].mxu0
        %2263 = vmatprep.mubr.f32.mxu0 0.0
        %2264 = vmatmul.mubr.f32.gmra.mrb[0].mxu0 %v2074
        %v2265 = vpop.f32.mrb[0].mxu0
        %v2266 = vadd.f32 %v2031, %v2265
        %v2267 = vpop.f32.mrb[0].mxu0
        %2268 = vmatprep.mubr.f32.mxu0 0.0
        %2269 = vmatmul.mubr.f32.gmra.mrb[0].mxu0 %v2077
        %v2270 = vpop.f32.mrb[0].mxu0
        %v2271 = vadd.f32 %v2031, %v2270
        %v2272 = vpop.f32.mrb[0].mxu0
        %2273 = vmatprep.mubr.f32.mxu0 0.0
        %2274 = vmatmul.mubr.f32.gmra.mrb[0].mxu0 %v2080
        %v2275 = vpop.f32.mrb[0].mxu0
        %v2276 = vadd.f32 %v2031, %v2275
        %v2277 = vpop.f32.mrb[0].mxu0
        %2278 = vmatprep.mubr.f32.mxu0 0.0
        %2279 = vmatmul.mubr.f32.gmra.mrb[0].mxu0 %v2083
        %v2280 = vpop.f32.mrb[0].mxu0
        %v2281 = vadd.f32 %v2031, %v2280
        %v2282 = vpop.f32.mrb[0].mxu0
        %2283 = vmatprep.mubr.f32.mxu0 0.0
        %2284 = vmatmul.mubr.f32.gmra.mrb[0].mxu0 %v2086
        %v2285 = vpop.f32.mrb[0].mxu0
        %v2286 = vadd.f32 %v2031, %v2285
        %v2287 = vpop.f32.mrb[0].mxu0
        %2288 = vmatprep.mubr.f32.mxu0 0.0
        %2289 = vmatmul.mubr.f32.gmra.mrb[0].mxu0 %v2089
        %v2290 = vpop.f32.mrb[0].mxu0
        %v2291 = vadd.f32 %v2031, %v2290
        %v2292 = vpop.f32.mrb[0].mxu0
        %2293 = vmatprep.mubr.f32.mxu0 0.0
        %2294 = vmatmul.mubr.f32.gmra.mrb[0].mxu0 %v2092
        %v2295 = vpop.f32.mrb[0].mxu0
        %v2296 = vadd.f32 %v2031, %v2295
        %v2297 = vpop.f32.mrb[0].mxu0
        %2298 = vmatprep.mubr.f32.mxu0 0.0
        %2299 = vmatmul.mubr.f32.gmra.mrb[0].mxu0 %v2095
        %v2300 = vpop.f32.mrb[0].mxu0
        %v2301 = vadd.f32 %v2031, %v2300
        %v2302 = vpop.f32.mrb[0].mxu0
        %2303 = vmatprep.mubr.f32.mxu0 0.0
        %2304 = vmatmul.mubr.f32.gmra.mrb[0].mxu0 %v2098
        %v2305 = vpop.f32.mrb[0].mxu0
        %v2306 = vadd.f32 %v2031, %v2305
        %v2307 = vpop.f32.mrb[0].mxu0
        %2308 = vmatprep.mubr.f32.mxu0 0.0
        %2309 = vmatmul.mubr.f32.gmra.mrb[0].mxu0 %v2101
        %v2310 = vpop.f32.mrb[0].mxu0
        %v2311 = vadd.f32 %v2031, %v2310
        %v2312 = vpop.f32.mrb[0].mxu0
        %2313 = vmatprep.mubr.f32.mxu0 0.0
        %2314 = vmatmul.mubr.f32.gmra.mrb[0].mxu0 %v2104
        %v2315 = vpop.f32.mrb[0].mxu0
        %v2316 = vadd.f32 %v2031, %v2315
        %v2317 = vpop.f32.mrb[0].mxu0
        %2318 = vmatprep.mubr.f32.mxu0 0.0
        %2319 = vmatmul.mubr.f32.gmra.mrb[0].mxu0 %v2107
        %v2320 = vpop.f32.mrb[0].mxu0
        %v2321 = vadd.f32 %v2031, %v2320
        %v2322 = vpop.f32.mrb[0].mxu0
        %2323 = vmatprep.mubr.f32.mxu0 0.0
        %2324 = vmatmul.mubr.f32.gmra.mrb[0].mxu0 %v2110
        %v2325 = vpop.f32.mrb[0].mxu0
        %v2326 = vadd.f32 %v2031, %v2325
        %v2327 = vpop.f32.mrb[0].mxu0
        %2328 = vmatprep.mubr.f32.mxu0 0.0
        %2329 = vmatmul.mubr.f32.gmra.mrb[0].mxu0 %v2113
        %v2330 = vpop.f32.mrb[0].mxu0
        %v2331 = vadd.f32 %v2031, %v2330
        %v2332 = vpop.f32.mrb[0].mxu0
        %2333 = vmatprep.mubr.f32.mxu0 0.0
        %2334 = vmatmul.mubr.f32.gmra.mrb[0].mxu0 %v2116
        %v2335 = vpop.f32.mrb[0].mxu0
        %v2336 = vadd.f32 %v2031, %v2335
        %v2337 = vpop.f32.mrb[0].mxu0
        %2338 = vmatprep.mubr.f32.mxu0 0.0
        %2339 = vmatmul.mubr.f32.gmra.mrb[0].mxu0 %v2119
        %v2340 = vpop.f32.mrb[0].mxu0
        %v2341 = vadd.f32 %v2031, %v2340
        %v2342 = vpop.f32.mrb[0].mxu0
        %2343 = vmatprep.mubr.f32.mxu0 0.0
        %2344 = vmatmul.mubr.f32.gmra.mrb[0].mxu0 %v2122
        %v2345 = vpop.f32.mrb[0].mxu0
        %v2346 = vadd.f32 %v2031, %v2345
        %v2347 = vpop.f32.mrb[0].mxu0
        %2348 = vmatprep.mubr.f32.mxu0 0.0
        %2349 = vmatmul.mubr.f32.gmra.mrb[0].mxu0 %v2125
        %v2350 = vpop.f32.mrb[0].mxu0
        %v2351 = vadd.f32 %v2031, %v2350
        %v2352 = vpop.f32.mrb[0].mxu0
        %2353 = vmatprep.mubr.f32.mxu0 0.0
        %2354 = vmatmul.mubr.f32.gmra.mrb[0].mxu0 %v2128
        %v2355 = vpop.f32.mrb[0].mxu0
        %v2356 = vadd.f32 %v2031, %v2355
        %v2357 = vpop.f32.mrb[0].mxu0
        %2358 = vdwg.mxu0
        %v2359 = vmax.f32 %v2201, 0.0
        %v2360 = vmax.f32 %v2206, 0.0
        %v2361 = vmax.f32 %v2211, 0.0
        %v2362 = vmax.f32 %v2216, 0.0
        %v2363 = vmax.f32 %v2221, 0.0
        %v2364 = vmax.f32 %v2226, 0.0
        %v2365 = vmax.f32 %v2231, 0.0
        %v2366 = vmax.f32 %v2236, 0.0
        %v2367 = vmax.f32 %v2241, 0.0
        %v2368 = vmax.f32 %v2246, 0.0
        %v2369 = vmax.f32 %v2251, 0.0
        %v2370 = vmax.f32 %v2256, 0.0
        %v2371 = vmax.f32 %v2261, 0.0
        %v2372 = vmax.f32 %v2266, 0.0
        %v2373 = vmax.f32 %v2271, 0.0
        %v2374 = vmax.f32 %v2276, 0.0
        %v2375 = vmax.f32 %v2281, 0.0
        %v2376 = vmax.f32 %v2286, 0.0
        %v2377 = vmax.f32 %v2291, 0.0
        %v2378 = vmax.f32 %v2296, 0.0
        %v2379 = vmax.f32 %v2301, 0.0
        %v2380 = vmax.f32 %v2306, 0.0
        %v2381 = vmax.f32 %v2311, 0.0
        %v2382 = vmax.f32 %v2316, 0.0
        %v2383 = vmax.f32 %v2321, 0.0
        %v2384 = vmax.f32 %v2326, 0.0
        %v2385 = vmax.f32 %v2331, 0.0
        %v2386 = vmax.f32 %v2336, 0.0
        %v2387 = vmax.f32 %v2341, 0.0
        %v2388 = vmax.f32 %v2346, 0.0
        %v2389 = vmax.f32 %v2351, 0.0
        %v2390 = vmax.f32 %v2356, 0.0
        %2391 = vst.msk [vmem:[%s347 + $0x1] sm:$0xff] %vm291, %v2359
        %2392 = vst.msk [vmem:[%s347 + $0x9] sm:$0xff] %vm291, %v2360
        %2393 = vst.msk [vmem:[%s347 + $0x19] sm:$0xff] %vm291, %v2361
        %2394 = vst.msk [vmem:[%s347 + $0x21] sm:$0xff] %vm291, %v2362
        %2395 = vst.msk [vmem:[%s347 + $0x31] sm:$0xff] %vm291, %v2363
        %2396 = vst.msk [vmem:[%s347 + $0x39] sm:$0xff] %vm291, %v2364
        %2397 = vst.msk [vmem:[%s347 + $0x49] sm:$0xff] %vm291, %v2365
        %2398 = vst.msk [vmem:[%s347 + $0x51] sm:$0xff] %vm291, %v2366
        %2399 = vst.msk [vmem:[%s347 + $0x61] sm:$0xff] %vm291, %v2367
        %2400 = vst.msk [vmem:[%s347 + $0x69] sm:$0xff] %vm291, %v2368
        %2401 = vst.msk [vmem:[%s347 + $0x79] sm:$0xff] %vm291, %v2369
        %2402 = vst.msk [vmem:[%s347 + $0x81] sm:$0xff] %vm291, %v2370
        %2403 = vst.msk [vmem:[%s347 + $0x91] sm:$0xff] %vm291, %v2371
        %2404 = vst.msk [vmem:[%s347 + $0x99] sm:$0xff] %vm291, %v2372
        %2405 = vst.msk [vmem:[%s347 + $0xa9] sm:$0xff] %vm291, %v2373
        %2406 = vst.msk [vmem:[%s347 + $0xb1] sm:$0xff] %vm291, %v2374
        %2407 = vst.msk [vmem:[%s347 + $0xc1] sm:$0xff] %vm291, %v2375
        %2408 = vst.msk [vmem:[%s347 + $0xc9] sm:$0xff] %vm291, %v2376
        %2409 = vst.msk [vmem:[%s347 + $0xd9] sm:$0xff] %vm291, %v2377
        %2410 = vst.msk [vmem:[%s347 + $0xe1] sm:$0xff] %vm291, %v2378
        %2411 = vst.msk [vmem:[%s347 + $0xf1] sm:$0xff] %vm291, %v2379
        %2412 = vst.msk [vmem:[%s347 + $0xf9] sm:$0xff] %vm291, %v2380
        %2413 = vst.msk [vmem:[%s347 + $0x109] sm:$0xff] %vm291, %v2381
        %2414 = vst.msk [vmem:[%s347 + $0x111] sm:$0xff] %vm291, %v2382
        %2415 = vst.msk [vmem:[%s347 + $0x121] sm:$0xff] %vm291, %v2383
        %2416 = vst.msk [vmem:[%s347 + $0x129] sm:$0xff] %vm291, %v2384
        %2417 = vst.msk [vmem:[%s347 + $0x139] sm:$0xff] %vm291, %v2385
        %2418 = vst.msk [vmem:[%s347 + $0x141] sm:$0xff] %vm291, %v2386
        %2419 = vst.msk [vmem:[%s347 + $0x151] sm:$0xff] %vm291, %v2387
        %2420 = vst.msk [vmem:[%s347 + $0x159] sm:$0xff] %vm291, %v2388
        %2421 = vst.msk [vmem:[%s347 + $0x169] sm:$0xff] %vm291, %v2389
        %2422 = vst.msk [vmem:[%s347 + $0x171] sm:$0xff] %vm291, %v2390
        %v2423 = vld [vmem:[#allocation2] sm:$0xff]
        %v2424 = vld [vmem:[#allocation2 + $0x8] sm:$0xff]
        %v2425 = vld [vmem:[#allocation2 + $0x18] sm:$0xff]
        %v2426 = vld [vmem:[#allocation2 + $0x20] sm:$0xff]
        %v2427 = vld [vmem:[#allocation2 + $0x30] sm:$0xff]
        %v2428 = vld [vmem:[#allocation2 + $0x38] sm:$0xff]
        %v2429 = vld [vmem:[#allocation2 + $0x48] sm:$0xff]
        %v2430 = vld [vmem:[#allocation2 + $0x50] sm:$0xff]
        %v2431 = vld [vmem:[#allocation2 + $0x60] sm:$0xff]
        %v2432 = vld [vmem:[#allocation2 + $0x68] sm:$0xff]
        %v2433 = vld [vmem:[#allocation2 + $0x78] sm:$0xff]
        %v2434 = vld [vmem:[#allocation2 + $0x80] sm:$0xff]
        %v2435 = vld [vmem:[#allocation2 + $0x90] sm:$0xff]
        %v2436 = vld [vmem:[#allocation2 + $0x98] sm:$0xff]
        %v2437 = vld [vmem:[#allocation2 + $0xa8] sm:$0xff]
        %v2438 = vld [vmem:[#allocation2 + $0xb0] sm:$0xff]
        %v2439 = vld [vmem:[#allocation2 + $0xc0] sm:$0xff]
        %v2440 = vld [vmem:[#allocation2 + $0xc8] sm:$0xff]
        %v2441 = vld [vmem:[#allocation2 + $0xd8] sm:$0xff]
        %v2442 = vld [vmem:[#allocation2 + $0xe0] sm:$0xff]
        %v2443 = vld [vmem:[#allocation2 + $0xf0] sm:$0xff]
        %v2444 = vld [vmem:[#allocation2 + $0xf8] sm:$0xff]
        %v2445 = vld [vmem:[#allocation2 + $0x108] sm:$0xff]
        %v2446 = vld [vmem:[#allocation2 + $0x110] sm:$0xff]
        %v2447 = vld [vmem:[#allocation2 + $0x120] sm:$0xff]
        %v2448 = vld [vmem:[#allocation2 + $0x128] sm:$0xff]
        %v2449 = vld [vmem:[#allocation2 + $0x138] sm:$0xff]
        %v2450 = vld [vmem:[#allocation2 + $0x140] sm:$0xff]
        %v2451 = vld [vmem:[#allocation2 + $0x150] sm:$0xff]
        %v2452 = vld [vmem:[#allocation2 + $0x158] sm:$0xff]
        %v2453 = vld [vmem:[#allocation2 + $0x168] sm:$0xff]
        %v2454 = vld [vmem:[#allocation2 + $0x170] sm:$0xff]
        %2455 = vst.msk [vmem:[#allocation3] sm:$0xff] %vm291, %v2423
        %2456 = vst.msk [vmem:[#allocation3 + $0x8] sm:$0xff] %vm291, %v2424
        %2457 = vst.msk [vmem:[#allocation3 + $0x10] sm:$0xff] %vm291, %v2425
        %2458 = vst.msk [vmem:[#allocation3 + $0x18] sm:$0xff] %vm291, %v2426
        %2459 = vst.msk [vmem:[#allocation3 + $0x20] sm:$0xff] %vm291, %v2427
        %2460 = vst.msk [vmem:[#allocation3 + $0x28] sm:$0xff] %vm291, %v2428
        %2461 = vst.msk [vmem:[#allocation3 + $0x30] sm:$0xff] %vm291, %v2429
        %2462 = vst.msk [vmem:[#allocation3 + $0x38] sm:$0xff] %vm291, %v2430
        %2463 = vst.msk [vmem:[#allocation3 + $0x40] sm:$0xff] %vm291, %v2431
        %2464 = vst.msk [vmem:[#allocation3 + $0x48] sm:$0xff] %vm291, %v2432
        %2465 = vst.msk [vmem:[#allocation3 + $0x50] sm:$0xff] %vm291, %v2433
        %2466 = vst.msk [vmem:[#allocation3 + $0x58] sm:$0xff] %vm291, %v2434
        %2467 = vst.msk [vmem:[#allocation3 + $0x60] sm:$0xff] %vm291, %v2435
        %2468 = vst.msk [vmem:[#allocation3 + $0x68] sm:$0xff] %vm291, %v2436
        %2469 = vst.msk [vmem:[#allocation3 + $0x70] sm:$0xff] %vm291, %v2437
        %2470 = vst.msk [vmem:[#allocation3 + $0x78] sm:$0xff] %vm291, %v2438
        %2471 = vst.msk [vmem:[#allocation3 + $0x80] sm:$0xff] %vm291, %v2439
        %2472 = vst.msk [vmem:[#allocation3 + $0x88] sm:$0xff] %vm291, %v2440
        %2473 = vst.msk [vmem:[#allocation3 + $0x90] sm:$0xff] %vm291, %v2441
        %2474 = vst.msk [vmem:[#allocation3 + $0x98] sm:$0xff] %vm291, %v2442
        %2475 = vst.msk [vmem:[#allocation3 + $0xa0] sm:$0xff] %vm291, %v2443
        %2476 = vst.msk [vmem:[#allocation3 + $0xa8] sm:$0xff] %vm291, %v2444
        %2477 = vst.msk [vmem:[#allocation3 + $0xb0] sm:$0xff] %vm291, %v2445
        %2478 = vst.msk [vmem:[#allocation3 + $0xb8] sm:$0xff] %vm291, %v2446
        %2479 = vst.msk [vmem:[#allocation3 + $0xc0] sm:$0xff] %vm291, %v2447
        %2480 = vst.msk [vmem:[#allocation3 + $0xc8] sm:$0xff] %vm291, %v2448
        %2481 = vst.msk [vmem:[#allocation3 + $0xd0] sm:$0xff] %vm291, %v2449
        %2482 = vst.msk [vmem:[#allocation3 + $0xd8] sm:$0xff] %vm291, %v2450
        %2483 = vst.msk [vmem:[#allocation3 + $0xe0] sm:$0xff] %vm291, %v2451
        %2484 = vst.msk [vmem:[#allocation3 + $0xe8] sm:$0xff] %vm291, %v2452
        %2485 = vst.msk [vmem:[#allocation3 + $0xf0] sm:$0xff] %vm291, %v2453
        %2486 = vst.msk [vmem:[#allocation3 + $0xf8] sm:$0xff] %vm291, %v2454
        %v2487 = vld [vmem:[#allocation2 + $0x1] sm:$0xff]
        %v2488 = vld [vmem:[#allocation2 + $0x9] sm:$0xff]
        %v2489 = vld [vmem:[#allocation2 + $0x19] sm:$0xff]
        %v2490 = vld [vmem:[#allocation2 + $0x21] sm:$0xff]
        %v2491 = vld [vmem:[#allocation2 + $0x31] sm:$0xff]
        %v2492 = vld [vmem:[#allocation2 + $0x39] sm:$0xff]
        %v2493 = vld [vmem:[#allocation2 + $0x49] sm:$0xff]
        %v2494 = vld [vmem:[#allocation2 + $0x51] sm:$0xff]
        %v2495 = vld [vmem:[#allocation2 + $0x61] sm:$0xff]
        %v2496 = vld [vmem:[#allocation2 + $0x69] sm:$0xff]
        %v2497 = vld [vmem:[#allocation2 + $0x79] sm:$0xff]
        %v2498 = vld [vmem:[#allocation2 + $0x81] sm:$0xff]
        %v2499 = vld [vmem:[#allocation2 + $0x91] sm:$0xff]
        %v2500 = vld [vmem:[#allocation2 + $0x99] sm:$0xff]
        %v2501 = vld [vmem:[#allocation2 + $0xa9] sm:$0xff]
        %v2502 = vld [vmem:[#allocation2 + $0xb1] sm:$0xff]
        %v2503 = vld [vmem:[#allocation2 + $0xc1] sm:$0xff]
        %v2504 = vld [vmem:[#allocation2 + $0xc9] sm:$0xff]
        %v2505 = vld [vmem:[#allocation2 + $0xd9] sm:$0xff]
        %v2506 = vld [vmem:[#allocation2 + $0xe1] sm:$0xff]
        %v2507 = vld [vmem:[#allocation2 + $0xf1] sm:$0xff]
        %v2508 = vld [vmem:[#allocation2 + $0xf9] sm:$0xff]
        %v2509 = vld [vmem:[#allocation2 + $0x109] sm:$0xff]
        %v2510 = vld [vmem:[#allocation2 + $0x111] sm:$0xff]
        %v2511 = vld [vmem:[#allocation2 + $0x121] sm:$0xff]
        %v2512 = vld [vmem:[#allocation2 + $0x129] sm:$0xff]
        %v2513 = vld [vmem:[#allocation2 + $0x139] sm:$0xff]
        %v2514 = vld [vmem:[#allocation2 + $0x141] sm:$0xff]
        %v2515 = vld [vmem:[#allocation2 + $0x151] sm:$0xff]
        %v2516 = vld [vmem:[#allocation2 + $0x159] sm:$0xff]
        %v2517 = vld [vmem:[#allocation2 + $0x169] sm:$0xff]
        %v2518 = vld [vmem:[#allocation2 + $0x171] sm:$0xff]
        %2551 = vrot.lane.b32.xlu0 %v2487, 4
        %v2552 = vpop.permute.xlu0 %2551
        %2553 = vrot.lane.b32.xlu0 %v2488, 4
        %v2554 = vpop.permute.xlu0 %2553
        %2555 = vrot.lane.b32.xlu0 %v2489, 4
        %v2556 = vpop.permute.xlu0 %2555
        %2557 = vrot.lane.b32.xlu0 %v2490, 4
        %v2558 = vpop.permute.xlu0 %2557
        %2559 = vrot.lane.b32.xlu0 %v2491, 4
        %v2560 = vpop.permute.xlu0 %2559
        %2561 = vrot.lane.b32.xlu0 %v2492, 4
        %v2562 = vpop.permute.xlu0 %2561
        %2563 = vrot.lane.b32.xlu0 %v2493, 4
        %v2564 = vpop.permute.xlu0 %2563
        %2565 = vrot.lane.b32.xlu0 %v2494, 4
        %v2566 = vpop.permute.xlu0 %2565
        %2567 = vrot.lane.b32.xlu0 %v2495, 4
        %v2568 = vpop.permute.xlu0 %2567
        %2569 = vrot.lane.b32.xlu0 %v2496, 4
        %v2570 = vpop.permute.xlu0 %2569
        %2571 = vrot.lane.b32.xlu0 %v2497, 4
        %v2572 = vpop.permute.xlu0 %2571
        %2573 = vrot.lane.b32.xlu0 %v2498, 4
        %v2574 = vpop.permute.xlu0 %2573
        %2575 = vrot.lane.b32.xlu0 %v2499, 4
        %v2576 = vpop.permute.xlu0 %2575
        %2577 = vrot.lane.b32.xlu0 %v2500, 4
        %v2578 = vpop.permute.xlu0 %2577
        %2579 = vrot.lane.b32.xlu0 %v2501, 4
        %v2580 = vpop.permute.xlu0 %2579
        %2581 = vrot.lane.b32.xlu0 %v2502, 4
        %v2582 = vpop.permute.xlu0 %2581
        %2583 = vrot.lane.b32.xlu0 %v2503, 4
        %v2584 = vpop.permute.xlu0 %2583
        %2585 = vrot.lane.b32.xlu0 %v2504, 4
        %v2586 = vpop.permute.xlu0 %2585
        %2587 = vrot.lane.b32.xlu0 %v2505, 4
        %v2588 = vpop.permute.xlu0 %2587
        %2589 = vrot.lane.b32.xlu0 %v2506, 4
        %v2590 = vpop.permute.xlu0 %2589
        %2591 = vrot.lane.b32.xlu0 %v2507, 4
        %v2592 = vpop.permute.xlu0 %2591
        %2593 = vrot.lane.b32.xlu0 %v2508, 4
        %v2594 = vpop.permute.xlu0 %2593
        %2595 = vrot.lane.b32.xlu0 %v2509, 4
        %v2596 = vpop.permute.xlu0 %2595
        %2597 = vrot.lane.b32.xlu0 %v2510, 4
        %v2598 = vpop.permute.xlu0 %2597
        %2599 = vrot.lane.b32.xlu0 %v2511, 4
        %v2600 = vpop.permute.xlu0 %2599
        %2601 = vrot.lane.b32.xlu0 %v2512, 4
        %v2602 = vpop.permute.xlu0 %2601
        %2603 = vrot.lane.b32.xlu0 %v2513, 4
        %v2604 = vpop.permute.xlu0 %2603
        %2605 = vrot.lane.b32.xlu0 %v2514, 4
        %v2606 = vpop.permute.xlu0 %2605
        %2607 = vrot.lane.b32.xlu0 %v2515, 4
        %v2608 = vpop.permute.xlu0 %2607
        %2609 = vrot.lane.b32.xlu0 %v2516, 4
        %v2610 = vpop.permute.xlu0 %2609
        %2611 = vrot.lane.b32.xlu0 %v2517, 4
        %v2612 = vpop.permute.xlu0 %2611
        %2613 = vrot.lane.b32.xlu0 %v2518, 4
        %v2614 = vpop.permute.xlu0 %2613
        %2647 = vst.msk [vmem:[#allocation3] sm:$0xff] %vm604, %v2552
        %2648 = vst.msk [vmem:[#allocation3 + $0x8] sm:$0xff] %vm604, %v2554
        %2649 = vst.msk [vmem:[#allocation3 + $0x10] sm:$0xff] %vm604, %v2556
        %2650 = vst.msk [vmem:[#allocation3 + $0x18] sm:$0xff] %vm604, %v2558
        %2651 = vst.msk [vmem:[#allocation3 + $0x20] sm:$0xff] %vm604, %v2560
        %2652 = vst.msk [vmem:[#allocation3 + $0x28] sm:$0xff] %vm604, %v2562
        %2653 = vst.msk [vmem:[#allocation3 + $0x30] sm:$0xff] %vm604, %v2564
        %2654 = vst.msk [vmem:[#allocation3 + $0x38] sm:$0xff] %vm604, %v2566
        %2655 = vst.msk [vmem:[#allocation3 + $0x40] sm:$0xff] %vm604, %v2568
        %2656 = vst.msk [vmem:[#allocation3 + $0x48] sm:$0xff] %vm604, %v2570
        %2657 = vst.msk [vmem:[#allocation3 + $0x50] sm:$0xff] %vm604, %v2572
        %2658 = vst.msk [vmem:[#allocation3 + $0x58] sm:$0xff] %vm604, %v2574
        %2659 = vst.msk [vmem:[#allocation3 + $0x60] sm:$0xff] %vm604, %v2576
        %2660 = vst.msk [vmem:[#allocation3 + $0x68] sm:$0xff] %vm604, %v2578
        %2661 = vst.msk [vmem:[#allocation3 + $0x70] sm:$0xff] %vm604, %v2580
        %2662 = vst.msk [vmem:[#allocation3 + $0x78] sm:$0xff] %vm604, %v2582
        %2663 = vst.msk [vmem:[#allocation3 + $0x80] sm:$0xff] %vm604, %v2584
        %2664 = vst.msk [vmem:[#allocation3 + $0x88] sm:$0xff] %vm604, %v2586
        %2665 = vst.msk [vmem:[#allocation3 + $0x90] sm:$0xff] %vm604, %v2588
        %2666 = vst.msk [vmem:[#allocation3 + $0x98] sm:$0xff] %vm604, %v2590
        %2667 = vst.msk [vmem:[#allocation3 + $0xa0] sm:$0xff] %vm604, %v2592
        %2668 = vst.msk [vmem:[#allocation3 + $0xa8] sm:$0xff] %vm604, %v2594
        %2669 = vst.msk [vmem:[#allocation3 + $0xb0] sm:$0xff] %vm604, %v2596
        %2670 = vst.msk [vmem:[#allocation3 + $0xb8] sm:$0xff] %vm604, %v2598
        %2671 = vst.msk [vmem:[#allocation3 + $0xc0] sm:$0xff] %vm604, %v2600
        %2672 = vst.msk [vmem:[#allocation3 + $0xc8] sm:$0xff] %vm604, %v2602
        %2673 = vst.msk [vmem:[#allocation3 + $0xd0] sm:$0xff] %vm604, %v2604
        %2674 = vst.msk [vmem:[#allocation3 + $0xd8] sm:$0xff] %vm604, %v2606
        %2675 = vst.msk [vmem:[#allocation3 + $0xe0] sm:$0xff] %vm604, %v2608
        %2676 = vst.msk [vmem:[#allocation3 + $0xe8] sm:$0xff] %vm604, %v2610
        %2677 = vst.msk [vmem:[#allocation3 + $0xf0] sm:$0xff] %vm604, %v2612
        %2678 = vst.msk [vmem:[#allocation3 + $0xf8] sm:$0xff] %vm604, %v2614
        %v2679 = vld [vmem:[#allocation2 + $0x2] sm:$0xff]
        %v2680 = vld [vmem:[#allocation2 + $0xa] sm:$0xff]
        %v2681 = vld [vmem:[#allocation2 + $0x1a] sm:$0xff]
        %v2682 = vld [vmem:[#allocation2 + $0x22] sm:$0xff]
        %v2683 = vld [vmem:[#allocation2 + $0x32] sm:$0xff]
        %v2684 = vld [vmem:[#allocation2 + $0x3a] sm:$0xff]
        %v2685 = vld [vmem:[#allocation2 + $0x4a] sm:$0xff]
        %v2686 = vld [vmem:[#allocation2 + $0x52] sm:$0xff]
        %v2687 = vld [vmem:[#allocation2 + $0x62] sm:$0xff]
        %v2688 = vld [vmem:[#allocation2 + $0x6a] sm:$0xff]
        %v2689 = vld [vmem:[#allocation2 + $0x7a] sm:$0xff]
        %v2690 = vld [vmem:[#allocation2 + $0x82] sm:$0xff]
        %v2691 = vld [vmem:[#allocation2 + $0x92] sm:$0xff]
        %v2692 = vld [vmem:[#allocation2 + $0x9a] sm:$0xff]
        %v2693 = vld [vmem:[#allocation2 + $0xaa] sm:$0xff]
        %v2694 = vld [vmem:[#allocation2 + $0xb2] sm:$0xff]
        %v2695 = vld [vmem:[#allocation2 + $0xc2] sm:$0xff]
        %v2696 = vld [vmem:[#allocation2 + $0xca] sm:$0xff]
        %v2697 = vld [vmem:[#allocation2 + $0xda] sm:$0xff]
        %v2698 = vld [vmem:[#allocation2 + $0xe2] sm:$0xff]
        %v2699 = vld [vmem:[#allocation2 + $0xf2] sm:$0xff]
        %v2700 = vld [vmem:[#allocation2 + $0xfa] sm:$0xff]
        %v2701 = vld [vmem:[#allocation2 + $0x10a] sm:$0xff]
        %v2702 = vld [vmem:[#allocation2 + $0x112] sm:$0xff]
        %v2703 = vld [vmem:[#allocation2 + $0x122] sm:$0xff]
        %v2704 = vld [vmem:[#allocation2 + $0x12a] sm:$0xff]
        %v2705 = vld [vmem:[#allocation2 + $0x13a] sm:$0xff]
        %v2706 = vld [vmem:[#allocation2 + $0x142] sm:$0xff]
        %v2707 = vld [vmem:[#allocation2 + $0x152] sm:$0xff]
        %v2708 = vld [vmem:[#allocation2 + $0x15a] sm:$0xff]
        %v2709 = vld [vmem:[#allocation2 + $0x16a] sm:$0xff]
        %v2710 = vld [vmem:[#allocation2 + $0x172] sm:$0xff]
        %2743 = vrot.lane.b32.xlu0 %v2679, 8
        %v2744 = vpop.permute.xlu0 %2743
        %2745 = vrot.lane.b32.xlu0 %v2680, 8
        %v2746 = vpop.permute.xlu0 %2745
        %2747 = vrot.lane.b32.xlu0 %v2681, 8
        %v2748 = vpop.permute.xlu0 %2747
        %2749 = vrot.lane.b32.xlu0 %v2682, 8
        %v2750 = vpop.permute.xlu0 %2749
        %2751 = vrot.lane.b32.xlu0 %v2683, 8
        %v2752 = vpop.permute.xlu0 %2751
        %2753 = vrot.lane.b32.xlu0 %v2684, 8
        %v2754 = vpop.permute.xlu0 %2753
        %2755 = vrot.lane.b32.xlu0 %v2685, 8
        %v2756 = vpop.permute.xlu0 %2755
        %2757 = vrot.lane.b32.xlu0 %v2686, 8
        %v2758 = vpop.permute.xlu0 %2757
        %2759 = vrot.lane.b32.xlu0 %v2687, 8
        %v2760 = vpop.permute.xlu0 %2759
        %2761 = vrot.lane.b32.xlu0 %v2688, 8
        %v2762 = vpop.permute.xlu0 %2761
        %2763 = vrot.lane.b32.xlu0 %v2689, 8
        %v2764 = vpop.permute.xlu0 %2763
        %2765 = vrot.lane.b32.xlu0 %v2690, 8
        %v2766 = vpop.permute.xlu0 %2765
        %2767 = vrot.lane.b32.xlu0 %v2691, 8
        %v2768 = vpop.permute.xlu0 %2767
        %2769 = vrot.lane.b32.xlu0 %v2692, 8
        %v2770 = vpop.permute.xlu0 %2769
        %2771 = vrot.lane.b32.xlu0 %v2693, 8
        %v2772 = vpop.permute.xlu0 %2771
        %2773 = vrot.lane.b32.xlu0 %v2694, 8
        %v2774 = vpop.permute.xlu0 %2773
        %2775 = vrot.lane.b32.xlu0 %v2695, 8
        %v2776 = vpop.permute.xlu0 %2775
        %2777 = vrot.lane.b32.xlu0 %v2696, 8
        %v2778 = vpop.permute.xlu0 %2777
        %2779 = vrot.lane.b32.xlu0 %v2697, 8
        %v2780 = vpop.permute.xlu0 %2779
        %2781 = vrot.lane.b32.xlu0 %v2698, 8
        %v2782 = vpop.permute.xlu0 %2781
        %2783 = vrot.lane.b32.xlu0 %v2699, 8
        %v2784 = vpop.permute.xlu0 %2783
        %2785 = vrot.lane.b32.xlu0 %v2700, 8
        %v2786 = vpop.permute.xlu0 %2785
        %2787 = vrot.lane.b32.xlu0 %v2701, 8
        %v2788 = vpop.permute.xlu0 %2787
        %2789 = vrot.lane.b32.xlu0 %v2702, 8
        %v2790 = vpop.permute.xlu0 %2789
        %2791 = vrot.lane.b32.xlu0 %v2703, 8
        %v2792 = vpop.permute.xlu0 %2791
        %2793 = vrot.lane.b32.xlu0 %v2704, 8
        %v2794 = vpop.permute.xlu0 %2793
        %2795 = vrot.lane.b32.xlu0 %v2705, 8
        %v2796 = vpop.permute.xlu0 %2795
        %2797 = vrot.lane.b32.xlu0 %v2706, 8
        %v2798 = vpop.permute.xlu0 %2797
        %2799 = vrot.lane.b32.xlu0 %v2707, 8
        %v2800 = vpop.permute.xlu0 %2799
        %2801 = vrot.lane.b32.xlu0 %v2708, 8
        %v2802 = vpop.permute.xlu0 %2801
        %2803 = vrot.lane.b32.xlu0 %v2709, 8
        %v2804 = vpop.permute.xlu0 %2803
        %2805 = vrot.lane.b32.xlu0 %v2710, 8
        %v2806 = vpop.permute.xlu0 %2805
        %2839 = vst.msk [vmem:[#allocation3] sm:$0xff] %vm797, %v2744
        %2840 = vst.msk [vmem:[#allocation3 + $0x8] sm:$0xff] %vm797, %v2746
        %2841 = vst.msk [vmem:[#allocation3 + $0x10] sm:$0xff] %vm797, %v2748
        %2842 = vst.msk [vmem:[#allocation3 + $0x18] sm:$0xff] %vm797, %v2750
        %2843 = vst.msk [vmem:[#allocation3 + $0x20] sm:$0xff] %vm797, %v2752
        %2844 = vst.msk [vmem:[#allocation3 + $0x28] sm:$0xff] %vm797, %v2754
        %2845 = vst.msk [vmem:[#allocation3 + $0x30] sm:$0xff] %vm797, %v2756
        %2846 = vst.msk [vmem:[#allocation3 + $0x38] sm:$0xff] %vm797, %v2758
        %2847 = vst.msk [vmem:[#allocation3 + $0x40] sm:$0xff] %vm797, %v2760
        %2848 = vst.msk [vmem:[#allocation3 + $0x48] sm:$0xff] %vm797, %v2762
        %2849 = vst.msk [vmem:[#allocation3 + $0x50] sm:$0xff] %vm797, %v2764
        %2850 = vst.msk [vmem:[#allocation3 + $0x58] sm:$0xff] %vm797, %v2766
        %2851 = vst.msk [vmem:[#allocation3 + $0x60] sm:$0xff] %vm797, %v2768
        %2852 = vst.msk [vmem:[#allocation3 + $0x68] sm:$0xff] %vm797, %v2770
        %2853 = vst.msk [vmem:[#allocation3 + $0x70] sm:$0xff] %vm797, %v2772
        %2854 = vst.msk [vmem:[#allocation3 + $0x78] sm:$0xff] %vm797, %v2774
        %2855 = vst.msk [vmem:[#allocation3 + $0x80] sm:$0xff] %vm797, %v2776
        %2856 = vst.msk [vmem:[#allocation3 + $0x88] sm:$0xff] %vm797, %v2778
        %2857 = vst.msk [vmem:[#allocation3 + $0x90] sm:$0xff] %vm797, %v2780
        %2858 = vst.msk [vmem:[#allocation3 + $0x98] sm:$0xff] %vm797, %v2782
        %2859 = vst.msk [vmem:[#allocation3 + $0xa0] sm:$0xff] %vm797, %v2784
        %2860 = vst.msk [vmem:[#allocation3 + $0xa8] sm:$0xff] %vm797, %v2786
        %2861 = vst.msk [vmem:[#allocation3 + $0xb0] sm:$0xff] %vm797, %v2788
        %2862 = vst.msk [vmem:[#allocation3 + $0xb8] sm:$0xff] %vm797, %v2790
        %2863 = vst.msk [vmem:[#allocation3 + $0xc0] sm:$0xff] %vm797, %v2792
        %2864 = vst.msk [vmem:[#allocation3 + $0xc8] sm:$0xff] %vm797, %v2794
        %2865 = vst.msk [vmem:[#allocation3 + $0xd0] sm:$0xff] %vm797, %v2796
        %2866 = vst.msk [vmem:[#allocation3 + $0xd8] sm:$0xff] %vm797, %v2798
        %2867 = vst.msk [vmem:[#allocation3 + $0xe0] sm:$0xff] %vm797, %v2800
        %2868 = vst.msk [vmem:[#allocation3 + $0xe8] sm:$0xff] %vm797, %v2802
        %2869 = vst.msk [vmem:[#allocation3 + $0xf0] sm:$0xff] %vm797, %v2804
        %2870 = vst.msk [vmem:[#allocation3 + $0xf8] sm:$0xff] %vm797, %v2806
        %v2871 = vld [vmem:[%s347] sm:$0xff]
        %v2872 = vld [vmem:[%s347 + $0x8] sm:$0xff]
        %v2873 = vld [vmem:[%s347 + $0x18] sm:$0xff]
        %v2874 = vld [vmem:[%s347 + $0x20] sm:$0xff]
        %v2875 = vld [vmem:[%s347 + $0x30] sm:$0xff]
        %v2876 = vld [vmem:[%s347 + $0x38] sm:$0xff]
        %v2877 = vld [vmem:[%s347 + $0x48] sm:$0xff]
        %v2878 = vld [vmem:[%s347 + $0x50] sm:$0xff]
        %v2879 = vld [vmem:[%s347 + $0x60] sm:$0xff]
        %v2880 = vld [vmem:[%s347 + $0x68] sm:$0xff]
        %v2881 = vld [vmem:[%s347 + $0x78] sm:$0xff]
        %v2882 = vld [vmem:[%s347 + $0x80] sm:$0xff]
        %v2883 = vld [vmem:[%s347 + $0x90] sm:$0xff]
        %v2884 = vld [vmem:[%s347 + $0x98] sm:$0xff]
        %v2885 = vld [vmem:[%s347 + $0xa8] sm:$0xff]
        %v2886 = vld [vmem:[%s347 + $0xb0] sm:$0xff]
        %v2887 = vld [vmem:[%s347 + $0xc0] sm:$0xff]
        %v2888 = vld [vmem:[%s347 + $0xc8] sm:$0xff]
        %v2889 = vld [vmem:[%s347 + $0xd8] sm:$0xff]
        %v2890 = vld [vmem:[%s347 + $0xe0] sm:$0xff]
        %v2891 = vld [vmem:[%s347 + $0xf0] sm:$0xff]
        %v2892 = vld [vmem:[%s347 + $0xf8] sm:$0xff]
        %v2893 = vld [vmem:[%s347 + $0x108] sm:$0xff]
        %v2894 = vld [vmem:[%s347 + $0x110] sm:$0xff]
        %v2895 = vld [vmem:[%s347 + $0x120] sm:$0xff]
        %v2896 = vld [vmem:[%s347 + $0x128] sm:$0xff]
        %v2897 = vld [vmem:[%s347 + $0x138] sm:$0xff]
        %v2898 = vld [vmem:[%s347 + $0x140] sm:$0xff]
        %v2899 = vld [vmem:[%s347 + $0x150] sm:$0xff]
        %v2900 = vld [vmem:[%s347 + $0x158] sm:$0xff]
        %v2901 = vld [vmem:[%s347 + $0x168] sm:$0xff]
        %v2902 = vld [vmem:[%s347 + $0x170] sm:$0xff]
        %2935 = vrot.lane.b32.xlu0 %v2871, 12
        %v2936 = vpop.permute.xlu0 %2935
        %2937 = vrot.lane.b32.xlu0 %v2872, 12
        %v2938 = vpop.permute.xlu0 %2937
        %2939 = vrot.lane.b32.xlu0 %v2873, 12
        %v2940 = vpop.permute.xlu0 %2939
        %2941 = vrot.lane.b32.xlu0 %v2874, 12
        %v2942 = vpop.permute.xlu0 %2941
        %2943 = vrot.lane.b32.xlu0 %v2875, 12
        %v2944 = vpop.permute.xlu0 %2943
        %2945 = vrot.lane.b32.xlu0 %v2876, 12
        %v2946 = vpop.permute.xlu0 %2945
        %2947 = vrot.lane.b32.xlu0 %v2877, 12
        %v2948 = vpop.permute.xlu0 %2947
        %2949 = vrot.lane.b32.xlu0 %v2878, 12
        %v2950 = vpop.permute.xlu0 %2949
        %2951 = vrot.lane.b32.xlu0 %v2879, 12
        %v2952 = vpop.permute.xlu0 %2951
        %2953 = vrot.lane.b32.xlu0 %v2880, 12
        %v2954 = vpop.permute.xlu0 %2953
        %2955 = vrot.lane.b32.xlu0 %v2881, 12
        %v2956 = vpop.permute.xlu0 %2955
        %2957 = vrot.lane.b32.xlu0 %v2882, 12
        %v2958 = vpop.permute.xlu0 %2957
        %2959 = vrot.lane.b32.xlu0 %v2883, 12
        %v2960 = vpop.permute.xlu0 %2959
        %2961 = vrot.lane.b32.xlu0 %v2884, 12
        %v2962 = vpop.permute.xlu0 %2961
        %2963 = vrot.lane.b32.xlu0 %v2885, 12
        %v2964 = vpop.permute.xlu0 %2963
        %2965 = vrot.lane.b32.xlu0 %v2886, 12
        %v2966 = vpop.permute.xlu0 %2965
        %2967 = vrot.lane.b32.xlu0 %v2887, 12
        %v2968 = vpop.permute.xlu0 %2967
        %2969 = vrot.lane.b32.xlu0 %v2888, 12
        %v2970 = vpop.permute.xlu0 %2969
        %2971 = vrot.lane.b32.xlu0 %v2889, 12
        %v2972 = vpop.permute.xlu0 %2971
        %2973 = vrot.lane.b32.xlu0 %v2890, 12
        %v2974 = vpop.permute.xlu0 %2973
        %2975 = vrot.lane.b32.xlu0 %v2891, 12
        %v2976 = vpop.permute.xlu0 %2975
        %2977 = vrot.lane.b32.xlu0 %v2892, 12
        %v2978 = vpop.permute.xlu0 %2977
        %2979 = vrot.lane.b32.xlu0 %v2893, 12
        %v2980 = vpop.permute.xlu0 %2979
        %2981 = vrot.lane.b32.xlu0 %v2894, 12
        %v2982 = vpop.permute.xlu0 %2981
        %2983 = vrot.lane.b32.xlu0 %v2895, 12
        %v2984 = vpop.permute.xlu0 %2983
        %2985 = vrot.lane.b32.xlu0 %v2896, 12
        %v2986 = vpop.permute.xlu0 %2985
        %2987 = vrot.lane.b32.xlu0 %v2897, 12
        %v2988 = vpop.permute.xlu0 %2987
        %2989 = vrot.lane.b32.xlu0 %v2898, 12
        %v2990 = vpop.permute.xlu0 %2989
        %2991 = vrot.lane.b32.xlu0 %v2899, 12
        %v2992 = vpop.permute.xlu0 %2991
        %2993 = vrot.lane.b32.xlu0 %v2900, 12
        %v2994 = vpop.permute.xlu0 %2993
        %2995 = vrot.lane.b32.xlu0 %v2901, 12
        %v2996 = vpop.permute.xlu0 %2995
        %2997 = vrot.lane.b32.xlu0 %v2902, 12
        %v2998 = vpop.permute.xlu0 %2997
        %3031 = vst.msk [vmem:[#allocation3] sm:$0xff] %vm990, %v2936
        %3032 = vst.msk [vmem:[#allocation3 + $0x8] sm:$0xff] %vm990, %v2938
        %3033 = vst.msk [vmem:[#allocation3 + $0x10] sm:$0xff] %vm990, %v2940
        %3034 = vst.msk [vmem:[#allocation3 + $0x18] sm:$0xff] %vm990, %v2942
        %3035 = vst.msk [vmem:[#allocation3 + $0x20] sm:$0xff] %vm990, %v2944
        %3036 = vst.msk [vmem:[#allocation3 + $0x28] sm:$0xff] %vm990, %v2946
        %3037 = vst.msk [vmem:[#allocation3 + $0x30] sm:$0xff] %vm990, %v2948
        %3038 = vst.msk [vmem:[#allocation3 + $0x38] sm:$0xff] %vm990, %v2950
        %3039 = vst.msk [vmem:[#allocation3 + $0x40] sm:$0xff] %vm990, %v2952
        %3040 = vst.msk [vmem:[#allocation3 + $0x48] sm:$0xff] %vm990, %v2954
        %3041 = vst.msk [vmem:[#allocation3 + $0x50] sm:$0xff] %vm990, %v2956
        %3042 = vst.msk [vmem:[#allocation3 + $0x58] sm:$0xff] %vm990, %v2958
        %3043 = vst.msk [vmem:[#allocation3 + $0x60] sm:$0xff] %vm990, %v2960
        %3044 = vst.msk [vmem:[#allocation3 + $0x68] sm:$0xff] %vm990, %v2962
        %3045 = vst.msk [vmem:[#allocation3 + $0x70] sm:$0xff] %vm990, %v2964
        %3046 = vst.msk [vmem:[#allocation3 + $0x78] sm:$0xff] %vm990, %v2966
        %3047 = vst.msk [vmem:[#allocation3 + $0x80] sm:$0xff] %vm990, %v2968
        %3048 = vst.msk [vmem:[#allocation3 + $0x88] sm:$0xff] %vm990, %v2970
        %3049 = vst.msk [vmem:[#allocation3 + $0x90] sm:$0xff] %vm990, %v2972
        %3050 = vst.msk [vmem:[#allocation3 + $0x98] sm:$0xff] %vm990, %v2974
        %3051 = vst.msk [vmem:[#allocation3 + $0xa0] sm:$0xff] %vm990, %v2976
        %3052 = vst.msk [vmem:[#allocation3 + $0xa8] sm:$0xff] %vm990, %v2978
        %3053 = vst.msk [vmem:[#allocation3 + $0xb0] sm:$0xff] %vm990, %v2980
        %3054 = vst.msk [vmem:[#allocation3 + $0xb8] sm:$0xff] %vm990, %v2982
        %3055 = vst.msk [vmem:[#allocation3 + $0xc0] sm:$0xff] %vm990, %v2984
        %3056 = vst.msk [vmem:[#allocation3 + $0xc8] sm:$0xff] %vm990, %v2986
        %3057 = vst.msk [vmem:[#allocation3 + $0xd0] sm:$0xff] %vm990, %v2988
        %3058 = vst.msk [vmem:[#allocation3 + $0xd8] sm:$0xff] %vm990, %v2990
        %3059 = vst.msk [vmem:[#allocation3 + $0xe0] sm:$0xff] %vm990, %v2992
        %3060 = vst.msk [vmem:[#allocation3 + $0xe8] sm:$0xff] %vm990, %v2994
        %3061 = vst.msk [vmem:[#allocation3 + $0xf0] sm:$0xff] %vm990, %v2996
        %3062 = vst.msk [vmem:[#allocation3 + $0xf8] sm:$0xff] %vm990, %v2998
        %v3063 = vld [vmem:[%s347 + $0x1] sm:$0xff]
        %v3064 = vld [vmem:[%s347 + $0x9] sm:$0xff]
        %v3065 = vld [vmem:[%s347 + $0x19] sm:$0xff]
        %v3066 = vld [vmem:[%s347 + $0x21] sm:$0xff]
        %v3067 = vld [vmem:[%s347 + $0x31] sm:$0xff]
        %v3068 = vld [vmem:[%s347 + $0x39] sm:$0xff]
        %v3069 = vld [vmem:[%s347 + $0x49] sm:$0xff]
        %v3070 = vld [vmem:[%s347 + $0x51] sm:$0xff]
        %v3071 = vld [vmem:[%s347 + $0x61] sm:$0xff]
        %v3072 = vld [vmem:[%s347 + $0x69] sm:$0xff]
        %v3073 = vld [vmem:[%s347 + $0x79] sm:$0xff]
        %v3074 = vld [vmem:[%s347 + $0x81] sm:$0xff]
        %v3075 = vld [vmem:[%s347 + $0x91] sm:$0xff]
        %v3076 = vld [vmem:[%s347 + $0x99] sm:$0xff]
        %v3077 = vld [vmem:[%s347 + $0xa9] sm:$0xff]
        %v3078 = vld [vmem:[%s347 + $0xb1] sm:$0xff]
        %v3079 = vld [vmem:[%s347 + $0xc1] sm:$0xff]
        %v3080 = vld [vmem:[%s347 + $0xc9] sm:$0xff]
        %v3081 = vld [vmem:[%s347 + $0xd9] sm:$0xff]
        %v3082 = vld [vmem:[%s347 + $0xe1] sm:$0xff]
        %v3083 = vld [vmem:[%s347 + $0xf1] sm:$0xff]
        %v3084 = vld [vmem:[%s347 + $0xf9] sm:$0xff]
        %v3085 = vld [vmem:[%s347 + $0x109] sm:$0xff]
        %v3086 = vld [vmem:[%s347 + $0x111] sm:$0xff]
        %v3087 = vld [vmem:[%s347 + $0x121] sm:$0xff]
        %v3088 = vld [vmem:[%s347 + $0x129] sm:$0xff]
        %v3089 = vld [vmem:[%s347 + $0x139] sm:$0xff]
        %v3090 = vld [vmem:[%s347 + $0x141] sm:$0xff]
        %v3091 = vld [vmem:[%s347 + $0x151] sm:$0xff]
        %v3092 = vld [vmem:[%s347 + $0x159] sm:$0xff]
        %v3093 = vld [vmem:[%s347 + $0x169] sm:$0xff]
        %v3094 = vld [vmem:[%s347 + $0x171] sm:$0xff]
        %3127 = vrot.lane.b32.xlu0 %v3063, 16
        %v3128 = vpop.permute.xlu0 %3127
        %3129 = vrot.lane.b32.xlu0 %v3064, 16
        %v3130 = vpop.permute.xlu0 %3129
        %3131 = vrot.lane.b32.xlu0 %v3065, 16
        %v3132 = vpop.permute.xlu0 %3131
        %3133 = vrot.lane.b32.xlu0 %v3066, 16
        %v3134 = vpop.permute.xlu0 %3133
        %3135 = vrot.lane.b32.xlu0 %v3067, 16
        %v3136 = vpop.permute.xlu0 %3135
        %3137 = vrot.lane.b32.xlu0 %v3068, 16
        %v3138 = vpop.permute.xlu0 %3137
        %3139 = vrot.lane.b32.xlu0 %v3069, 16
        %v3140 = vpop.permute.xlu0 %3139
        %3141 = vrot.lane.b32.xlu0 %v3070, 16
        %v3142 = vpop.permute.xlu0 %3141
        %3143 = vrot.lane.b32.xlu0 %v3071, 16
        %v3144 = vpop.permute.xlu0 %3143
        %3145 = vrot.lane.b32.xlu0 %v3072, 16
        %v3146 = vpop.permute.xlu0 %3145
        %3147 = vrot.lane.b32.xlu0 %v3073, 16
        %v3148 = vpop.permute.xlu0 %3147
        %3149 = vrot.lane.b32.xlu0 %v3074, 16
        %v3150 = vpop.permute.xlu0 %3149
        %3151 = vrot.lane.b32.xlu0 %v3075, 16
        %v3152 = vpop.permute.xlu0 %3151
        %3153 = vrot.lane.b32.xlu0 %v3076, 16
        %v3154 = vpop.permute.xlu0 %3153
        %3155 = vrot.lane.b32.xlu0 %v3077, 16
        %v3156 = vpop.permute.xlu0 %3155
        %3157 = vrot.lane.b32.xlu0 %v3078, 16
        %v3158 = vpop.permute.xlu0 %3157
        %3159 = vrot.lane.b32.xlu0 %v3079, 16
        %v3160 = vpop.permute.xlu0 %3159
        %3161 = vrot.lane.b32.xlu0 %v3080, 16
        %v3162 = vpop.permute.xlu0 %3161
        %3163 = vrot.lane.b32.xlu0 %v3081, 16
        %v3164 = vpop.permute.xlu0 %3163
        %3165 = vrot.lane.b32.xlu0 %v3082, 16
        %v3166 = vpop.permute.xlu0 %3165
        %3167 = vrot.lane.b32.xlu0 %v3083, 16
        %v3168 = vpop.permute.xlu0 %3167
        %3169 = vrot.lane.b32.xlu0 %v3084, 16
        %v3170 = vpop.permute.xlu0 %3169
        %3171 = vrot.lane.b32.xlu0 %v3085, 16
        %v3172 = vpop.permute.xlu0 %3171
        %3173 = vrot.lane.b32.xlu0 %v3086, 16
        %v3174 = vpop.permute.xlu0 %3173
        %3175 = vrot.lane.b32.xlu0 %v3087, 16
        %v3176 = vpop.permute.xlu0 %3175
        %3177 = vrot.lane.b32.xlu0 %v3088, 16
        %v3178 = vpop.permute.xlu0 %3177
        %3179 = vrot.lane.b32.xlu0 %v3089, 16
        %v3180 = vpop.permute.xlu0 %3179
        %3181 = vrot.lane.b32.xlu0 %v3090, 16
        %v3182 = vpop.permute.xlu0 %3181
        %3183 = vrot.lane.b32.xlu0 %v3091, 16
        %v3184 = vpop.permute.xlu0 %3183
        %3185 = vrot.lane.b32.xlu0 %v3092, 16
        %v3186 = vpop.permute.xlu0 %3185
        %3187 = vrot.lane.b32.xlu0 %v3093, 16
        %v3188 = vpop.permute.xlu0 %3187
        %3189 = vrot.lane.b32.xlu0 %v3094, 16
        %v3190 = vpop.permute.xlu0 %3189
        %3223 = vst.msk [vmem:[#allocation3] sm:$0xff] %vm1183, %v3128
        %3224 = vst.msk [vmem:[#allocation3 + $0x8] sm:$0xff] %vm1183, %v3130
        %3225 = vst.msk [vmem:[#allocation3 + $0x10] sm:$0xff] %vm1183, %v3132
        %3226 = vst.msk [vmem:[#allocation3 + $0x18] sm:$0xff] %vm1183, %v3134
        %3227 = vst.msk [vmem:[#allocation3 + $0x20] sm:$0xff] %vm1183, %v3136
        %3228 = vst.msk [vmem:[#allocation3 + $0x28] sm:$0xff] %vm1183, %v3138
        %3229 = vst.msk [vmem:[#allocation3 + $0x30] sm:$0xff] %vm1183, %v3140
        %3230 = vst.msk [vmem:[#allocation3 + $0x38] sm:$0xff] %vm1183, %v3142
        %3231 = vst.msk [vmem:[#allocation3 + $0x40] sm:$0xff] %vm1183, %v3144
        %3232 = vst.msk [vmem:[#allocation3 + $0x48] sm:$0xff] %vm1183, %v3146
        %3233 = vst.msk [vmem:[#allocation3 + $0x50] sm:$0xff] %vm1183, %v3148
        %3234 = vst.msk [vmem:[#allocation3 + $0x58] sm:$0xff] %vm1183, %v3150
        %3235 = vst.msk [vmem:[#allocation3 + $0x60] sm:$0xff] %vm1183, %v3152
        %3236 = vst.msk [vmem:[#allocation3 + $0x68] sm:$0xff] %vm1183, %v3154
        %3237 = vst.msk [vmem:[#allocation3 + $0x70] sm:$0xff] %vm1183, %v3156
        %3238 = vst.msk [vmem:[#allocation3 + $0x78] sm:$0xff] %vm1183, %v3158
        %3239 = vst.msk [vmem:[#allocation3 + $0x80] sm:$0xff] %vm1183, %v3160
        %3240 = vst.msk [vmem:[#allocation3 + $0x88] sm:$0xff] %vm1183, %v3162
        %3241 = vst.msk [vmem:[#allocation3 + $0x90] sm:$0xff] %vm1183, %v3164
        %3242 = vst.msk [vmem:[#allocation3 + $0x98] sm:$0xff] %vm1183, %v3166
        %3243 = vst.msk [vmem:[#allocation3 + $0xa0] sm:$0xff] %vm1183, %v3168
        %3244 = vst.msk [vmem:[#allocation3 + $0xa8] sm:$0xff] %vm1183, %v3170
        %3245 = vst.msk [vmem:[#allocation3 + $0xb0] sm:$0xff] %vm1183, %v3172
        %3246 = vst.msk [vmem:[#allocation3 + $0xb8] sm:$0xff] %vm1183, %v3174
        %3247 = vst.msk [vmem:[#allocation3 + $0xc0] sm:$0xff] %vm1183, %v3176
        %3248 = vst.msk [vmem:[#allocation3 + $0xc8] sm:$0xff] %vm1183, %v3178
        %3249 = vst.msk [vmem:[#allocation3 + $0xd0] sm:$0xff] %vm1183, %v3180
        %3250 = vst.msk [vmem:[#allocation3 + $0xd8] sm:$0xff] %vm1183, %v3182
        %3251 = vst.msk [vmem:[#allocation3 + $0xe0] sm:$0xff] %vm1183, %v3184
        %3252 = vst.msk [vmem:[#allocation3 + $0xe8] sm:$0xff] %vm1183, %v3186
        %3253 = vst.msk [vmem:[#allocation3 + $0xf0] sm:$0xff] %vm1183, %v3188
        %3254 = vst.msk [vmem:[#allocation3 + $0xf8] sm:$0xff] %vm1183, %v3190
        %v3255 = vld [vmem:[%s347 + $0x2] sm:$0xff]
        %v3256 = vld [vmem:[%s347 + $0xa] sm:$0xff]
        %v3257 = vld [vmem:[%s347 + $0x1a] sm:$0xff]
        %v3258 = vld [vmem:[%s347 + $0x22] sm:$0xff]
        %v3259 = vld [vmem:[%s347 + $0x32] sm:$0xff]
        %v3260 = vld [vmem:[%s347 + $0x3a] sm:$0xff]
        %v3261 = vld [vmem:[%s347 + $0x4a] sm:$0xff]
        %v3262 = vld [vmem:[%s347 + $0x52] sm:$0xff]
        %v3263 = vld [vmem:[%s347 + $0x62] sm:$0xff]
        %v3264 = vld [vmem:[%s347 + $0x6a] sm:$0xff]
        %v3265 = vld [vmem:[%s347 + $0x7a] sm:$0xff]
        %v3266 = vld [vmem:[%s347 + $0x82] sm:$0xff]
        %v3267 = vld [vmem:[%s347 + $0x92] sm:$0xff]
        %v3268 = vld [vmem:[%s347 + $0x9a] sm:$0xff]
        %v3269 = vld [vmem:[%s347 + $0xaa] sm:$0xff]
        %v3270 = vld [vmem:[%s347 + $0xb2] sm:$0xff]
        %v3271 = vld [vmem:[%s347 + $0xc2] sm:$0xff]
        %v3272 = vld [vmem:[%s347 + $0xca] sm:$0xff]
        %v3273 = vld [vmem:[%s347 + $0xda] sm:$0xff]
        %v3274 = vld [vmem:[%s347 + $0xe2] sm:$0xff]
        %v3275 = vld [vmem:[%s347 + $0xf2] sm:$0xff]
        %v3276 = vld [vmem:[%s347 + $0xfa] sm:$0xff]
        %v3277 = vld [vmem:[%s347 + $0x10a] sm:$0xff]
        %v3278 = vld [vmem:[%s347 + $0x112] sm:$0xff]
        %v3279 = vld [vmem:[%s347 + $0x122] sm:$0xff]
        %v3280 = vld [vmem:[%s347 + $0x12a] sm:$0xff]
        %v3281 = vld [vmem:[%s347 + $0x13a] sm:$0xff]
        %v3282 = vld [vmem:[%s347 + $0x142] sm:$0xff]
        %v3283 = vld [vmem:[%s347 + $0x152] sm:$0xff]
        %v3284 = vld [vmem:[%s347 + $0x15a] sm:$0xff]
        %v3285 = vld [vmem:[%s347 + $0x16a] sm:$0xff]
        %v3286 = vld [vmem:[%s347 + $0x172] sm:$0xff]
        %3319 = vrot.lane.b32.xlu0 %v3255, 20
        %v3320 = vpop.permute.xlu0 %3319
        %3321 = vrot.lane.b32.xlu0 %v3256, 20
        %v3322 = vpop.permute.xlu0 %3321
        %3323 = vrot.lane.b32.xlu0 %v3257, 20
        %v3324 = vpop.permute.xlu0 %3323
        %3325 = vrot.lane.b32.xlu0 %v3258, 20
        %v3326 = vpop.permute.xlu0 %3325
        %3327 = vrot.lane.b32.xlu0 %v3259, 20
        %v3328 = vpop.permute.xlu0 %3327
        %3329 = vrot.lane.b32.xlu0 %v3260, 20
        %v3330 = vpop.permute.xlu0 %3329
        %3331 = vrot.lane.b32.xlu0 %v3261, 20
        %v3332 = vpop.permute.xlu0 %3331
        %3333 = vrot.lane.b32.xlu0 %v3262, 20
        %v3334 = vpop.permute.xlu0 %3333
        %3335 = vrot.lane.b32.xlu0 %v3263, 20
        %v3336 = vpop.permute.xlu0 %3335
        %3337 = vrot.lane.b32.xlu0 %v3264, 20
        %v3338 = vpop.permute.xlu0 %3337
        %3339 = vrot.lane.b32.xlu0 %v3265, 20
        %v3340 = vpop.permute.xlu0 %3339
        %3341 = vrot.lane.b32.xlu0 %v3266, 20
        %v3342 = vpop.permute.xlu0 %3341
        %3343 = vrot.lane.b32.xlu0 %v3267, 20
        %v3344 = vpop.permute.xlu0 %3343
        %3345 = vrot.lane.b32.xlu0 %v3268, 20
        %v3346 = vpop.permute.xlu0 %3345
        %3347 = vrot.lane.b32.xlu0 %v3269, 20
        %v3348 = vpop.permute.xlu0 %3347
        %3349 = vrot.lane.b32.xlu0 %v3270, 20
        %v3350 = vpop.permute.xlu0 %3349
        %3351 = vrot.lane.b32.xlu0 %v3271, 20
        %v3352 = vpop.permute.xlu0 %3351
        %3353 = vrot.lane.b32.xlu0 %v3272, 20
        %v3354 = vpop.permute.xlu0 %3353
        %3355 = vrot.lane.b32.xlu0 %v3273, 20
        %v3356 = vpop.permute.xlu0 %3355
        %3357 = vrot.lane.b32.xlu0 %v3274, 20
        %v3358 = vpop.permute.xlu0 %3357
        %3359 = vrot.lane.b32.xlu0 %v3275, 20
        %v3360 = vpop.permute.xlu0 %3359
        %3361 = vrot.lane.b32.xlu0 %v3276, 20
        %v3362 = vpop.permute.xlu0 %3361
        %3363 = vrot.lane.b32.xlu0 %v3277, 20
        %v3364 = vpop.permute.xlu0 %3363
        %3365 = vrot.lane.b32.xlu0 %v3278, 20
        %v3366 = vpop.permute.xlu0 %3365
        %3367 = vrot.lane.b32.xlu0 %v3279, 20
        %v3368 = vpop.permute.xlu0 %3367
        %3369 = vrot.lane.b32.xlu0 %v3280, 20
        %v3370 = vpop.permute.xlu0 %3369
        %3371 = vrot.lane.b32.xlu0 %v3281, 20
        %v3372 = vpop.permute.xlu0 %3371
        %3373 = vrot.lane.b32.xlu0 %v3282, 20
        %v3374 = vpop.permute.xlu0 %3373
        %3375 = vrot.lane.b32.xlu0 %v3283, 20
        %v3376 = vpop.permute.xlu0 %3375
        %3377 = vrot.lane.b32.xlu0 %v3284, 20
        %v3378 = vpop.permute.xlu0 %3377
        %3379 = vrot.lane.b32.xlu0 %v3285, 20
        %v3380 = vpop.permute.xlu0 %3379
        %3381 = vrot.lane.b32.xlu0 %v3286, 20
        %v3382 = vpop.permute.xlu0 %3381
        %3415 = vst.msk [vmem:[#allocation3] sm:$0xff] %vm1376, %v3320
        %3416 = vst.msk [vmem:[#allocation3 + $0x8] sm:$0xff] %vm1376, %v3322
        %3417 = vst.msk [vmem:[#allocation3 + $0x10] sm:$0xff] %vm1376, %v3324
        %3418 = vst.msk [vmem:[#allocation3 + $0x18] sm:$0xff] %vm1376, %v3326
        %3419 = vst.msk [vmem:[#allocation3 + $0x20] sm:$0xff] %vm1376, %v3328
        %3420 = vst.msk [vmem:[#allocation3 + $0x28] sm:$0xff] %vm1376, %v3330
        %3421 = vst.msk [vmem:[#allocation3 + $0x30] sm:$0xff] %vm1376, %v3332
        %3422 = vst.msk [vmem:[#allocation3 + $0x38] sm:$0xff] %vm1376, %v3334
        %3423 = vst.msk [vmem:[#allocation3 + $0x40] sm:$0xff] %vm1376, %v3336
        %3424 = vst.msk [vmem:[#allocation3 + $0x48] sm:$0xff] %vm1376, %v3338
        %3425 = vst.msk [vmem:[#allocation3 + $0x50] sm:$0xff] %vm1376, %v3340
        %3426 = vst.msk [vmem:[#allocation3 + $0x58] sm:$0xff] %vm1376, %v3342
        %3427 = vst.msk [vmem:[#allocation3 + $0x60] sm:$0xff] %vm1376, %v3344
        %3428 = vst.msk [vmem:[#allocation3 + $0x68] sm:$0xff] %vm1376, %v3346
        %3429 = vst.msk [vmem:[#allocation3 + $0x70] sm:$0xff] %vm1376, %v3348
        %3430 = vst.msk [vmem:[#allocation3 + $0x78] sm:$0xff] %vm1376, %v3350
        %3431 = vst.msk [vmem:[#allocation3 + $0x80] sm:$0xff] %vm1376, %v3352
        %3432 = vst.msk [vmem:[#allocation3 + $0x88] sm:$0xff] %vm1376, %v3354
        %3433 = vst.msk [vmem:[#allocation3 + $0x90] sm:$0xff] %vm1376, %v3356
        %3434 = vst.msk [vmem:[#allocation3 + $0x98] sm:$0xff] %vm1376, %v3358
        %3435 = vst.msk [vmem:[#allocation3 + $0xa0] sm:$0xff] %vm1376, %v3360
        %3436 = vst.msk [vmem:[#allocation3 + $0xa8] sm:$0xff] %vm1376, %v3362
        %3437 = vst.msk [vmem:[#allocation3 + $0xb0] sm:$0xff] %vm1376, %v3364
        %3438 = vst.msk [vmem:[#allocation3 + $0xb8] sm:$0xff] %vm1376, %v3366
        %3439 = vst.msk [vmem:[#allocation3 + $0xc0] sm:$0xff] %vm1376, %v3368
        %3440 = vst.msk [vmem:[#allocation3 + $0xc8] sm:$0xff] %vm1376, %v3370
        %3441 = vst.msk [vmem:[#allocation3 + $0xd0] sm:$0xff] %vm1376, %v3372
        %3442 = vst.msk [vmem:[#allocation3 + $0xd8] sm:$0xff] %vm1376, %v3374
        %3443 = vst.msk [vmem:[#allocation3 + $0xe0] sm:$0xff] %vm1376, %v3376
        %3444 = vst.msk [vmem:[#allocation3 + $0xe8] sm:$0xff] %vm1376, %v3378
        %3445 = vst.msk [vmem:[#allocation3 + $0xf0] sm:$0xff] %vm1376, %v3380
        %3446 = vst.msk [vmem:[#allocation3 + $0xf8] sm:$0xff] %vm1376, %v3382
        %v3447 = vld [vmem:[%s1409] sm:$0xff]
        %v3448 = vld [vmem:[%s1409 + $0x8] sm:$0xff]
        %v3449 = vld [vmem:[%s1409 + $0x18] sm:$0xff]
        %v3450 = vld [vmem:[%s1409 + $0x20] sm:$0xff]
        %v3451 = vld [vmem:[%s1409 + $0x30] sm:$0xff]
        %v3452 = vld [vmem:[%s1409 + $0x38] sm:$0xff]
        %v3453 = vld [vmem:[%s1409 + $0x48] sm:$0xff]
        %v3454 = vld [vmem:[%s1409 + $0x50] sm:$0xff]
        %v3455 = vld [vmem:[%s1409 + $0x60] sm:$0xff]
        %v3456 = vld [vmem:[%s1409 + $0x68] sm:$0xff]
        %v3457 = vld [vmem:[%s1409 + $0x78] sm:$0xff]
        %v3458 = vld [vmem:[%s1409 + $0x80] sm:$0xff]
        %v3459 = vld [vmem:[%s1409 + $0x90] sm:$0xff]
        %v3460 = vld [vmem:[%s1409 + $0x98] sm:$0xff]
        %v3461 = vld [vmem:[%s1409 + $0xa8] sm:$0xff]
        %v3462 = vld [vmem:[%s1409 + $0xb0] sm:$0xff]
        %v3463 = vld [vmem:[%s1409 + $0xc0] sm:$0xff]
        %v3464 = vld [vmem:[%s1409 + $0xc8] sm:$0xff]
        %v3465 = vld [vmem:[%s1409 + $0xd8] sm:$0xff]
        %v3466 = vld [vmem:[%s1409 + $0xe0] sm:$0xff]
        %v3467 = vld [vmem:[%s1409 + $0xf0] sm:$0xff]
        %v3468 = vld [vmem:[%s1409 + $0xf8] sm:$0xff]
        %v3469 = vld [vmem:[%s1409 + $0x108] sm:$0xff]
        %v3470 = vld [vmem:[%s1409 + $0x110] sm:$0xff]
        %v3471 = vld [vmem:[%s1409 + $0x120] sm:$0xff]
        %v3472 = vld [vmem:[%s1409 + $0x128] sm:$0xff]
        %v3473 = vld [vmem:[%s1409 + $0x138] sm:$0xff]
        %v3474 = vld [vmem:[%s1409 + $0x140] sm:$0xff]
        %v3475 = vld [vmem:[%s1409 + $0x150] sm:$0xff]
        %v3476 = vld [vmem:[%s1409 + $0x158] sm:$0xff]
        %v3477 = vld [vmem:[%s1409 + $0x168] sm:$0xff]
        %v3478 = vld [vmem:[%s1409 + $0x170] sm:$0xff]
        %3511 = vrot.lane.b32.xlu0 %v3447, 24
        %v3512 = vpop.permute.xlu0 %3511
        %3513 = vrot.lane.b32.xlu0 %v3448, 24
        %v3514 = vpop.permute.xlu0 %3513
        %3515 = vrot.lane.b32.xlu0 %v3449, 24
        %v3516 = vpop.permute.xlu0 %3515
        %3517 = vrot.lane.b32.xlu0 %v3450, 24
        %v3518 = vpop.permute.xlu0 %3517
        %3519 = vrot.lane.b32.xlu0 %v3451, 24
        %v3520 = vpop.permute.xlu0 %3519
        %3521 = vrot.lane.b32.xlu0 %v3452, 24
        %v3522 = vpop.permute.xlu0 %3521
        %3523 = vrot.lane.b32.xlu0 %v3453, 24
        %v3524 = vpop.permute.xlu0 %3523
        %3525 = vrot.lane.b32.xlu0 %v3454, 24
        %v3526 = vpop.permute.xlu0 %3525
        %3527 = vrot.lane.b32.xlu0 %v3455, 24
        %v3528 = vpop.permute.xlu0 %3527
        %3529 = vrot.lane.b32.xlu0 %v3456, 24
        %v3530 = vpop.permute.xlu0 %3529
        %3531 = vrot.lane.b32.xlu0 %v3457, 24
        %v3532 = vpop.permute.xlu0 %3531
        %3533 = vrot.lane.b32.xlu0 %v3458, 24
        %v3534 = vpop.permute.xlu0 %3533
        %3535 = vrot.lane.b32.xlu0 %v3459, 24
        %v3536 = vpop.permute.xlu0 %3535
        %3537 = vrot.lane.b32.xlu0 %v3460, 24
        %v3538 = vpop.permute.xlu0 %3537
        %3539 = vrot.lane.b32.xlu0 %v3461, 24
        %v3540 = vpop.permute.xlu0 %3539
        %3541 = vrot.lane.b32.xlu0 %v3462, 24
        %v3542 = vpop.permute.xlu0 %3541
        %3543 = vrot.lane.b32.xlu0 %v3463, 24
        %v3544 = vpop.permute.xlu0 %3543
        %3545 = vrot.lane.b32.xlu0 %v3464, 24
        %v3546 = vpop.permute.xlu0 %3545
        %3547 = vrot.lane.b32.xlu0 %v3465, 24
        %v3548 = vpop.permute.xlu0 %3547
        %3549 = vrot.lane.b32.xlu0 %v3466, 24
        %v3550 = vpop.permute.xlu0 %3549
        %3551 = vrot.lane.b32.xlu0 %v3467, 24
        %v3552 = vpop.permute.xlu0 %3551
        %3553 = vrot.lane.b32.xlu0 %v3468, 24
        %v3554 = vpop.permute.xlu0 %3553
        %3555 = vrot.lane.b32.xlu0 %v3469, 24
        %v3556 = vpop.permute.xlu0 %3555
        %3557 = vrot.lane.b32.xlu0 %v3470, 24
        %v3558 = vpop.permute.xlu0 %3557
        %3559 = vrot.lane.b32.xlu0 %v3471, 24
        %v3560 = vpop.permute.xlu0 %3559
        %3561 = vrot.lane.b32.xlu0 %v3472, 24
        %v3562 = vpop.permute.xlu0 %3561
        %3563 = vrot.lane.b32.xlu0 %v3473, 24
        %v3564 = vpop.permute.xlu0 %3563
        %3565 = vrot.lane.b32.xlu0 %v3474, 24
        %v3566 = vpop.permute.xlu0 %3565
        %3567 = vrot.lane.b32.xlu0 %v3475, 24
        %v3568 = vpop.permute.xlu0 %3567
        %3569 = vrot.lane.b32.xlu0 %v3476, 24
        %v3570 = vpop.permute.xlu0 %3569
        %3571 = vrot.lane.b32.xlu0 %v3477, 24
        %v3572 = vpop.permute.xlu0 %3571
        %3573 = vrot.lane.b32.xlu0 %v3478, 24
        %v3574 = vpop.permute.xlu0 %3573
        %3607 = vst.msk [vmem:[#allocation3] sm:$0xff] %vm1570, %v3512
        %3608 = vst.msk [vmem:[#allocation3 + $0x8] sm:$0xff] %vm1570, %v3514
        %3609 = vst.msk [vmem:[#allocation3 + $0x10] sm:$0xff] %vm1570, %v3516
        %3610 = vst.msk [vmem:[#allocation3 + $0x18] sm:$0xff] %vm1570, %v3518
        %3611 = vst.msk [vmem:[#allocation3 + $0x20] sm:$0xff] %vm1570, %v3520
        %3612 = vst.msk [vmem:[#allocation3 + $0x28] sm:$0xff] %vm1570, %v3522
        %3613 = vst.msk [vmem:[#allocation3 + $0x30] sm:$0xff] %vm1570, %v3524
        %3614 = vst.msk [vmem:[#allocation3 + $0x38] sm:$0xff] %vm1570, %v3526
        %3615 = vst.msk [vmem:[#allocation3 + $0x40] sm:$0xff] %vm1570, %v3528
        %3616 = vst.msk [vmem:[#allocation3 + $0x48] sm:$0xff] %vm1570, %v3530
        %3617 = vst.msk [vmem:[#allocation3 + $0x50] sm:$0xff] %vm1570, %v3532
        %3618 = vst.msk [vmem:[#allocation3 + $0x58] sm:$0xff] %vm1570, %v3534
        %3619 = vst.msk [vmem:[#allocation3 + $0x60] sm:$0xff] %vm1570, %v3536
        %3620 = vst.msk [vmem:[#allocation3 + $0x68] sm:$0xff] %vm1570, %v3538
        %3621 = vst.msk [vmem:[#allocation3 + $0x70] sm:$0xff] %vm1570, %v3540
        %3622 = vst.msk [vmem:[#allocation3 + $0x78] sm:$0xff] %vm1570, %v3542
        %3623 = vst.msk [vmem:[#allocation3 + $0x80] sm:$0xff] %vm1570, %v3544
        %3624 = vst.msk [vmem:[#allocation3 + $0x88] sm:$0xff] %vm1570, %v3546
        %3625 = vst.msk [vmem:[#allocation3 + $0x90] sm:$0xff] %vm1570, %v3548
        %3626 = vst.msk [vmem:[#allocation3 + $0x98] sm:$0xff] %vm1570, %v3550
        %3627 = vst.msk [vmem:[#allocation3 + $0xa0] sm:$0xff] %vm1570, %v3552
        %3628 = vst.msk [vmem:[#allocation3 + $0xa8] sm:$0xff] %vm1570, %v3554
        %3629 = vst.msk [vmem:[#allocation3 + $0xb0] sm:$0xff] %vm1570, %v3556
        %3630 = vst.msk [vmem:[#allocation3 + $0xb8] sm:$0xff] %vm1570, %v3558
        %3631 = vst.msk [vmem:[#allocation3 + $0xc0] sm:$0xff] %vm1570, %v3560
        %3632 = vst.msk [vmem:[#allocation3 + $0xc8] sm:$0xff] %vm1570, %v3562
        %3633 = vst.msk [vmem:[#allocation3 + $0xd0] sm:$0xff] %vm1570, %v3564
        %3634 = vst.msk [vmem:[#allocation3 + $0xd8] sm:$0xff] %vm1570, %v3566
        %3635 = vst.msk [vmem:[#allocation3 + $0xe0] sm:$0xff] %vm1570, %v3568
        %3636 = vst.msk [vmem:[#allocation3 + $0xe8] sm:$0xff] %vm1570, %v3570
        %3637 = vst.msk [vmem:[#allocation3 + $0xf0] sm:$0xff] %vm1570, %v3572
        %3638 = vst.msk [vmem:[#allocation3 + $0xf8] sm:$0xff] %vm1570, %v3574
        %v3639 = vld [vmem:[%s1409 + $0x1] sm:$0xff]
        %v3640 = vld [vmem:[%s1409 + $0x9] sm:$0xff]
        %v3641 = vld [vmem:[%s1409 + $0x19] sm:$0xff]
        %v3642 = vld [vmem:[%s1409 + $0x21] sm:$0xff]
        %v3643 = vld [vmem:[%s1409 + $0x31] sm:$0xff]
        %v3644 = vld [vmem:[%s1409 + $0x39] sm:$0xff]
        %v3645 = vld [vmem:[%s1409 + $0x49] sm:$0xff]
        %v3646 = vld [vmem:[%s1409 + $0x51] sm:$0xff]
        %v3647 = vld [vmem:[%s1409 + $0x61] sm:$0xff]
        %v3648 = vld [vmem:[%s1409 + $0x69] sm:$0xff]
        %v3649 = vld [vmem:[%s1409 + $0x79] sm:$0xff]
        %v3650 = vld [vmem:[%s1409 + $0x81] sm:$0xff]
        %v3651 = vld [vmem:[%s1409 + $0x91] sm:$0xff]
        %v3652 = vld [vmem:[%s1409 + $0x99] sm:$0xff]
        %v3653 = vld [vmem:[%s1409 + $0xa9] sm:$0xff]
        %v3654 = vld [vmem:[%s1409 + $0xb1] sm:$0xff]
        %v3655 = vld [vmem:[%s1409 + $0xc1] sm:$0xff]
        %v3656 = vld [vmem:[%s1409 + $0xc9] sm:$0xff]
        %v3657 = vld [vmem:[%s1409 + $0xd9] sm:$0xff]
        %v3658 = vld [vmem:[%s1409 + $0xe1] sm:$0xff]
        %v3659 = vld [vmem:[%s1409 + $0xf1] sm:$0xff]
        %v3660 = vld [vmem:[%s1409 + $0xf9] sm:$0xff]
        %v3661 = vld [vmem:[%s1409 + $0x109] sm:$0xff]
        %v3662 = vld [vmem:[%s1409 + $0x111] sm:$0xff]
        %v3663 = vld [vmem:[%s1409 + $0x121] sm:$0xff]
        %v3664 = vld [vmem:[%s1409 + $0x129] sm:$0xff]
        %v3665 = vld [vmem:[%s1409 + $0x139] sm:$0xff]
        %v3666 = vld [vmem:[%s1409 + $0x141] sm:$0xff]
        %v3667 = vld [vmem:[%s1409 + $0x151] sm:$0xff]
        %v3668 = vld [vmem:[%s1409 + $0x159] sm:$0xff]
        %v3669 = vld [vmem:[%s1409 + $0x169] sm:$0xff]
        %v3670 = vld [vmem:[%s1409 + $0x171] sm:$0xff]
        %3703 = vrot.lane.b32.xlu0 %v3639, 28
        %v3704 = vpop.permute.xlu0 %3703
        %3705 = vrot.lane.b32.xlu0 %v3640, 28
        %v3706 = vpop.permute.xlu0 %3705
        %3707 = vrot.lane.b32.xlu0 %v3641, 28
        %v3708 = vpop.permute.xlu0 %3707
        %3709 = vrot.lane.b32.xlu0 %v3642, 28
        %v3710 = vpop.permute.xlu0 %3709
        %3711 = vrot.lane.b32.xlu0 %v3643, 28
        %v3712 = vpop.permute.xlu0 %3711
        %3713 = vrot.lane.b32.xlu0 %v3644, 28
        %v3714 = vpop.permute.xlu0 %3713
        %3715 = vrot.lane.b32.xlu0 %v3645, 28
        %v3716 = vpop.permute.xlu0 %3715
        %3717 = vrot.lane.b32.xlu0 %v3646, 28
        %v3718 = vpop.permute.xlu0 %3717
        %3719 = vrot.lane.b32.xlu0 %v3647, 28
        %v3720 = vpop.permute.xlu0 %3719
        %3721 = vrot.lane.b32.xlu0 %v3648, 28
        %v3722 = vpop.permute.xlu0 %3721
        %3723 = vrot.lane.b32.xlu0 %v3649, 28
        %v3724 = vpop.permute.xlu0 %3723
        %3725 = vrot.lane.b32.xlu0 %v3650, 28
        %v3726 = vpop.permute.xlu0 %3725
        %3727 = vrot.lane.b32.xlu0 %v3651, 28
        %v3728 = vpop.permute.xlu0 %3727
        %3729 = vrot.lane.b32.xlu0 %v3652, 28
        %v3730 = vpop.permute.xlu0 %3729
        %3731 = vrot.lane.b32.xlu0 %v3653, 28
        %v3732 = vpop.permute.xlu0 %3731
        %3733 = vrot.lane.b32.xlu0 %v3654, 28
        %v3734 = vpop.permute.xlu0 %3733
        %3735 = vrot.lane.b32.xlu0 %v3655, 28
        %v3736 = vpop.permute.xlu0 %3735
        %3737 = vrot.lane.b32.xlu0 %v3656, 28
        %v3738 = vpop.permute.xlu0 %3737
        %3739 = vrot.lane.b32.xlu0 %v3657, 28
        %v3740 = vpop.permute.xlu0 %3739
        %3741 = vrot.lane.b32.xlu0 %v3658, 28
        %v3742 = vpop.permute.xlu0 %3741
        %3743 = vrot.lane.b32.xlu0 %v3659, 28
        %v3744 = vpop.permute.xlu0 %3743
        %3745 = vrot.lane.b32.xlu0 %v3660, 28
        %v3746 = vpop.permute.xlu0 %3745
        %3747 = vrot.lane.b32.xlu0 %v3661, 28
        %v3748 = vpop.permute.xlu0 %3747
        %3749 = vrot.lane.b32.xlu0 %v3662, 28
        %v3750 = vpop.permute.xlu0 %3749
        %3751 = vrot.lane.b32.xlu0 %v3663, 28
        %v3752 = vpop.permute.xlu0 %3751
        %3753 = vrot.lane.b32.xlu0 %v3664, 28
        %v3754 = vpop.permute.xlu0 %3753
        %3755 = vrot.lane.b32.xlu0 %v3665, 28
        %v3756 = vpop.permute.xlu0 %3755
        %3757 = vrot.lane.b32.xlu0 %v3666, 28
        %v3758 = vpop.permute.xlu0 %3757
        %3759 = vrot.lane.b32.xlu0 %v3667, 28
        %v3760 = vpop.permute.xlu0 %3759
        %3761 = vrot.lane.b32.xlu0 %v3668, 28
        %v3762 = vpop.permute.xlu0 %3761
        %3763 = vrot.lane.b32.xlu0 %v3669, 28
        %v3764 = vpop.permute.xlu0 %3763
        %3765 = vrot.lane.b32.xlu0 %v3670, 28
        %v3766 = vpop.permute.xlu0 %3765
        %3799 = vst.msk [vmem:[#allocation3] sm:$0xff] %vm1763, %v3704
        %3800 = vst.msk [vmem:[#allocation3 + $0x8] sm:$0xff] %vm1763, %v3706
        %3801 = vst.msk [vmem:[#allocation3 + $0x10] sm:$0xff] %vm1763, %v3708
        %3802 = vst.msk [vmem:[#allocation3 + $0x18] sm:$0xff] %vm1763, %v3710
        %3803 = vst.msk [vmem:[#allocation3 + $0x20] sm:$0xff] %vm1763, %v3712
        %3804 = vst.msk [vmem:[#allocation3 + $0x28] sm:$0xff] %vm1763, %v3714
        %3805 = vst.msk [vmem:[#allocation3 + $0x30] sm:$0xff] %vm1763, %v3716
        %3806 = vst.msk [vmem:[#allocation3 + $0x38] sm:$0xff] %vm1763, %v3718
        %3807 = vst.msk [vmem:[#allocation3 + $0x40] sm:$0xff] %vm1763, %v3720
        %3808 = vst.msk [vmem:[#allocation3 + $0x48] sm:$0xff] %vm1763, %v3722
        %3809 = vst.msk [vmem:[#allocation3 + $0x50] sm:$0xff] %vm1763, %v3724
        %3810 = vst.msk [vmem:[#allocation3 + $0x58] sm:$0xff] %vm1763, %v3726
        %3811 = vst.msk [vmem:[#allocation3 + $0x60] sm:$0xff] %vm1763, %v3728
        %3812 = vst.msk [vmem:[#allocation3 + $0x68] sm:$0xff] %vm1763, %v3730
        %3813 = vst.msk [vmem:[#allocation3 + $0x70] sm:$0xff] %vm1763, %v3732
        %3814 = vst.msk [vmem:[#allocation3 + $0x78] sm:$0xff] %vm1763, %v3734
        %3815 = vst.msk [vmem:[#allocation3 + $0x80] sm:$0xff] %vm1763, %v3736
        %3816 = vst.msk [vmem:[#allocation3 + $0x88] sm:$0xff] %vm1763, %v3738
        %3817 = vst.msk [vmem:[#allocation3 + $0x90] sm:$0xff] %vm1763, %v3740
        %3818 = vst.msk [vmem:[#allocation3 + $0x98] sm:$0xff] %vm1763, %v3742
        %3819 = vst.msk [vmem:[#allocation3 + $0xa0] sm:$0xff] %vm1763, %v3744
        %3820 = vst.msk [vmem:[#allocation3 + $0xa8] sm:$0xff] %vm1763, %v3746
        %3821 = vst.msk [vmem:[#allocation3 + $0xb0] sm:$0xff] %vm1763, %v3748
        %3822 = vst.msk [vmem:[#allocation3 + $0xb8] sm:$0xff] %vm1763, %v3750
        %3823 = vst.msk [vmem:[#allocation3 + $0xc0] sm:$0xff] %vm1763, %v3752
        %3824 = vst.msk [vmem:[#allocation3 + $0xc8] sm:$0xff] %vm1763, %v3754
        %3825 = vst.msk [vmem:[#allocation3 + $0xd0] sm:$0xff] %vm1763, %v3756
        %3826 = vst.msk [vmem:[#allocation3 + $0xd8] sm:$0xff] %vm1763, %v3758
        %3827 = vst.msk [vmem:[#allocation3 + $0xe0] sm:$0xff] %vm1763, %v3760
        %3828 = vst.msk [vmem:[#allocation3 + $0xe8] sm:$0xff] %vm1763, %v3762
        %3829 = vst.msk [vmem:[#allocation3 + $0xf0] sm:$0xff] %vm1763, %v3764
        %3830 = vst.msk [vmem:[#allocation3 + $0xf8] sm:$0xff] %vm1763, %v3766
        %v3831 = vld [vmem:[%s1409 + $0x2] sm:$0xff]
        %v3832 = vld [vmem:[%s1409 + $0xa] sm:$0xff]
        %v3833 = vld [vmem:[%s1409 + $0x1a] sm:$0xff]
        %v3834 = vld [vmem:[%s1409 + $0x22] sm:$0xff]
        %v3835 = vld [vmem:[%s1409 + $0x32] sm:$0xff]
        %v3836 = vld [vmem:[%s1409 + $0x3a] sm:$0xff]
        %v3837 = vld [vmem:[%s1409 + $0x4a] sm:$0xff]
        %v3838 = vld [vmem:[%s1409 + $0x52] sm:$0xff]
        %v3839 = vld [vmem:[%s1409 + $0x62] sm:$0xff]
        %v3840 = vld [vmem:[%s1409 + $0x6a] sm:$0xff]
        %v3841 = vld [vmem:[%s1409 + $0x7a] sm:$0xff]
        %v3842 = vld [vmem:[%s1409 + $0x82] sm:$0xff]
        %v3843 = vld [vmem:[%s1409 + $0x92] sm:$0xff]
        %v3844 = vld [vmem:[%s1409 + $0x9a] sm:$0xff]
        %v3845 = vld [vmem:[%s1409 + $0xaa] sm:$0xff]
        %v3846 = vld [vmem:[%s1409 + $0xb2] sm:$0xff]
        %v3847 = vld [vmem:[%s1409 + $0xc2] sm:$0xff]
        %v3848 = vld [vmem:[%s1409 + $0xca] sm:$0xff]
        %v3849 = vld [vmem:[%s1409 + $0xda] sm:$0xff]
        %v3850 = vld [vmem:[%s1409 + $0xe2] sm:$0xff]
        %v3851 = vld [vmem:[%s1409 + $0xf2] sm:$0xff]
        %v3852 = vld [vmem:[%s1409 + $0xfa] sm:$0xff]
        %v3853 = vld [vmem:[%s1409 + $0x10a] sm:$0xff]
        %v3854 = vld [vmem:[%s1409 + $0x112] sm:$0xff]
        %v3855 = vld [vmem:[%s1409 + $0x122] sm:$0xff]
        %v3856 = vld [vmem:[%s1409 + $0x12a] sm:$0xff]
        %v3857 = vld [vmem:[%s1409 + $0x13a] sm:$0xff]
        %v3858 = vld [vmem:[%s1409 + $0x142] sm:$0xff]
        %v3859 = vld [vmem:[%s1409 + $0x152] sm:$0xff]
        %v3860 = vld [vmem:[%s1409 + $0x15a] sm:$0xff]
        %v3861 = vld [vmem:[%s1409 + $0x16a] sm:$0xff]
        %v3862 = vld [vmem:[%s1409 + $0x172] sm:$0xff]
        %3895 = vrot.lane.b32.xlu0 %v3831, 32
        %v3896 = vpop.permute.xlu0 %3895
        %3897 = vrot.lane.b32.xlu0 %v3832, 32
        %v3898 = vpop.permute.xlu0 %3897
        %3899 = vrot.lane.b32.xlu0 %v3833, 32
        %v3900 = vpop.permute.xlu0 %3899
        %3901 = vrot.lane.b32.xlu0 %v3834, 32
        %v3902 = vpop.permute.xlu0 %3901
        %3903 = vrot.lane.b32.xlu0 %v3835, 32
        %v3904 = vpop.permute.xlu0 %3903
        %3905 = vrot.lane.b32.xlu0 %v3836, 32
        %v3906 = vpop.permute.xlu0 %3905
        %3907 = vrot.lane.b32.xlu0 %v3837, 32
        %v3908 = vpop.permute.xlu0 %3907
        %3909 = vrot.lane.b32.xlu0 %v3838, 32
        %v3910 = vpop.permute.xlu0 %3909
        %3911 = vrot.lane.b32.xlu0 %v3839, 32
        %v3912 = vpop.permute.xlu0 %3911
        %3913 = vrot.lane.b32.xlu0 %v3840, 32
        %v3914 = vpop.permute.xlu0 %3913
        %3915 = vrot.lane.b32.xlu0 %v3841, 32
        %v3916 = vpop.permute.xlu0 %3915
        %3917 = vrot.lane.b32.xlu0 %v3842, 32
        %v3918 = vpop.permute.xlu0 %3917
        %3919 = vrot.lane.b32.xlu0 %v3843, 32
        %v3920 = vpop.permute.xlu0 %3919
        %3921 = vrot.lane.b32.xlu0 %v3844, 32
        %v3922 = vpop.permute.xlu0 %3921
        %3923 = vrot.lane.b32.xlu0 %v3845, 32
        %v3924 = vpop.permute.xlu0 %3923
        %3925 = vrot.lane.b32.xlu0 %v3846, 32
        %v3926 = vpop.permute.xlu0 %3925
        %3927 = vrot.lane.b32.xlu0 %v3847, 32
        %v3928 = vpop.permute.xlu0 %3927
        %3929 = vrot.lane.b32.xlu0 %v3848, 32
        %v3930 = vpop.permute.xlu0 %3929
        %3931 = vrot.lane.b32.xlu0 %v3849, 32
        %v3932 = vpop.permute.xlu0 %3931
        %3933 = vrot.lane.b32.xlu0 %v3850, 32
        %v3934 = vpop.permute.xlu0 %3933
        %3935 = vrot.lane.b32.xlu0 %v3851, 32
        %v3936 = vpop.permute.xlu0 %3935
        %3937 = vrot.lane.b32.xlu0 %v3852, 32
        %v3938 = vpop.permute.xlu0 %3937
        %3939 = vrot.lane.b32.xlu0 %v3853, 32
        %v3940 = vpop.permute.xlu0 %3939
        %3941 = vrot.lane.b32.xlu0 %v3854, 32
        %v3942 = vpop.permute.xlu0 %3941
        %3943 = vrot.lane.b32.xlu0 %v3855, 32
        %v3944 = vpop.permute.xlu0 %3943
        %3945 = vrot.lane.b32.xlu0 %v3856, 32
        %v3946 = vpop.permute.xlu0 %3945
        %3947 = vrot.lane.b32.xlu0 %v3857, 32
        %v3948 = vpop.permute.xlu0 %3947
        %3949 = vrot.lane.b32.xlu0 %v3858, 32
        %v3950 = vpop.permute.xlu0 %3949
        %3951 = vrot.lane.b32.xlu0 %v3859, 32
        %v3952 = vpop.permute.xlu0 %3951
        %3953 = vrot.lane.b32.xlu0 %v3860, 32
        %v3954 = vpop.permute.xlu0 %3953
        %3955 = vrot.lane.b32.xlu0 %v3861, 32
        %v3956 = vpop.permute.xlu0 %3955
        %3957 = vrot.lane.b32.xlu0 %v3862, 32
        %v3958 = vpop.permute.xlu0 %3957
        %3991 = vst.msk [vmem:[#allocation3] sm:$0xff] %vm1956, %v3896
        %3992 = vst.msk [vmem:[#allocation3 + $0x8] sm:$0xff] %vm1956, %v3898
        %3993 = vst.msk [vmem:[#allocation3 + $0x10] sm:$0xff] %vm1956, %v3900
        %3994 = vst.msk [vmem:[#allocation3 + $0x18] sm:$0xff] %vm1956, %v3902
        %3995 = vst.msk [vmem:[#allocation3 + $0x20] sm:$0xff] %vm1956, %v3904
        %3996 = vst.msk [vmem:[#allocation3 + $0x28] sm:$0xff] %vm1956, %v3906
        %3997 = vst.msk [vmem:[#allocation3 + $0x30] sm:$0xff] %vm1956, %v3908
        %3998 = vst.msk [vmem:[#allocation3 + $0x38] sm:$0xff] %vm1956, %v3910
        %3999 = vst.msk [vmem:[#allocation3 + $0x40] sm:$0xff] %vm1956, %v3912
        %4000 = vst.msk [vmem:[#allocation3 + $0x48] sm:$0xff] %vm1956, %v3914
        %4001 = vst.msk [vmem:[#allocation3 + $0x50] sm:$0xff] %vm1956, %v3916
        %4002 = vst.msk [vmem:[#allocation3 + $0x58] sm:$0xff] %vm1956, %v3918
        %4003 = vst.msk [vmem:[#allocation3 + $0x60] sm:$0xff] %vm1956, %v3920
        %4004 = vst.msk [vmem:[#allocation3 + $0x68] sm:$0xff] %vm1956, %v3922
        %4005 = vst.msk [vmem:[#allocation3 + $0x70] sm:$0xff] %vm1956, %v3924
        %4006 = vst.msk [vmem:[#allocation3 + $0x78] sm:$0xff] %vm1956, %v3926
        %4007 = vst.msk [vmem:[#allocation3 + $0x80] sm:$0xff] %vm1956, %v3928
        %4008 = vst.msk [vmem:[#allocation3 + $0x88] sm:$0xff] %vm1956, %v3930
        %4009 = vst.msk [vmem:[#allocation3 + $0x90] sm:$0xff] %vm1956, %v3932
        %4010 = vst.msk [vmem:[#allocation3 + $0x98] sm:$0xff] %vm1956, %v3934
        %4011 = vst.msk [vmem:[#allocation3 + $0xa0] sm:$0xff] %vm1956, %v3936
        %4012 = vst.msk [vmem:[#allocation3 + $0xa8] sm:$0xff] %vm1956, %v3938
        %4013 = vst.msk [vmem:[#allocation3 + $0xb0] sm:$0xff] %vm1956, %v3940
        %4014 = vst.msk [vmem:[#allocation3 + $0xb8] sm:$0xff] %vm1956, %v3942
        %4015 = vst.msk [vmem:[#allocation3 + $0xc0] sm:$0xff] %vm1956, %v3944
        %4016 = vst.msk [vmem:[#allocation3 + $0xc8] sm:$0xff] %vm1956, %v3946
        %4017 = vst.msk [vmem:[#allocation3 + $0xd0] sm:$0xff] %vm1956, %v3948
        %4018 = vst.msk [vmem:[#allocation3 + $0xd8] sm:$0xff] %vm1956, %v3950
        %4019 = vst.msk [vmem:[#allocation3 + $0xe0] sm:$0xff] %vm1956, %v3952
        %4020 = vst.msk [vmem:[#allocation3 + $0xe8] sm:$0xff] %vm1956, %v3954
        %4021 = vst.msk [vmem:[#allocation3 + $0xf0] sm:$0xff] %vm1956, %v3956
        %4022 = vst.msk [vmem:[#allocation3 + $0xf8] sm:$0xff] %vm1956, %v3958
        %v4023 = vld [vmem:[#allocation3] sm:$0xff]
        %v4024 = vld [vmem:[#allocation3 + $0x8] sm:$0xff]
        %v4025 = vld [vmem:[#allocation3 + $0x10] sm:$0xff]
        %v4026 = vld [vmem:[#allocation3 + $0x18] sm:$0xff]
        %v4027 = vld [vmem:[#allocation3 + $0x20] sm:$0xff]
        %v4028 = vld [vmem:[#allocation3 + $0x28] sm:$0xff]
        %v4029 = vld [vmem:[#allocation3 + $0x30] sm:$0xff]
        %v4030 = vld [vmem:[#allocation3 + $0x38] sm:$0xff]
        %v4031 = vld [vmem:[#allocation3 + $0x40] sm:$0xff]
        %v4032 = vld [vmem:[#allocation3 + $0x48] sm:$0xff]
        %v4033 = vld [vmem:[#allocation3 + $0x50] sm:$0xff]
        %v4034 = vld [vmem:[#allocation3 + $0x58] sm:$0xff]
        %v4035 = vld [vmem:[#allocation3 + $0x60] sm:$0xff]
        %v4036 = vld [vmem:[#allocation3 + $0x68] sm:$0xff]
        %v4037 = vld [vmem:[#allocation3 + $0x70] sm:$0xff]
        %v4038 = vld [vmem:[#allocation3 + $0x78] sm:$0xff]
        %v4039 = vld [vmem:[#allocation3 + $0x80] sm:$0xff]
        %v4040 = vld [vmem:[#allocation3 + $0x88] sm:$0xff]
        %v4041 = vld [vmem:[#allocation3 + $0x90] sm:$0xff]
        %v4042 = vld [vmem:[#allocation3 + $0x98] sm:$0xff]
        %v4043 = vld [vmem:[#allocation3 + $0xa0] sm:$0xff]
        %v4044 = vld [vmem:[#allocation3 + $0xa8] sm:$0xff]
        %v4045 = vld [vmem:[#allocation3 + $0xb0] sm:$0xff]
        %v4046 = vld [vmem:[#allocation3 + $0xb8] sm:$0xff]
        %v4047 = vld [vmem:[#allocation3 + $0xc0] sm:$0xff]
        %v4048 = vld [vmem:[#allocation3 + $0xc8] sm:$0xff]
        %v4049 = vld [vmem:[#allocation3 + $0xd0] sm:$0xff]
        %v4050 = vld [vmem:[#allocation3 + $0xd8] sm:$0xff]
        %v4051 = vld [vmem:[#allocation3 + $0xe0] sm:$0xff]
        %v4052 = vld [vmem:[#allocation3 + $0xe8] sm:$0xff]
        %v4053 = vld [vmem:[#allocation3 + $0xf0] sm:$0xff]
        %v4054 = vld [vmem:[#allocation3 + $0xf8] sm:$0xff]
        %v4055 = vld [vmem:[%s3] sm:$0xff]
        %v4056 = vld [vmem:[%s3 + $0x8] sm:$0xff]
        %v4057 = vld [vmem:[%s3 + $0x10] sm:$0xff]
        %v4058 = vld [vmem:[%s3 + $0x18] sm:$0xff]
        %v4059 = vld [vmem:[%s3 + $0x20] sm:$0xf]
        %v4060 = vld [vmem:[%s4] sm:$0x1]
        %v4062 = vlaneseq
        %v4063 = vshrl.u32 %v4062, 7
        %v4064 = vsub.s32 0, %v4063
        %v4065 = vrot.slane %v4060, %v4064
        %v4068 = vsel %vm2033, %v4023, 0
        %v4071 = vsel %vm2033, %v4024, 0
        %v4074 = vsel %vm2033, %v4025, 0
        %v4077 = vsel %vm2033, %v4026, 0
        %v4080 = vsel %vm2033, %v4027, 0
        %v4083 = vsel %vm2033, %v4028, 0
        %v4086 = vsel %vm2033, %v4029, 0
        %v4089 = vsel %vm2033, %v4030, 0
        %v4092 = vsel %vm2033, %v4031, 0
        %v4095 = vsel %vm2033, %v4032, 0
        %v4098 = vsel %vm2033, %v4033, 0
        %v4101 = vsel %vm2033, %v4034, 0
        %v4104 = vsel %vm2033, %v4035, 0
        %v4107 = vsel %vm2033, %v4036, 0
        %v4110 = vsel %vm2033, %v4037, 0
        %v4113 = vsel %vm2033, %v4038, 0
        %v4116 = vsel %vm2033, %v4039, 0
        %v4119 = vsel %vm2033, %v4040, 0
        %v4122 = vsel %vm2033, %v4041, 0
        %v4125 = vsel %vm2033, %v4042, 0
        %v4128 = vsel %vm2033, %v4043, 0
        %v4131 = vsel %vm2033, %v4044, 0
        %v4134 = vsel %vm2033, %v4045, 0
        %v4137 = vsel %vm2033, %v4046, 0
        %v4140 = vsel %vm2033, %v4047, 0
        %v4143 = vsel %vm2033, %v4048, 0
        %v4146 = vsel %vm2033, %v4049, 0
        %v4149 = vsel %vm2033, %v4050, 0
        %v4152 = vsel %vm2033, %v4051, 0
        %v4155 = vsel %vm2033, %v4052, 0
        %v4158 = vsel %vm2033, %v4053, 0
        %v4161 = vsel %vm2033, %v4054, 0
        %v4164 = vsel %vm2130, %v4059, 0
        %4166 = vmatprep.subr.mxu0 0.0
        %4167 = vmatpush1.msra.mxu0 %v4055
        %4168 = vmatprep.subr.mxu0 0.0
        %4169 = vmatpush1.msra.mxu0 %v4056
        %4170 = vmatprep.subr.mxu0 0.0
        %4171 = vmatpush1.msra.mxu0 %v4057
        %4172 = vmatprep.subr.mxu0 0.0
        %4173 = vmatpush1.msra.mxu0 %v4058
        %4174 = vmatprep.subr.mxu0 0.0
        %4175 = vmatpush1.msra.mxu0 %v4164
        %4176 = vmatprep.subr.mxu0 0.0
        %4177 = vmatpush1.msra.mxu0 0.0
        %4178 = vmatprep.subr.mxu0 0.0
        %4179 = vmatpush1.msra.mxu0 0.0
        %4180 = vmatprep.subr.mxu0 0.0
        %4181 = vmatpush1.msra.mxu0 0.0
        %4182 = vmatprep.subr.mxu0 0.0
        %4183 = vmatpush1.msra.mxu0 0.0
        %4184 = vmatprep.subr.mxu0 0.0
        %4185 = vmatpush1.msra.mxu0 0.0
        %4186 = vmatprep.subr.mxu0 0.0
        %4187 = vmatpush1.msra.mxu0 0.0
        %4188 = vmatprep.subr.mxu0 0.0
        %4189 = vmatpush1.msra.mxu0 0.0
        %4190 = vmatprep.subr.mxu0 0.0
        %4191 = vmatpush1.msra.mxu0 0.0
        %4192 = vmatprep.subr.mxu0 0.0
        %4193 = vmatpush1.msra.mxu0 0.0
        %4194 = vmatprep.subr.mxu0 0.0
        %4195 = vmatpush1.msra.mxu0 0.0
        %4196 = vmatprep.subr.mxu0 0.0
        %4197 = vmatpush1.msra.mxu0 0.0
        %4198 = vmatprep.subr.mxu0 0.0
        %4199 = vmatpush1.msra.mxu0 0.0
        %4200 = vmatprep.subr.mxu0 0.0
        %4201 = vmatpush1.msra.mxu0 0.0
        %4202 = vmatprep.subr.mxu0 0.0
        %4203 = vmatpush1.msra.mxu0 0.0
        %4204 = vmatprep.subr.mxu0 0.0
        %4205 = vmatpush1.msra.mxu0 0.0
        %4206 = vmatprep.subr.mxu0 0.0
        %4207 = vmatpush1.msra.mxu0 0.0
        %4208 = vmatprep.subr.mxu0 0.0
        %4209 = vmatpush1.msra.mxu0 0.0
        %4210 = vmatprep.subr.mxu0 0.0
        %4211 = vmatpush1.msra.mxu0 0.0
        %4212 = vmatprep.subr.mxu0 0.0
        %4213 = vmatpush1.msra.mxu0 0.0
        %4214 = vmatprep.subr.mxu0 0.0
        %4215 = vmatpush1.msra.mxu0 0.0
        %4216 = vmatprep.subr.mxu0 0.0
        %4217 = vmatpush1.msra.mxu0 0.0
        %4218 = vmatprep.subr.mxu0 0.0
        %4219 = vmatpush1.msra.mxu0 0.0
        %4220 = vmatprep.subr.mxu0 0.0
        %4221 = vmatpush1.msra.mxu0 0.0
        %4222 = vmatprep.subr.mxu0 0.0
        %4223 = vmatpush1.msra.mxu0 0.0
        %4224 = vmatprep.subr.mxu0 0.0
        %4225 = vmatpush1.msra.mxu0 0.0
        %4226 = vmatprep.subr.mxu0 0.0
        %4227 = vmatpush1.msra.mxu0 0.0
        %4228 = vmatprep.subr.mxu0 0.0
        %4229 = vmatpush1.msra.mxu0 0.0
        %4230 = vmatprep.mubr.f32.mxu0 0.0
        %4231 = vmatmul.mubr.f32.gmra.mrb[0].mxu0 %v4068
        %v4232 = vpop.f32.mrb[0].mxu0
        %v4233 = vadd.f32 %v4065, %v4232
        %v4234 = vpop.f32.mrb[0].mxu0
        %4235 = vmatprep.mubr.f32.mxu0 0.0
        %4236 = vmatmul.mubr.f32.gmra.mrb[0].mxu0 %v4071
        %v4237 = vpop.f32.mrb[0].mxu0
        %v4238 = vadd.f32 %v4065, %v4237
        %v4239 = vpop.f32.mrb[0].mxu0
        %4240 = vmatprep.mubr.f32.mxu0 0.0
        %4241 = vmatmul.mubr.f32.gmra.mrb[0].mxu0 %v4074
        %v4242 = vpop.f32.mrb[0].mxu0
        %v4243 = vadd.f32 %v4065, %v4242
        %v4244 = vpop.f32.mrb[0].mxu0
        %4245 = vmatprep.mubr.f32.mxu0 0.0
        %4246 = vmatmul.mubr.f32.gmra.mrb[0].mxu0 %v4077
        %v4247 = vpop.f32.mrb[0].mxu0
        %v4248 = vadd.f32 %v4065, %v4247
        %v4249 = vpop.f32.mrb[0].mxu0
        %4250 = vmatprep.mubr.f32.mxu0 0.0
        %4251 = vmatmul.mubr.f32.gmra.mrb[0].mxu0 %v4080
        %v4252 = vpop.f32.mrb[0].mxu0
        %v4253 = vadd.f32 %v4065, %v4252
        %v4254 = vpop.f32.mrb[0].mxu0
        %4255 = vmatprep.mubr.f32.mxu0 0.0
        %4256 = vmatmul.mubr.f32.gmra.mrb[0].mxu0 %v4083
        %v4257 = vpop.f32.mrb[0].mxu0
        %v4258 = vadd.f32 %v4065, %v4257
        %v4259 = vpop.f32.mrb[0].mxu0
        %4260 = vmatprep.mubr.f32.mxu0 0.0
        %4261 = vmatmul.mubr.f32.gmra.mrb[0].mxu0 %v4086
        %v4262 = vpop.f32.mrb[0].mxu0
        %v4263 = vadd.f32 %v4065, %v4262
        %v4264 = vpop.f32.mrb[0].mxu0
        %4265 = vmatprep.mubr.f32.mxu0 0.0
        %4266 = vmatmul.mubr.f32.gmra.mrb[0].mxu0 %v4089
        %v4267 = vpop.f32.mrb[0].mxu0
        %v4268 = vadd.f32 %v4065, %v4267
        %v4269 = vpop.f32.mrb[0].mxu0
        %4270 = vmatprep.mubr.f32.mxu0 0.0
        %4271 = vmatmul.mubr.f32.gmra.mrb[0].mxu0 %v4092
        %v4272 = vpop.f32.mrb[0].mxu0
        %v4273 = vadd.f32 %v4065, %v4272
        %v4274 = vpop.f32.mrb[0].mxu0
        %4275 = vmatprep.mubr.f32.mxu0 0.0
        %4276 = vmatmul.mubr.f32.gmra.mrb[0].mxu0 %v4095
        %v4277 = vpop.f32.mrb[0].mxu0
        %v4278 = vadd.f32 %v4065, %v4277
        %v4279 = vpop.f32.mrb[0].mxu0
        %4280 = vmatprep.mubr.f32.mxu0 0.0
        %4281 = vmatmul.mubr.f32.gmra.mrb[0].mxu0 %v4098
        %v4282 = vpop.f32.mrb[0].mxu0
        %v4283 = vadd.f32 %v4065, %v4282
        %v4284 = vpop.f32.mrb[0].mxu0
        %4285 = vmatprep.mubr.f32.mxu0 0.0
        %4286 = vmatmul.mubr.f32.gmra.mrb[0].mxu0 %v4101
        %v4287 = vpop.f32.mrb[0].mxu0
        %v4288 = vadd.f32 %v4065, %v4287
        %v4289 = vpop.f32.mrb[0].mxu0
        %4290 = vmatprep.mubr.f32.mxu0 0.0
        %4291 = vmatmul.mubr.f32.gmra.mrb[0].mxu0 %v4104
        %v4292 = vpop.f32.mrb[0].mxu0
        %v4293 = vadd.f32 %v4065, %v4292
        %v4294 = vpop.f32.mrb[0].mxu0
        %4295 = vmatprep.mubr.f32.mxu0 0.0
        %4296 = vmatmul.mubr.f32.gmra.mrb[0].mxu0 %v4107
        %v4297 = vpop.f32.mrb[0].mxu0
        %v4298 = vadd.f32 %v4065, %v4297
        %v4299 = vpop.f32.mrb[0].mxu0
        %4300 = vmatprep.mubr.f32.mxu0 0.0
        %4301 = vmatmul.mubr.f32.gmra.mrb[0].mxu0 %v4110
        %v4302 = vpop.f32.mrb[0].mxu0
        %v4303 = vadd.f32 %v4065, %v4302
        %v4304 = vpop.f32.mrb[0].mxu0
        %4305 = vmatprep.mubr.f32.mxu0 0.0
        %4306 = vmatmul.mubr.f32.gmra.mrb[0].mxu0 %v4113
        %v4307 = vpop.f32.mrb[0].mxu0
        %v4308 = vadd.f32 %v4065, %v4307
        %v4309 = vpop.f32.mrb[0].mxu0
        %4310 = vmatprep.mubr.f32.mxu0 0.0
        %4311 = vmatmul.mubr.f32.gmra.mrb[0].mxu0 %v4116
        %v4312 = vpop.f32.mrb[0].mxu0
        %v4313 = vadd.f32 %v4065, %v4312
        %v4314 = vpop.f32.mrb[0].mxu0
        %4315 = vmatprep.mubr.f32.mxu0 0.0
        %4316 = vmatmul.mubr.f32.gmra.mrb[0].mxu0 %v4119
        %v4317 = vpop.f32.mrb[0].mxu0
        %v4318 = vadd.f32 %v4065, %v4317
        %v4319 = vpop.f32.mrb[0].mxu0
        %4320 = vmatprep.mubr.f32.mxu0 0.0
        %4321 = vmatmul.mubr.f32.gmra.mrb[0].mxu0 %v4122
        %v4322 = vpop.f32.mrb[0].mxu0
        %v4323 = vadd.f32 %v4065, %v4322
        %v4324 = vpop.f32.mrb[0].mxu0
        %4325 = vmatprep.mubr.f32.mxu0 0.0
        %4326 = vmatmul.mubr.f32.gmra.mrb[0].mxu0 %v4125
        %v4327 = vpop.f32.mrb[0].mxu0
        %v4328 = vadd.f32 %v4065, %v4327
        %v4329 = vpop.f32.mrb[0].mxu0
        %4330 = vmatprep.mubr.f32.mxu0 0.0
        %4331 = vmatmul.mubr.f32.gmra.mrb[0].mxu0 %v4128
        %v4332 = vpop.f32.mrb[0].mxu0
        %v4333 = vadd.f32 %v4065, %v4332
        %v4334 = vpop.f32.mrb[0].mxu0
        %4335 = vmatprep.mubr.f32.mxu0 0.0
        %4336 = vmatmul.mubr.f32.gmra.mrb[0].mxu0 %v4131
        %v4337 = vpop.f32.mrb[0].mxu0
        %v4338 = vadd.f32 %v4065, %v4337
        %v4339 = vpop.f32.mrb[0].mxu0
        %4340 = vmatprep.mubr.f32.mxu0 0.0
        %4341 = vmatmul.mubr.f32.gmra.mrb[0].mxu0 %v4134
        %v4342 = vpop.f32.mrb[0].mxu0
        %v4343 = vadd.f32 %v4065, %v4342
        %v4344 = vpop.f32.mrb[0].mxu0
        %4345 = vmatprep.mubr.f32.mxu0 0.0
        %4346 = vmatmul.mubr.f32.gmra.mrb[0].mxu0 %v4137
        %v4347 = vpop.f32.mrb[0].mxu0
        %v4348 = vadd.f32 %v4065, %v4347
        %v4349 = vpop.f32.mrb[0].mxu0
        %4350 = vmatprep.mubr.f32.mxu0 0.0
        %4351 = vmatmul.mubr.f32.gmra.mrb[0].mxu0 %v4140
        %v4352 = vpop.f32.mrb[0].mxu0
        %v4353 = vadd.f32 %v4065, %v4352
        %v4354 = vpop.f32.mrb[0].mxu0
        %4355 = vmatprep.mubr.f32.mxu0 0.0
        %4356 = vmatmul.mubr.f32.gmra.mrb[0].mxu0 %v4143
        %v4357 = vpop.f32.mrb[0].mxu0
        %v4358 = vadd.f32 %v4065, %v4357
        %v4359 = vpop.f32.mrb[0].mxu0
        %4360 = vmatprep.mubr.f32.mxu0 0.0
        %4361 = vmatmul.mubr.f32.gmra.mrb[0].mxu0 %v4146
        %v4362 = vpop.f32.mrb[0].mxu0
        %v4363 = vadd.f32 %v4065, %v4362
        %v4364 = vpop.f32.mrb[0].mxu0
        %4365 = vmatprep.mubr.f32.mxu0 0.0
        %4366 = vmatmul.mubr.f32.gmra.mrb[0].mxu0 %v4149
        %v4367 = vpop.f32.mrb[0].mxu0
        %v4368 = vadd.f32 %v4065, %v4367
        %v4369 = vpop.f32.mrb[0].mxu0
        %4370 = vmatprep.mubr.f32.mxu0 0.0
        %4371 = vmatmul.mubr.f32.gmra.mrb[0].mxu0 %v4152
        %v4372 = vpop.f32.mrb[0].mxu0
        %v4373 = vadd.f32 %v4065, %v4372
        %v4374 = vpop.f32.mrb[0].mxu0
        %4375 = vmatprep.mubr.f32.mxu0 0.0
        %4376 = vmatmul.mubr.f32.gmra.mrb[0].mxu0 %v4155
        %v4377 = vpop.f32.mrb[0].mxu0
        %v4378 = vadd.f32 %v4065, %v4377
        %v4379 = vpop.f32.mrb[0].mxu0
        %4380 = vmatprep.mubr.f32.mxu0 0.0
        %4381 = vmatmul.mubr.f32.gmra.mrb[0].mxu0 %v4158
        %v4382 = vpop.f32.mrb[0].mxu0
        %v4383 = vadd.f32 %v4065, %v4382
        %v4384 = vpop.f32.mrb[0].mxu0
        %4385 = vmatprep.mubr.f32.mxu0 0.0
        %4386 = vmatmul.mubr.f32.gmra.mrb[0].mxu0 %v4161
        %v4387 = vpop.f32.mrb[0].mxu0
        %v4388 = vadd.f32 %v4065, %v4387
        %v4389 = vpop.f32.mrb[0].mxu0
        %4390 = vdwg.mxu0
        %v4391 = vadd.f32 %v4233, %v243
        %v4392 = vadd.f32 %v4238, %v244
        %v4393 = vadd.f32 %v4243, %v245
        %v4394 = vadd.f32 %v4248, %v246
        %v4395 = vadd.f32 %v4253, %v247
        %v4396 = vadd.f32 %v4258, %v248
        %v4397 = vadd.f32 %v4263, %v249
        %v4398 = vadd.f32 %v4268, %v250
        %v4399 = vadd.f32 %v4273, %v251
        %v4400 = vadd.f32 %v4278, %v252
        %v4401 = vadd.f32 %v4283, %v253
        %v4402 = vadd.f32 %v4288, %v254
        %v4403 = vadd.f32 %v4293, %v255
        %v4404 = vadd.f32 %v4298, %v256
        %v4405 = vadd.f32 %v4303, %v257
        %v4406 = vadd.f32 %v4308, %v258
        %v4407 = vadd.f32 %v4313, %v275
        %v4408 = vadd.f32 %v4318, %v276
        %v4409 = vadd.f32 %v4323, %v277
        %v4410 = vadd.f32 %v4328, %v278
        %v4411 = vadd.f32 %v4333, %v279
        %v4412 = vadd.f32 %v4338, %v280
        %v4413 = vadd.f32 %v4343, %v281
        %v4414 = vadd.f32 %v4348, %v282
        %v4415 = vadd.f32 %v4353, %v283
        %v4416 = vadd.f32 %v4358, %v284
        %v4417 = vadd.f32 %v4363, %v285
        %v4418 = vadd.f32 %v4368, %v286
        %v4419 = vadd.f32 %v4373, %v287
        %v4420 = vadd.f32 %v4378, %v288
        %v4421 = vadd.f32 %v4383, %v289
        %v4422 = vadd.f32 %v4388, %v290
        %v4423 = vmax.f32 %v4391, 0.0
        %v4424 = vmax.f32 %v4392, 0.0
        %v4425 = vmax.f32 %v4393, 0.0
        %v4426 = vmax.f32 %v4394, 0.0
        %v4427 = vmax.f32 %v4395, 0.0
        %v4428 = vmax.f32 %v4396, 0.0
        %v4429 = vmax.f32 %v4397, 0.0
        %v4430 = vmax.f32 %v4398, 0.0
        %v4431 = vmax.f32 %v4399, 0.0
        %v4432 = vmax.f32 %v4400, 0.0
        %v4433 = vmax.f32 %v4401, 0.0
        %v4434 = vmax.f32 %v4402, 0.0
        %v4435 = vmax.f32 %v4403, 0.0
        %v4436 = vmax.f32 %v4404, 0.0
        %v4437 = vmax.f32 %v4405, 0.0
        %v4438 = vmax.f32 %v4406, 0.0
        %v4439 = vmax.f32 %v4407, 0.0
        %v4440 = vmax.f32 %v4408, 0.0
        %v4441 = vmax.f32 %v4409, 0.0
        %v4442 = vmax.f32 %v4410, 0.0
        %v4443 = vmax.f32 %v4411, 0.0
        %v4444 = vmax.f32 %v4412, 0.0
        %v4445 = vmax.f32 %v4413, 0.0
        %v4446 = vmax.f32 %v4414, 0.0
        %v4447 = vmax.f32 %v4415, 0.0
        %v4448 = vmax.f32 %v4416, 0.0
        %v4449 = vmax.f32 %v4417, 0.0
        %v4450 = vmax.f32 %v4418, 0.0
        %v4451 = vmax.f32 %v4419, 0.0
        %v4452 = vmax.f32 %v4420, 0.0
        %v4453 = vmax.f32 %v4421, 0.0
        %v4454 = vmax.f32 %v4422, 0.0
        %4455 = vxpose.xlu0.b32.start [1/16] %v4423, 128
        %4456 = vxpose.xlu0.b32.cont [2/16] %v4424, 128
        %4457 = vxpose.xlu0.b32.cont [3/16] %v4425, 128
        %4458 = vxpose.xlu0.b32.cont [4/16] %v4426, 128
        %4459 = vxpose.xlu0.b32.cont [5/16] %v4427, 128
        %4460 = vxpose.xlu0.b32.cont [6/16] %v4428, 128
        %4461 = vxpose.xlu0.b32.cont [7/16] %v4429, 128
        %4462 = vxpose.xlu0.b32.cont [8/16] %v4430, 128
        %4463 = vxpose.xlu0.b32.cont [9/16] %v4431, 128
        %4464 = vxpose.xlu0.b32.cont [10/16] %v4432, 128
        %4465 = vxpose.xlu0.b32.cont [11/16] %v4433, 128
        %4466 = vxpose.xlu0.b32.cont [12/16] %v4434, 128
        %4467 = vxpose.xlu0.b32.cont [13/16] %v4435, 128
        %4468 = vxpose.xlu0.b32.cont [14/16] %v4436, 128
        %4469 = vxpose.xlu0.b32.cont [15/16] %v4437, 128
        %4470 = vxpose.xlu0.b32.end [16/16] %v4438, 128
        %v4471 = vpop.trf.xlu0
        %v4472 = vpop.trf.xlu0
        %v4473 = vpop.trf.xlu0
        %v4474 = vpop.trf.xlu0
        %v4475 = vpop.trf.xlu0
        %v4476 = vpop.trf.xlu0
        %v4477 = vpop.trf.xlu0
        %v4478 = vpop.trf.xlu0
        %v4479 = vpop.trf.xlu0
        %v4480 = vpop.trf.xlu0
        %v4481 = vpop.trf.xlu0
        %v4482 = vpop.trf.xlu0
        %v4483 = vpop.trf.xlu0
        %v4484 = vpop.trf.xlu0
        %v4485 = vpop.trf.xlu0
        %v4486 = vpop.trf.xlu0
        %4487 = vxpose.xlu0.b32.start [1/16] %v4439, 128
        %4488 = vxpose.xlu0.b32.cont [2/16] %v4440, 128
        %4489 = vxpose.xlu0.b32.cont [3/16] %v4441, 128
        %4490 = vxpose.xlu0.b32.cont [4/16] %v4442, 128
        %4491 = vxpose.xlu0.b32.cont [5/16] %v4443, 128
        %4492 = vxpose.xlu0.b32.cont [6/16] %v4444, 128
        %4493 = vxpose.xlu0.b32.cont [7/16] %v4445, 128
        %4494 = vxpose.xlu0.b32.cont [8/16] %v4446, 128
        %4495 = vxpose.xlu0.b32.cont [9/16] %v4447, 128
        %4496 = vxpose.xlu0.b32.cont [10/16] %v4448, 128
        %4497 = vxpose.xlu0.b32.cont [11/16] %v4449, 128
        %4498 = vxpose.xlu0.b32.cont [12/16] %v4450, 128
        %4499 = vxpose.xlu0.b32.cont [13/16] %v4451, 128
        %4500 = vxpose.xlu0.b32.cont [14/16] %v4452, 128
        %4501 = vxpose.xlu0.b32.cont [15/16] %v4453, 128
        %4502 = vxpose.xlu0.b32.end [16/16] %v4454, 128
        %v4503 = vpop.trf.xlu0
        %v4504 = vpop.trf.xlu0
        %v4505 = vpop.trf.xlu0
        %v4506 = vpop.trf.xlu0
        %v4507 = vpop.trf.xlu0
        %v4508 = vpop.trf.xlu0
        %v4509 = vpop.trf.xlu0
        %v4510 = vpop.trf.xlu0
        %v4511 = vpop.trf.xlu0
        %v4512 = vpop.trf.xlu0
        %v4513 = vpop.trf.xlu0
        %v4514 = vpop.trf.xlu0
        %v4515 = vpop.trf.xlu0
        %v4516 = vpop.trf.xlu0
        %v4517 = vpop.trf.xlu0
        %v4518 = vpop.trf.xlu0
        %v4521 = vcombine.low %v4471, %v4503
        %4523 = vst [vmem:[%s217] sm:$0xff] %v4521
        %s4524 = sand.u32 %s137, 1
        %s4525 = scalar_lea.sflag [#allocation5], %s4524
        %s4526 = sand.u32 %s137, 1
        %s4527 = smul.addr %s4526, 8
        %s4528 = scalar_lea.vmem [#allocation4], %s4527
        // Predicated region
        $region41: #{tpu_custom_call.1} parent=39 // pred_check
          %p4529 = pneg %p147
        $region42: #{tpu_custom_call.1} parent=39 // pred_check_branch
          %4531 = sbr.rel (%p4529) target = $region44
        $region43: #{tpu_custom_call.1} parent=39 // pred_region
          %s4533 = ssub.s32 128, 128
          %4534 = vsyncadd %s4525, %s4533
          %s4535 = smul.addr %s19, 2
          %s4536 = smul.addr %s4535, 64
          %s4537 = scalar_lea.hbm %s5, %s4536
          %s4539 = sshll.u32 %s4528, 4
          %s4540 = int_to_ptr.vmem [resolvable:$true] %s4539
          %4542 = dma.vmem_to_hbm [thread:$0]  %s4540, 128, %s4537, %s4525
        $region44: #{tpu_custom_call.1} parent=39 // pred_fallthru
          _
      $region40: #{tpu_custom_call.1} parent=5 // pred_fallthru
        _
      %p4543 = scmp.le.s32.totalorder 2, %s14
      // Predicated region
      $region45: #{tpu_custom_call.1} parent=5 // pred_check
        %p4544 = pneg %p4543
      $region46: #{tpu_custom_call.1} parent=5 // pred_check_branch
        %4546 = sbr.rel (%p4544) target = $region48
      $region47: #{tpu_custom_call.1} parent=5 // pred_region
        %s4547 = ssub.s32 %s14, 2
        // Predicated region
        $region49: #{tpu_custom_call.1} parent=47 // pred_check
          %p4548 = pneg %p153
        $region50: #{tpu_custom_call.1} parent=47 // pred_check_branch
          %4550 = sbr.rel (%p4548) target = $region52
        $region51: #{tpu_custom_call.1} parent=47 // pred_region
          %s4551 = sand.u32 %s138, 1
          %s4552 = scalar_lea.sflag [#allocation5], %s4551
          %s4553 = sand.u32 %s138, 1
          %s4554 = smul.addr %s4553, 8
          %s4555 = scalar_lea.vmem [#allocation4], %s4554
          %4556 = dma.done %s4552, 128
        $region52: #{tpu_custom_call.1} parent=47 // pred_fallthru
          _
      $region48: #{tpu_custom_call.1} parent=5 // pred_fallthru
        _
    $region6: #{tpu_custom_call.1} parent=1 // loop_footer
      %s18 = sadd.s32 1, %s14
    $region7: #{tpu_custom_call.1} parent=1 // loop_footer_branch
      %13 = sbr.rel target = $region3
    $region8: #{tpu_custom_call.1} parent=1 // loop_exit
      _
    %4557 = vsyncpa [#allocation5], 1
    %s4558 = scalar_lea.sflag [#allocation5], 1
    %4559 = vsyncpa %s4558, 1

</llo_original>
